<compile_context>
chip_gen: v7x
topology: tpu7x:2x2x1
jax: 0.10.0
libtpu: 0.0.40
codegen_flags: <defaults>
</compile_context>

<pallas_src>
import functools

import jax
import jax.numpy as jnp
import numpy as np
from jax.experimental import pallas as pl
from jax.experimental.pallas import tpu as pltpu


# ----------------------------------------------------------------------------
# Fused kernel: whole 6-layer autoencoder for one batch block per grid step
# ----------------------------------------------------------------------------
def _fused_ae_kernel(x_ref, *refs, n_layers, compute_dtype):
    """x_ref: (Rb, W*Cin) input rows of one batch block.
    refs: (T_0, M_0, b_0, ..., T_{L-1}, M_{L-1}, b_{L-1}, o_ref).
    Per layer:  out = sum_ky (T[ky] @ A) @ M[ky] + b ;  ReLU on all but the last layer."""
    o_ref = refs[-1]
    a = x_ref[...].astype(compute_dtype)                   # activation, rows x (W*C)
    for l in range(n_layers):
        t_ref = refs[3 * l]
        m_ref = refs[3 * l + 1]
        b_ref = refs[3 * l + 2]
        acc = None
        for ky in range(3):                                 # unrolled: 3 y-taps, 6 2-D matmuls
            sel = jnp.dot(t_ref[ky], a, preferred_element_type=jnp.float32)
            term = jnp.dot(sel.astype(compute_dtype), m_ref[ky],
                           preferred_element_type=jnp.float32)
            acc = term if acc is None else acc + term
        acc = acc + b_ref[...]                              # (1, N) f32 bias row, broadcast
        if l < n_layers - 1:
            a = jnp.maximum(acc, 0.0).astype(compute_dtype)
        else:
            o_ref[...] = acc.astype(o_ref.dtype)


def _padded_vmem_bytes(shape, dtype):
    """VMEM bytes of one block including (8, 128) sublane/lane padding."""
    shape = tuple(int(d) for d in shape)
    if len(shape) < 2:
        shape = (1,) * (2 - len(shape)) + shape
    lead = 1
    for d in shape[:-2]:
        lead *= d
    sub = ((shape[-2] + 7) // 8) * 8
    lane = ((shape[-1] + 127) // 128) * 128
    return lead * sub * lane * jnp.dtype(dtype).itemsize


def _fused_forward(x_rows, layers, *, batch, height, width, block_b, compute_dtype):
    """x_rows: (B*H, W*3) float32 -> decoded rows (B*H, W*3) float32, one pallas_call."""
    assert batch % block_b == 0
    n_steps = batch // block_b
    rows_blk = block_b * height
    cols_in = x_rows.shape[1]
    cols_out = width * 3

    operands = [x_rows]
    in_specs = [pl.BlockSpec((rows_blk, cols_in), lambda s: (s, 0))]
    for t, m, b in layers:                                  # weights resident across the grid
        for arr in (t, m, b):
            operands.append(arr)
            in_specs.append(
                pl.BlockSpec(tuple(arr.shape), lambda s, nd=arr.ndim: (0,) * nd))

    # VMEM budget: (8,128)-padded block bytes, double-buffered, + headroom; 40 MiB cap (v7x).
    need = sum(2 * _padded_vmem_bytes(op.shape, op.dtype) for op in operands)
    need += 2 * _padded_vmem_bytes((rows_blk, cols_out), jnp.float32)
    need += 4 << 20
    vmem_limit = int(min(max(need, 16 << 20), 40 << 20))

    kernel = functools.partial(_fused_ae_kernel, n_layers=len(layers),
                               compute_dtype=compute_dtype)
    return pl.pallas_call(
        kernel,
        out_shape=jax.ShapeDtypeStruct((batch * height, cols_out), jnp.float32),
        grid=(n_steps,),
        in_specs=in_specs,
        out_specs=pl.BlockSpec((rows_blk, cols_out), lambda s: (s, 0)),
        compiler_params=pltpu.CompilerParams(
            dimension_semantics=("parallel",),
            vmem_limit_bytes=vmem_limit,
        ),
    )(*operands)


# ----------------------------------------------------------------------------
# One-time weight transforms (PyTorch layout -> row/column tap matrices)
# ----------------------------------------------------------------------------
def _conv_s2_row_col_taps(w_oihw, h_in, w_in):
    """Conv2d(Cin->Cout, 3x3, stride 2, pad 1).
    Returns T: (3, H/2, H) row-selection taps and M: (3, W*Cin, (W/2)*Cout) column taps."""
    w = np.asarray(w_oihw, np.float32)                      # (Cout, Cin, 3, 3)
    cout, cin = w.shape[0], w.shape[1]
    h_out, w_out = h_in // 2, w_in // 2
    T = np.zeros((3, h_out, h_in), np.float32)
    M = np.zeros((3, w_in * cin, w_out * cout), np.float32)
    for ky in range(3):
        for yo in range(h_out):
            yi = 2 * yo + ky - 1
            if 0 <= yi < h_in:
                T[ky, yo, yi] = 1.0
        for xo in range(w_out):
            for kx in range(3):
                xi = 2 * xo + kx - 1
                if 0 <= xi < w_in:
                    M[ky, xi * cin:(xi + 1) * cin,
                      xo * cout:(xo + 1) * cout] = w[:, :, ky, kx].T
    return T, M


def _convT_s2_row_col_taps(w_iohw, h_in, w_in):
    """ConvTranspose2d(Cin->Cout, 3x3, stride 2, pad 1, output_pad 1).
    Returns T: (3, 2H, H) and M: (3, W*Cin, 2W*Cout)."""
    w = np.asarray(w_iohw, np.float32)                      # (Cin, Cout, 3, 3)
    cin, cout = w.shape[0], w.shape[1]
    h_out, w_out = 2 * h_in, 2 * w_in
    T = np.zeros((3, h_out, h_in), np.float32)
    M = np.zeros((3, w_in * cin, w_out * cout), np.float32)
    for ky in range(3):
        for yo in range(h_out):
            num = yo + 1 - ky                               # ky = yo + 1 - 2*yi
            if num % 2 == 0 and 0 <= num // 2 < h_in:
                T[ky, yo, num // 2] = 1.0
        for xi in range(w_in):
            for kx in range(3):
                xo = 2 * xi + kx - 1
                if 0 <= xo < w_out:
                    M[ky, xi * cin:(xi + 1) * cin,
                      xo * cout:(xo + 1) * cout] = w[:, :, ky, kx]
    return T, M


def prepare_params(p, *, height=16, width=16, block_b=1, compute_dtype=jnp.bfloat16):
    """One-time transform of PyTorch-layout weights into the tap form used by the fused
    kernel (all reshapes/casts hoisted out of the per-forward path)."""
    assert height % 8 == 0 and width % 8 == 0, "3 stride-2 stages need H, W % 8 == 0"
    layer_defs = (("e0", "conv"), ("e1", "conv"), ("e2", "conv"),
                  ("d0", "convt"), ("d1", "convt"), ("d2", "convt"))
    layers = []
    h, w = height, width
    for name, kind in layer_defs:
        wt = np.asarray(p[name + "_w"], np.float32)
        bias = np.asarray(p[name + "_b"], np.float32)
        if kind == "conv":
            T, M = _conv_s2_row_col_taps(wt, h, w)
            h, w, cout = h // 2, w // 2, wt.shape[0]
        else:
            T, M = _convT_s2_row_col_taps(wt, h, w)
            h, w, cout = 2 * h, 2 * w, wt.shape[1]
        if block_b > 1:
            # Fold block_b images into the matmul M (rows) dimension: block-diagonal T.
            eye = np.eye(block_b, dtype=np.float32)
            T = np.stack([np.kron(eye, T[k]) for k in range(3)])
        b_row = np.tile(bias, w).reshape(1, w * cout)       # (1, W_out*Cout), f32 epilogue
        layers.append((jnp.asarray(T, compute_dtype),
                       jnp.asarray(M, compute_dtype),
                       jnp.asarray(b_row, jnp.float32)))
    assert (h, w) == (height, width)
    return {"layers": tuple(layers), "height": height, "width": width,
            "block_b": block_b, "compute_dtype": compute_dtype}


# ----------------------------------------------------------------------------
# Autoencoder forward (matches the PyTorch module)
# ----------------------------------------------------------------------------
def autoencoder_forward(x_nchw, prep):
    B, C, H, W = x_nchw.shape
    assert C == 3 and (H, W) == (prep["height"], prep["width"])
    block_b = prep["block_b"]
    assert B % block_b == 0
    x_rows = jnp.transpose(x_nchw, (0, 2, 3, 1)).reshape(B * H, W * C)   # boundary only
    y_rows = _fused_forward(x_rows.astype(jnp.float32), prep["layers"],
                            batch=B, height=H, width=W, block_b=block_b,
                            compute_dtype=prep["compute_dtype"])
    return jnp.transpose(y_rows.reshape(B, H, W, 3), (0, 3, 1, 2))       # boundary only


def init_params(key, channels):
    c0, c1, c2 = channels
    ks = list(jax.random.split(key, 12))

    def conv_w(k, cout, cin):
        scale = 1.0 / jnp.sqrt(cin * 9.0)
        return jax.random.uniform(k, (cout, cin, 3, 3), jnp.float32, -scale, scale)

    def convT_w(k, cin, cout):
        scale = 1.0 / jnp.sqrt(cin * 9.0)
        return jax.random.uniform(k, (cin, cout, 3, 3), jnp.float32, -scale, scale)

    def bias(k, cout, cin):
        scale = 1.0 / jnp.sqrt(cin * 9.0)
        return jax.random.uniform(k, (cout,), jnp.float32, -scale, scale)

    return {
        "e0_w": conv_w(ks[0], c0, 3),  "e0_b": bias(ks[1], c0, 3),
        "e1_w": conv_w(ks[2], c1, c0), "e1_b": bias(ks[3], c1, c0),
        "e2_w": conv_w(ks[4], c2, c1), "e2_b": bias(ks[5], c2, c1),
        "d0_w": convT_w(ks[6], c2, c1), "d0_b": bias(ks[7], c1, c2),
        "d1_w": convT_w(ks[8], c1, c0), "d1_b": bias(ks[9], c0, c1),
        "d2_w": convT_w(ks[10], c0, 3), "d2_b": bias(ks[11], 3, c0),
    }


# ----------------------------------------------------------------------------
# Pure-JAX reference (lax convs) for the numerical sanity check
# ----------------------------------------------------------------------------
def _ref_conv(x, w, b, stride, pad):
    y = jax.lax.conv_general_dilated(
        x, w, window_strides=(stride, stride),
        padding=((pad, pad), (pad, pad)),
        dimension_numbers=("NCHW", "OIHW", "NCHW"))
    return y + b[None, :, None, None]


def _ref_convT(x, w, b, stride, pad, out_pad):
    k = w.shape[2]
    w_eq = jnp.transpose(jnp.flip(w, axis=(2, 3)), (1, 0, 2, 3))
    y = jax.lax.conv_general_dilated(
        x, w_eq, window_strides=(1, 1),
        padding=((k - 1 - pad, k - 1 - pad + out_pad),) * 2,
        lhs_dilation=(stride, stride),
        dimension_numbers=("NCHW", "OIHW", "NCHW"))
    return y + b[None, :, None, None]


def reference_forward(x, p):
    h = jax.nn.relu(_ref_conv(x, p["e0_w"], p["e0_b"], 2, 1))
    h = jax.nn.relu(_ref_conv(h, p["e1_w"], p["e1_b"], 2, 1))
    h = jax.nn.relu(_ref_conv(h, p["e2_w"], p["e2_b"], 2, 1))
    h = jax.nn.relu(_ref_convT(h, p["d0_w"], p["d0_b"], 2, 1, 1))
    h = jax.nn.relu(_ref_convT(h, p["d1_w"], p["d1_b"], 2, 1, 1))
    h = _ref_convT(h, p["d2_w"], p["d2_b"], 2, 1, 1)
    return h


if __name__ == "__main__":
    key = jax.random.PRNGKey(0)
    k_x, k_p = jax.random.split(key)

    channels = (4, 8, 16)
    x = jax.random.normal(k_x, (2, 3, 16, 16), jnp.float32)   # NCHW, like PyTorch
    params = init_params(k_p, channels)
    ref = jax.block_until_ready(reference_forward(x, params))

    # Exact check: float32 tap matrices validate the fused formulation tightly.
    prep_f32 = prepare_params(params, height=16, width=16, block_b=1,
                              compute_dtype=jnp.float32)
    fwd_f32 = jax.jit(functools.partial(autoencoder_forward, prep=prep_f32))
    out_f32 = jax.block_until_ready(fwd_f32(x))
    assert out_f32.shape == (2, 3, 16, 16), out_f32.shape
    err_f32 = float(jnp.max(jnp.abs(out_f32 - ref)))
    assert err_f32 < 1e-4, f"f32 mismatch vs reference: {err_f32}"

    # Default (performance) configuration: bf16 MXU operands, f32 accumulation/epilogue.
    prep = prepare_params(params, height=16, width=16, block_b=1,
                          compute_dtype=jnp.bfloat16)
    fwd = jax.jit(functools.partial(autoencoder_forward, prep=prep))
    out = jax.block_until_ready(fwd(x))
    assert out.shape == (2, 3, 16, 16), out.shape
    err_bf16 = float(jnp.max(jnp.abs(out - ref)))
    assert err_bf16 < 1e-1, f"bf16 mismatch vs reference: {err_bf16}"

    print("KERNEL_OK")
</pallas_src>

<mosaic_0001>
module attributes {stable_mosaic.version = 11 : i64} {
  func.func @_fused_ae_kernel(%arg0: i32, %arg1: memref<16x48xf32, #tpu.memory_space<vmem>>, %arg2: memref<3x8x16xf32, #tpu.memory_space<vmem>>, %arg3: memref<3x48x32xf32, #tpu.memory_space<vmem>>, %arg4: memref<1x32xf32, #tpu.memory_space<vmem>>, %arg5: memref<3x4x8xf32, #tpu.memory_space<vmem>>, %arg6: memref<3x32x32xf32, #tpu.memory_space<vmem>>, %arg7: memref<1x32xf32, #tpu.memory_space<vmem>>, %arg8: memref<3x2x4xf32, #tpu.memory_space<vmem>>, %arg9: memref<3x32x32xf32, #tpu.memory_space<vmem>>, %arg10: memref<1x32xf32, #tpu.memory_space<vmem>>, %arg11: memref<3x4x2xf32, #tpu.memory_space<vmem>>, %arg12: memref<3x32x32xf32, #tpu.memory_space<vmem>>, %arg13: memref<1x32xf32, #tpu.memory_space<vmem>>, %arg14: memref<3x8x4xf32, #tpu.memory_space<vmem>>, %arg15: memref<3x32x32xf32, #tpu.memory_space<vmem>>, %arg16: memref<1x32xf32, #tpu.memory_space<vmem>>, %arg17: memref<3x16x8xf32, #tpu.memory_space<vmem>>, %arg18: memref<3x32x48xf32, #tpu.memory_space<vmem>>, %arg19: memref<1x48xf32, #tpu.memory_space<vmem>>, %arg20: memref<16x48xf32, #tpu.memory_space<vmem>>) attributes {dimension_semantics = [#tpu.dimension_semantics<parallel>], iteration_bounds = array<i64: 2>, scalar_prefetch = 0 : i64, scratch_operands = 0 : i64, tpu.core_type = #tpu.core_type<tc>, window_params = [{transform_indices = @transform_0, window_bounds = array<i64: 16, 48>}, {pipeline_mode = #tpu.pipeline_mode<synchronous>, transform_indices = @transform_1, window_bounds = array<i64: 3, 8, 16>}, {pipeline_mode = #tpu.pipeline_mode<synchronous>, transform_indices = @transform_2, window_bounds = array<i64: 3, 48, 32>}, {pipeline_mode = #tpu.pipeline_mode<synchronous>, transform_indices = @transform_3, window_bounds = array<i64: 1, 32>}, {pipeline_mode = #tpu.pipeline_mode<synchronous>, transform_indices = @transform_4, window_bounds = array<i64: 3, 4, 8>}, {pipeline_mode = #tpu.pipeline_mode<synchronous>, transform_indices = @transform_5, window_bounds = array<i64: 3, 32, 32>}, {pipeline_mode = #tpu.pipeline_mode<synchronous>, transform_indices = @transform_6, window_bounds = array<i64: 1, 32>}, {pipeline_mode = #tpu.pipeline_mode<synchronous>, transform_indices = @transform_7, window_bounds = array<i64: 3, 2, 4>}, {pipeline_mode = #tpu.pipeline_mode<synchronous>, transform_indices = @transform_8, window_bounds = array<i64: 3, 32, 32>}, {pipeline_mode = #tpu.pipeline_mode<synchronous>, transform_indices = @transform_9, window_bounds = array<i64: 1, 32>}, {pipeline_mode = #tpu.pipeline_mode<synchronous>, transform_indices = @transform_10, window_bounds = array<i64: 3, 4, 2>}, {pipeline_mode = #tpu.pipeline_mode<synchronous>, transform_indices = @transform_11, window_bounds = array<i64: 3, 32, 32>}, {pipeline_mode = #tpu.pipeline_mode<synchronous>, transform_indices = @transform_12, window_bounds = array<i64: 1, 32>}, {pipeline_mode = #tpu.pipeline_mode<synchronous>, transform_indices = @transform_13, window_bounds = array<i64: 3, 8, 4>}, {pipeline_mode = #tpu.pipeline_mode<synchronous>, transform_indices = @transform_14, window_bounds = array<i64: 3, 32, 32>}, {pipeline_mode = #tpu.pipeline_mode<synchronous>, transform_indices = @transform_15, window_bounds = array<i64: 1, 32>}, {pipeline_mode = #tpu.pipeline_mode<synchronous>, transform_indices = @transform_16, window_bounds = array<i64: 3, 16, 8>}, {pipeline_mode = #tpu.pipeline_mode<synchronous>, transform_indices = @transform_17, window_bounds = array<i64: 3, 32, 48>}, {pipeline_mode = #tpu.pipeline_mode<synchronous>, transform_indices = @transform_18, window_bounds = array<i64: 1, 48>}, {transform_indices = @transform_19, window_bounds = array<i64: 16, 48>}]} {
    %c0 = arith.constant 0 : index
    %c0_0 = arith.constant 0 : index
    %0 = vector.load %arg1[%c0, %c0_0] : memref<16x48xf32, #tpu.memory_space<vmem>>, vector<16x48xf32>
    %c0_1 = arith.constant 0 : index
    %c0_2 = arith.constant 0 : index
    %c0_3 = arith.constant 0 : index
    %1 = vector.load %arg2[%c0_1, %c0_2, %c0_3] : memref<3x8x16xf32, #tpu.memory_space<vmem>>, vector<1x8x16xf32>
    %2 = vector.shape_cast %1 : vector<1x8x16xf32> to vector<8x16xf32>
    %cst = arith.constant dense<0.000000e+00> : vector<8x48xf32>
    %3 = tpu.matmul %2, %0, %cst {dimension_numbers = #tpu.dot_dimension_numbers<[1], [0], [0], [1], [0, 0, 1, 1], [], []>} : vector<8x16xf32>, vector<16x48xf32>, vector<8x48xf32> -> vector<8x48xf32>
    %c0_4 = arith.constant 0 : index
    %c0_5 = arith.constant 0 : index
    %c0_6 = arith.constant 0 : index
    %4 = vector.load %arg3[%c0_4, %c0_5, %c0_6] : memref<3x48x32xf32, #tpu.memory_space<vmem>>, vector<1x48x32xf32>
    %5 = vector.shape_cast %4 : vector<1x48x32xf32> to vector<48x32xf32>
    %cst_7 = arith.constant dense<0.000000e+00> : vector<8x32xf32>
    %6 = tpu.matmul %3, %5, %cst_7 {dimension_numbers = #tpu.dot_dimension_numbers<[1], [0], [0], [1], [0, 0, 1, 1], [], []>} : vector<8x48xf32>, vector<48x32xf32>, vector<8x32xf32> -> vector<8x32xf32>
    %c1 = arith.constant 1 : index
    %c0_8 = arith.constant 0 : index
    %c0_9 = arith.constant 0 : index
    %7 = vector.load %arg2[%c1, %c0_8, %c0_9] : memref<3x8x16xf32, #tpu.memory_space<vmem>>, vector<1x8x16xf32>
    %8 = vector.shape_cast %7 : vector<1x8x16xf32> to vector<8x16xf32>
    %cst_10 = arith.constant dense<0.000000e+00> : vector<8x48xf32>
    %9 = tpu.matmul %8, %0, %cst_10 {dimension_numbers = #tpu.dot_dimension_numbers<[1], [0], [0], [1], [0, 0, 1, 1], [], []>} : vector<8x16xf32>, vector<16x48xf32>, vector<8x48xf32> -> vector<8x48xf32>
    %c1_11 = arith.constant 1 : index
    %c0_12 = arith.constant 0 : index
    %c0_13 = arith.constant 0 : index
    %10 = vector.load %arg3[%c1_11, %c0_12, %c0_13] : memref<3x48x32xf32, #tpu.memory_space<vmem>>, vector<1x48x32xf32>
    %11 = vector.shape_cast %10 : vector<1x48x32xf32> to vector<48x32xf32>
    %cst_14 = arith.constant dense<0.000000e+00> : vector<8x32xf32>
    %12 = tpu.matmul %9, %11, %cst_14 {dimension_numbers = #tpu.dot_dimension_numbers<[1], [0], [0], [1], [0, 0, 1, 1], [], []>} : vector<8x48xf32>, vector<48x32xf32>, vector<8x32xf32> -> vector<8x32xf32>
    %13 = arith.addf %6, %12 : vector<8x32xf32>
    %c2 = arith.constant 2 : index
    %c0_15 = arith.constant 0 : index
    %c0_16 = arith.constant 0 : index
    %14 = vector.load %arg2[%c2, %c0_15, %c0_16] : memref<3x8x16xf32, #tpu.memory_space<vmem>>, vector<1x8x16xf32>
    %15 = vector.shape_cast %14 : vector<1x8x16xf32> to vector<8x16xf32>
    %cst_17 = arith.constant dense<0.000000e+00> : vector<8x48xf32>
    %16 = tpu.matmul %15, %0, %cst_17 {dimension_numbers = #tpu.dot_dimension_numbers<[1], [0], [0], [1], [0, 0, 1, 1], [], []>} : vector<8x16xf32>, vector<16x48xf32>, vector<8x48xf32> -> vector<8x48xf32>
    %c2_18 = arith.constant 2 : index
    %c0_19 = arith.constant 0 : index
    %c0_20 = arith.constant 0 : index
    %17 = vector.load %arg3[%c2_18, %c0_19, %c0_20] : memref<3x48x32xf32, #tpu.memory_space<vmem>>, vector<1x48x32xf32>
    %18 = vector.shape_cast %17 : vector<1x48x32xf32> to vector<48x32xf32>
    %cst_21 = arith.constant dense<0.000000e+00> : vector<8x32xf32>
    %19 = tpu.matmul %16, %18, %cst_21 {dimension_numbers = #tpu.dot_dimension_numbers<[1], [0], [0], [1], [0, 0, 1, 1], [], []>} : vector<8x48xf32>, vector<48x32xf32>, vector<8x32xf32> -> vector<8x32xf32>
    %20 = arith.addf %13, %19 : vector<8x32xf32>
    %c0_22 = arith.constant 0 : index
    %c0_23 = arith.constant 0 : index
    %21 = vector.load %arg4[%c0_22, %c0_23] : memref<1x32xf32, #tpu.memory_space<vmem>>, vector<1x32xf32>
    %22 = vector.broadcast %21 : vector<1x32xf32> to vector<8x32xf32>
    %23 = arith.addf %20, %22 : vector<8x32xf32>
    %cst_24 = arith.constant 0.000000e+00 : f32
    %24 = vector.broadcast %cst_24 : f32 to vector<8x32xf32>
    %25 = arith.maximumf %23, %24 : vector<8x32xf32>
    %c0_25 = arith.constant 0 : index
    %c0_26 = arith.constant 0 : index
    %c0_27 = arith.constant 0 : index
    %26 = vector.load %arg5[%c0_25, %c0_26, %c0_27] : memref<3x4x8xf32, #tpu.memory_space<vmem>>, vector<1x4x8xf32>
    %27 = vector.shape_cast %26 : vector<1x4x8xf32> to vector<4x8xf32>
    %cst_28 = arith.constant dense<0.000000e+00> : vector<4x32xf32>
    %28 = tpu.matmul %27, %25, %cst_28 {dimension_numbers = #tpu.dot_dimension_numbers<[1], [0], [0], [1], [0, 0, 1, 1], [], []>} : vector<4x8xf32>, vector<8x32xf32>, vector<4x32xf32> -> vector<4x32xf32>
    %c0_29 = arith.constant 0 : index
    %c0_30 = arith.constant 0 : index
    %c0_31 = arith.constant 0 : index
    %29 = vector.load %arg6[%c0_29, %c0_30, %c0_31] : memref<3x32x32xf32, #tpu.memory_space<vmem>>, vector<1x32x32xf32>
    %30 = vector.shape_cast %29 : vector<1x32x32xf32> to vector<32x32xf32>
    %cst_32 = arith.constant dense<0.000000e+00> : vector<4x32xf32>
    %31 = tpu.matmul %28, %30, %cst_32 {dimension_numbers = #tpu.dot_dimension_numbers<[1], [0], [0], [1], [0, 0, 1, 1], [], []>} : vector<4x32xf32>, vector<32x32xf32>, vector<4x32xf32> -> vector<4x32xf32>
    %c1_33 = arith.constant 1 : index
    %c0_34 = arith.constant 0 : index
    %c0_35 = arith.constant 0 : index
    %32 = vector.load %arg5[%c1_33, %c0_34, %c0_35] : memref<3x4x8xf32, #tpu.memory_space<vmem>>, vector<1x4x8xf32>
    %33 = vector.shape_cast %32 : vector<1x4x8xf32> to vector<4x8xf32>
    %cst_36 = arith.constant dense<0.000000e+00> : vector<4x32xf32>
    %34 = tpu.matmul %33, %25, %cst_36 {dimension_numbers = #tpu.dot_dimension_numbers<[1], [0], [0], [1], [0, 0, 1, 1], [], []>} : vector<4x8xf32>, vector<8x32xf32>, vector<4x32xf32> -> vector<4x32xf32>
    %c1_37 = arith.constant 1 : index
    %c0_38 = arith.constant 0 : index
    %c0_39 = arith.constant 0 : index
    %35 = vector.load %arg6[%c1_37, %c0_38, %c0_39] : memref<3x32x32xf32, #tpu.memory_space<vmem>>, vector<1x32x32xf32>
    %36 = vector.shape_cast %35 : vector<1x32x32xf32> to vector<32x32xf32>
    %cst_40 = arith.constant dense<0.000000e+00> : vector<4x32xf32>
    %37 = tpu.matmul %34, %36, %cst_40 {dimension_numbers = #tpu.dot_dimension_numbers<[1], [0], [0], [1], [0, 0, 1, 1], [], []>} : vector<4x32xf32>, vector<32x32xf32>, vector<4x32xf32> -> vector<4x32xf32>
    %38 = arith.addf %31, %37 : vector<4x32xf32>
    %c2_41 = arith.constant 2 : index
    %c0_42 = arith.constant 0 : index
    %c0_43 = arith.constant 0 : index
    %39 = vector.load %arg5[%c2_41, %c0_42, %c0_43] : memref<3x4x8xf32, #tpu.memory_space<vmem>>, vector<1x4x8xf32>
    %40 = vector.shape_cast %39 : vector<1x4x8xf32> to vector<4x8xf32>
    %cst_44 = arith.constant dense<0.000000e+00> : vector<4x32xf32>
    %41 = tpu.matmul %40, %25, %cst_44 {dimension_numbers = #tpu.dot_dimension_numbers<[1], [0], [0], [1], [0, 0, 1, 1], [], []>} : vector<4x8xf32>, vector<8x32xf32>, vector<4x32xf32> -> vector<4x32xf32>
    %c2_45 = arith.constant 2 : index
    %c0_46 = arith.constant 0 : index
    %c0_47 = arith.constant 0 : index
    %42 = vector.load %arg6[%c2_45, %c0_46, %c0_47] : memref<3x32x32xf32, #tpu.memory_space<vmem>>, vector<1x32x32xf32>
    %43 = vector.shape_cast %42 : vector<1x32x32xf32> to vector<32x32xf32>
    %cst_48 = arith.constant dense<0.000000e+00> : vector<4x32xf32>
    %44 = tpu.matmul %41, %43, %cst_48 {dimension_numbers = #tpu.dot_dimension_numbers<[1], [0], [0], [1], [0, 0, 1, 1], [], []>} : vector<4x32xf32>, vector<32x32xf32>, vector<4x32xf32> -> vector<4x32xf32>
    %45 = arith.addf %38, %44 : vector<4x32xf32>
    %c0_49 = arith.constant 0 : index
    %c0_50 = arith.constant 0 : index
    %46 = vector.load %arg7[%c0_49, %c0_50] : memref<1x32xf32, #tpu.memory_space<vmem>>, vector<1x32xf32>
    %47 = vector.broadcast %46 : vector<1x32xf32> to vector<4x32xf32>
    %48 = arith.addf %45, %47 : vector<4x32xf32>
    %cst_51 = arith.constant 0.000000e+00 : f32
    %49 = vector.broadcast %cst_51 : f32 to vector<4x32xf32>
    %50 = arith.maximumf %48, %49 : vector<4x32xf32>
    %c0_52 = arith.constant 0 : index
    %c0_53 = arith.constant 0 : index
    %c0_54 = arith.constant 0 : index
    %51 = vector.load %arg8[%c0_52, %c0_53, %c0_54] : memref<3x2x4xf32, #tpu.memory_space<vmem>>, vector<1x2x4xf32>
    %52 = vector.shape_cast %51 : vector<1x2x4xf32> to vector<2x4xf32>
    %cst_55 = arith.constant dense<0.000000e+00> : vector<2x32xf32>
    %53 = tpu.matmul %52, %50, %cst_55 {dimension_numbers = #tpu.dot_dimension_numbers<[1], [0], [0], [1], [0, 0, 1, 1], [], []>} : vector<2x4xf32>, vector<4x32xf32>, vector<2x32xf32> -> vector<2x32xf32>
    %c0_56 = arith.constant 0 : index
    %c0_57 = arith.constant 0 : index
    %c0_58 = arith.constant 0 : index
    %54 = vector.load %arg9[%c0_56, %c0_57, %c0_58] : memref<3x32x32xf32, #tpu.memory_space<vmem>>, vector<1x32x32xf32>
    %55 = vector.shape_cast %54 : vector<1x32x32xf32> to vector<32x32xf32>
    %cst_59 = arith.constant dense<0.000000e+00> : vector<2x32xf32>
    %56 = tpu.matmul %53, %55, %cst_59 {dimension_numbers = #tpu.dot_dimension_numbers<[1], [0], [0], [1], [0, 0, 1, 1], [], []>} : vector<2x32xf32>, vector<32x32xf32>, vector<2x32xf32> -> vector<2x32xf32>
    %c1_60 = arith.constant 1 : index
    %c0_61 = arith.constant 0 : index
    %c0_62 = arith.constant 0 : index
    %57 = vector.load %arg8[%c1_60, %c0_61, %c0_62] : memref<3x2x4xf32, #tpu.memory_space<vmem>>, vector<1x2x4xf32>
    %58 = vector.shape_cast %57 : vector<1x2x4xf32> to vector<2x4xf32>
    %cst_63 = arith.constant dense<0.000000e+00> : vector<2x32xf32>
    %59 = tpu.matmul %58, %50, %cst_63 {dimension_numbers = #tpu.dot_dimension_numbers<[1], [0], [0], [1], [0, 0, 1, 1], [], []>} : vector<2x4xf32>, vector<4x32xf32>, vector<2x32xf32> -> vector<2x32xf32>
    %c1_64 = arith.constant 1 : index
    %c0_65 = arith.constant 0 : index
    %c0_66 = arith.constant 0 : index
    %60 = vector.load %arg9[%c1_64, %c0_65, %c0_66] : memref<3x32x32xf32, #tpu.memory_space<vmem>>, vector<1x32x32xf32>
    %61 = vector.shape_cast %60 : vector<1x32x32xf32> to vector<32x32xf32>
    %cst_67 = arith.constant dense<0.000000e+00> : vector<2x32xf32>
    %62 = tpu.matmul %59, %61, %cst_67 {dimension_numbers = #tpu.dot_dimension_numbers<[1], [0], [0], [1], [0, 0, 1, 1], [], []>} : vector<2x32xf32>, vector<32x32xf32>, vector<2x32xf32> -> vector<2x32xf32>
    %63 = arith.addf %56, %62 : vector<2x32xf32>
    %c2_68 = arith.constant 2 : index
    %c0_69 = arith.constant 0 : index
    %c0_70 = arith.constant 0 : index
    %64 = vector.load %arg8[%c2_68, %c0_69, %c0_70] : memref<3x2x4xf32, #tpu.memory_space<vmem>>, vector<1x2x4xf32>
    %65 = vector.shape_cast %64 : vector<1x2x4xf32> to vector<2x4xf32>
    %cst_71 = arith.constant dense<0.000000e+00> : vector<2x32xf32>
    %66 = tpu.matmul %65, %50, %cst_71 {dimension_numbers = #tpu.dot_dimension_numbers<[1], [0], [0], [1], [0, 0, 1, 1], [], []>} : vector<2x4xf32>, vector<4x32xf32>, vector<2x32xf32> -> vector<2x32xf32>
    %c2_72 = arith.constant 2 : index
    %c0_73 = arith.constant 0 : index
    %c0_74 = arith.constant 0 : index
    %67 = vector.load %arg9[%c2_72, %c0_73, %c0_74] : memref<3x32x32xf32, #tpu.memory_space<vmem>>, vector<1x32x32xf32>
    %68 = vector.shape_cast %67 : vector<1x32x32xf32> to vector<32x32xf32>
    %cst_75 = arith.constant dense<0.000000e+00> : vector<2x32xf32>
    %69 = tpu.matmul %66, %68, %cst_75 {dimension_numbers = #tpu.dot_dimension_numbers<[1], [0], [0], [1], [0, 0, 1, 1], [], []>} : vector<2x32xf32>, vector<32x32xf32>, vector<2x32xf32> -> vector<2x32xf32>
    %70 = arith.addf %63, %69 : vector<2x32xf32>
    %c0_76 = arith.constant 0 : index
    %c0_77 = arith.constant 0 : index
    %71 = vector.load %arg10[%c0_76, %c0_77] : memref<1x32xf32, #tpu.memory_space<vmem>>, vector<1x32xf32>
    %72 = vector.broadcast %71 : vector<1x32xf32> to vector<2x32xf32>
    %73 = arith.addf %70, %72 : vector<2x32xf32>
    %cst_78 = arith.constant 0.000000e+00 : f32
    %74 = vector.broadcast %cst_78 : f32 to vector<2x32xf32>
    %75 = arith.maximumf %73, %74 : vector<2x32xf32>
    %c0_79 = arith.constant 0 : index
    %c0_80 = arith.constant 0 : index
    %c0_81 = arith.constant 0 : index
    %76 = vector.load %arg11[%c0_79, %c0_80, %c0_81] : memref<3x4x2xf32, #tpu.memory_space<vmem>>, vector<1x4x2xf32>
    %77 = vector.shape_cast %76 : vector<1x4x2xf32> to vector<4x2xf32>
    %cst_82 = arith.constant dense<0.000000e+00> : vector<4x32xf32>
    %78 = tpu.matmul %77, %75, %cst_82 {dimension_numbers = #tpu.dot_dimension_numbers<[1], [0], [0], [1], [0, 0, 1, 1], [], []>} : vector<4x2xf32>, vector<2x32xf32>, vector<4x32xf32> -> vector<4x32xf32>
    %c0_83 = arith.constant 0 : index
    %c0_84 = arith.constant 0 : index
    %c0_85 = arith.constant 0 : index
    %79 = vector.load %arg12[%c0_83, %c0_84, %c0_85] : memref<3x32x32xf32, #tpu.memory_space<vmem>>, vector<1x32x32xf32>
    %80 = vector.shape_cast %79 : vector<1x32x32xf32> to vector<32x32xf32>
    %cst_86 = arith.constant dense<0.000000e+00> : vector<4x32xf32>
    %81 = tpu.matmul %78, %80, %cst_86 {dimension_numbers = #tpu.dot_dimension_numbers<[1], [0], [0], [1], [0, 0, 1, 1], [], []>} : vector<4x32xf32>, vector<32x32xf32>, vector<4x32xf32> -> vector<4x32xf32>
    %c1_87 = arith.constant 1 : index
    %c0_88 = arith.constant 0 : index
    %c0_89 = arith.constant 0 : index
    %82 = vector.load %arg11[%c1_87, %c0_88, %c0_89] : memref<3x4x2xf32, #tpu.memory_space<vmem>>, vector<1x4x2xf32>
    %83 = vector.shape_cast %82 : vector<1x4x2xf32> to vector<4x2xf32>
    %cst_90 = arith.constant dense<0.000000e+00> : vector<4x32xf32>
    %84 = tpu.matmul %83, %75, %cst_90 {dimension_numbers = #tpu.dot_dimension_numbers<[1], [0], [0], [1], [0, 0, 1, 1], [], []>} : vector<4x2xf32>, vector<2x32xf32>, vector<4x32xf32> -> vector<4x32xf32>
    %c1_91 = arith.constant 1 : index
    %c0_92 = arith.constant 0 : index
    %c0_93 = arith.constant 0 : index
    %85 = vector.load %arg12[%c1_91, %c0_92, %c0_93] : memref<3x32x32xf32, #tpu.memory_space<vmem>>, vector<1x32x32xf32>
    %86 = vector.shape_cast %85 : vector<1x32x32xf32> to vector<32x32xf32>
    %cst_94 = arith.constant dense<0.000000e+00> : vector<4x32xf32>
    %87 = tpu.matmul %84, %86, %cst_94 {dimension_numbers = #tpu.dot_dimension_numbers<[1], [0], [0], [1], [0, 0, 1, 1], [], []>} : vector<4x32xf32>, vector<32x32xf32>, vector<4x32xf32> -> vector<4x32xf32>
    %88 = arith.addf %81, %87 : vector<4x32xf32>
    %c2_95 = arith.constant 2 : index
    %c0_96 = arith.constant 0 : index
    %c0_97 = arith.constant 0 : index
    %89 = vector.load %arg11[%c2_95, %c0_96, %c0_97] : memref<3x4x2xf32, #tpu.memory_space<vmem>>, vector<1x4x2xf32>
    %90 = vector.shape_cast %89 : vector<1x4x2xf32> to vector<4x2xf32>
    %cst_98 = arith.constant dense<0.000000e+00> : vector<4x32xf32>
    %91 = tpu.matmul %90, %75, %cst_98 {dimension_numbers = #tpu.dot_dimension_numbers<[1], [0], [0], [1], [0, 0, 1, 1], [], []>} : vector<4x2xf32>, vector<2x32xf32>, vector<4x32xf32> -> vector<4x32xf32>
    %c2_99 = arith.constant 2 : index
    %c0_100 = arith.constant 0 : index
    %c0_101 = arith.constant 0 : index
    %92 = vector.load %arg12[%c2_99, %c0_100, %c0_101] : memref<3x32x32xf32, #tpu.memory_space<vmem>>, vector<1x32x32xf32>
    %93 = vector.shape_cast %92 : vector<1x32x32xf32> to vector<32x32xf32>
    %cst_102 = arith.constant dense<0.000000e+00> : vector<4x32xf32>
    %94 = tpu.matmul %91, %93, %cst_102 {dimension_numbers = #tpu.dot_dimension_numbers<[1], [0], [0], [1], [0, 0, 1, 1], [], []>} : vector<4x32xf32>, vector<32x32xf32>, vector<4x32xf32> -> vector<4x32xf32>
    %95 = arith.addf %88, %94 : vector<4x32xf32>
    %c0_103 = arith.constant 0 : index
    %c0_104 = arith.constant 0 : index
    %96 = vector.load %arg13[%c0_103, %c0_104] : memref<1x32xf32, #tpu.memory_space<vmem>>, vector<1x32xf32>
    %97 = vector.broadcast %96 : vector<1x32xf32> to vector<4x32xf32>
    %98 = arith.addf %95, %97 : vector<4x32xf32>
    %cst_105 = arith.constant 0.000000e+00 : f32
    %99 = vector.broadcast %cst_105 : f32 to vector<4x32xf32>
    %100 = arith.maximumf %98, %99 : vector<4x32xf32>
    %c0_106 = arith.constant 0 : index
    %c0_107 = arith.constant 0 : index
    %c0_108 = arith.constant 0 : index
    %101 = vector.load %arg14[%c0_106, %c0_107, %c0_108] : memref<3x8x4xf32, #tpu.memory_space<vmem>>, vector<1x8x4xf32>
    %102 = vector.shape_cast %101 : vector<1x8x4xf32> to vector<8x4xf32>
    %cst_109 = arith.constant dense<0.000000e+00> : vector<8x32xf32>
    %103 = tpu.matmul %102, %100, %cst_109 {dimension_numbers = #tpu.dot_dimension_numbers<[1], [0], [0], [1], [0, 0, 1, 1], [], []>} : vector<8x4xf32>, vector<4x32xf32>, vector<8x32xf32> -> vector<8x32xf32>
    %c0_110 = arith.constant 0 : index
    %c0_111 = arith.constant 0 : index
    %c0_112 = arith.constant 0 : index
    %104 = vector.load %arg15[%c0_110, %c0_111, %c0_112] : memref<3x32x32xf32, #tpu.memory_space<vmem>>, vector<1x32x32xf32>
    %105 = vector.shape_cast %104 : vector<1x32x32xf32> to vector<32x32xf32>
    %cst_113 = arith.constant dense<0.000000e+00> : vector<8x32xf32>
    %106 = tpu.matmul %103, %105, %cst_113 {dimension_numbers = #tpu.dot_dimension_numbers<[1], [0], [0], [1], [0, 0, 1, 1], [], []>} : vector<8x32xf32>, vector<32x32xf32>, vector<8x32xf32> -> vector<8x32xf32>
    %c1_114 = arith.constant 1 : index
    %c0_115 = arith.constant 0 : index
    %c0_116 = arith.constant 0 : index
    %107 = vector.load %arg14[%c1_114, %c0_115, %c0_116] : memref<3x8x4xf32, #tpu.memory_space<vmem>>, vector<1x8x4xf32>
    %108 = vector.shape_cast %107 : vector<1x8x4xf32> to vector<8x4xf32>
    %cst_117 = arith.constant dense<0.000000e+00> : vector<8x32xf32>
    %109 = tpu.matmul %108, %100, %cst_117 {dimension_numbers = #tpu.dot_dimension_numbers<[1], [0], [0], [1], [0, 0, 1, 1], [], []>} : vector<8x4xf32>, vector<4x32xf32>, vector<8x32xf32> -> vector<8x32xf32>
    %c1_118 = arith.constant 1 : index
    %c0_119 = arith.constant 0 : index
    %c0_120 = arith.constant 0 : index
    %110 = vector.load %arg15[%c1_118, %c0_119, %c0_120] : memref<3x32x32xf32, #tpu.memory_space<vmem>>, vector<1x32x32xf32>
    %111 = vector.shape_cast %110 : vector<1x32x32xf32> to vector<32x32xf32>
    %cst_121 = arith.constant dense<0.000000e+00> : vector<8x32xf32>
    %112 = tpu.matmul %109, %111, %cst_121 {dimension_numbers = #tpu.dot_dimension_numbers<[1], [0], [0], [1], [0, 0, 1, 1], [], []>} : vector<8x32xf32>, vector<32x32xf32>, vector<8x32xf32> -> vector<8x32xf32>
    %113 = arith.addf %106, %112 : vector<8x32xf32>
    %c2_122 = arith.constant 2 : index
    %c0_123 = arith.constant 0 : index
    %c0_124 = arith.constant 0 : index
    %114 = vector.load %arg14[%c2_122, %c0_123, %c0_124] : memref<3x8x4xf32, #tpu.memory_space<vmem>>, vector<1x8x4xf32>
    %115 = vector.shape_cast %114 : vector<1x8x4xf32> to vector<8x4xf32>
    %cst_125 = arith.constant dense<0.000000e+00> : vector<8x32xf32>
    %116 = tpu.matmul %115, %100, %cst_125 {dimension_numbers = #tpu.dot_dimension_numbers<[1], [0], [0], [1], [0, 0, 1, 1], [], []>} : vector<8x4xf32>, vector<4x32xf32>, vector<8x32xf32> -> vector<8x32xf32>
    %c2_126 = arith.constant 2 : index
    %c0_127 = arith.constant 0 : index
    %c0_128 = arith.constant 0 : index
    %117 = vector.load %arg15[%c2_126, %c0_127, %c0_128] : memref<3x32x32xf32, #tpu.memory_space<vmem>>, vector<1x32x32xf32>
    %118 = vector.shape_cast %117 : vector<1x32x32xf32> to vector<32x32xf32>
    %cst_129 = arith.constant dense<0.000000e+00> : vector<8x32xf32>
    %119 = tpu.matmul %116, %118, %cst_129 {dimension_numbers = #tpu.dot_dimension_numbers<[1], [0], [0], [1], [0, 0, 1, 1], [], []>} : vector<8x32xf32>, vector<32x32xf32>, vector<8x32xf32> -> vector<8x32xf32>
    %120 = arith.addf %113, %119 : vector<8x32xf32>
    %c0_130 = arith.constant 0 : index
    %c0_131 = arith.constant 0 : index
    %121 = vector.load %arg16[%c0_130, %c0_131] : memref<1x32xf32, #tpu.memory_space<vmem>>, vector<1x32xf32>
    %122 = vector.broadcast %121 : vector<1x32xf32> to vector<8x32xf32>
    %123 = arith.addf %120, %122 : vector<8x32xf32>
    %cst_132 = arith.constant 0.000000e+00 : f32
    %124 = vector.broadcast %cst_132 : f32 to vector<8x32xf32>
    %125 = arith.maximumf %123, %124 : vector<8x32xf32>
    %c0_133 = arith.constant 0 : index
    %c0_134 = arith.constant 0 : index
    %c0_135 = arith.constant 0 : index
    %126 = vector.load %arg17[%c0_133, %c0_134, %c0_135] : memref<3x16x8xf32, #tpu.memory_space<vmem>>, vector<1x16x8xf32>
    %127 = vector.shape_cast %126 : vector<1x16x8xf32> to vector<16x8xf32>
    %cst_136 = arith.constant dense<0.000000e+00> : vector<16x32xf32>
    %128 = tpu.matmul %127, %125, %cst_136 {dimension_numbers = #tpu.dot_dimension_numbers<[1], [0], [0], [1], [0, 0, 1, 1], [], []>} : vector<16x8xf32>, vector<8x32xf32>, vector<16x32xf32> -> vector<16x32xf32>
    %c0_137 = arith.constant 0 : index
    %c0_138 = arith.constant 0 : index
    %c0_139 = arith.constant 0 : index
    %129 = vector.load %arg18[%c0_137, %c0_138, %c0_139] : memref<3x32x48xf32, #tpu.memory_space<vmem>>, vector<1x32x48xf32>
    %130 = vector.shape_cast %129 : vector<1x32x48xf32> to vector<32x48xf32>
    %cst_140 = arith.constant dense<0.000000e+00> : vector<16x48xf32>
    %131 = tpu.matmul %128, %130, %cst_140 {dimension_numbers = #tpu.dot_dimension_numbers<[1], [0], [0], [1], [0, 0, 1, 1], [], []>} : vector<16x32xf32>, vector<32x48xf32>, vector<16x48xf32> -> vector<16x48xf32>
    %c1_141 = arith.constant 1 : index
    %c0_142 = arith.constant 0 : index
    %c0_143 = arith.constant 0 : index
    %132 = vector.load %arg17[%c1_141, %c0_142, %c0_143] : memref<3x16x8xf32, #tpu.memory_space<vmem>>, vector<1x16x8xf32>
    %133 = vector.shape_cast %132 : vector<1x16x8xf32> to vector<16x8xf32>
    %cst_144 = arith.constant dense<0.000000e+00> : vector<16x32xf32>
    %134 = tpu.matmul %133, %125, %cst_144 {dimension_numbers = #tpu.dot_dimension_numbers<[1], [0], [0], [1], [0, 0, 1, 1], [], []>} : vector<16x8xf32>, vector<8x32xf32>, vector<16x32xf32> -> vector<16x32xf32>
    %c1_145 = arith.constant 1 : index
    %c0_146 = arith.constant 0 : index
    %c0_147 = arith.constant 0 : index
    %135 = vector.load %arg18[%c1_145, %c0_146, %c0_147] : memref<3x32x48xf32, #tpu.memory_space<vmem>>, vector<1x32x48xf32>
    %136 = vector.shape_cast %135 : vector<1x32x48xf32> to vector<32x48xf32>
    %cst_148 = arith.constant dense<0.000000e+00> : vector<16x48xf32>
    %137 = tpu.matmul %134, %136, %cst_148 {dimension_numbers = #tpu.dot_dimension_numbers<[1], [0], [0], [1], [0, 0, 1, 1], [], []>} : vector<16x32xf32>, vector<32x48xf32>, vector<16x48xf32> -> vector<16x48xf32>
    %138 = arith.addf %131, %137 : vector<16x48xf32>
    %c2_149 = arith.constant 2 : index
    %c0_150 = arith.constant 0 : index
    %c0_151 = arith.constant 0 : index
    %139 = vector.load %arg17[%c2_149, %c0_150, %c0_151] : memref<3x16x8xf32, #tpu.memory_space<vmem>>, vector<1x16x8xf32>
    %140 = vector.shape_cast %139 : vector<1x16x8xf32> to vector<16x8xf32>
    %cst_152 = arith.constant dense<0.000000e+00> : vector<16x32xf32>
    %141 = tpu.matmul %140, %125, %cst_152 {dimension_numbers = #tpu.dot_dimension_numbers<[1], [0], [0], [1], [0, 0, 1, 1], [], []>} : vector<16x8xf32>, vector<8x32xf32>, vector<16x32xf32> -> vector<16x32xf32>
    %c2_153 = arith.constant 2 : index
    %c0_154 = arith.constant 0 : index
    %c0_155 = arith.constant 0 : index
    %142 = vector.load %arg18[%c2_153, %c0_154, %c0_155] : memref<3x32x48xf32, #tpu.memory_space<vmem>>, vector<1x32x48xf32>
    %143 = vector.shape_cast %142 : vector<1x32x48xf32> to vector<32x48xf32>
    %cst_156 = arith.constant dense<0.000000e+00> : vector<16x48xf32>
    %144 = tpu.matmul %141, %143, %cst_156 {dimension_numbers = #tpu.dot_dimension_numbers<[1], [0], [0], [1], [0, 0, 1, 1], [], []>} : vector<16x32xf32>, vector<32x48xf32>, vector<16x48xf32> -> vector<16x48xf32>
    %145 = arith.addf %138, %144 : vector<16x48xf32>
    %c0_157 = arith.constant 0 : index
    %c0_158 = arith.constant 0 : index
    %146 = vector.load %arg19[%c0_157, %c0_158] : memref<1x48xf32, #tpu.memory_space<vmem>>, vector<1x48xf32>
    %147 = vector.broadcast %146 : vector<1x48xf32> to vector<16x48xf32>
    %148 = arith.addf %145, %147 : vector<16x48xf32>
    %c0_159 = arith.constant 0 : index
    %c0_160 = arith.constant 0 : index
    %149 = vector.load %arg20[%c0_159, %c0_160] : memref<16x48xf32, #tpu.memory_space<vmem>>, vector<16x48xf32>
    tpu.vector_store %arg20[%c0_159, %c0_160], %148 {strides = array<i32>} : memref<16x48xf32, #tpu.memory_space<vmem>>, vector<16x48xf32>,
    return
  }
  func.func @transform_0(%arg0: i32) -> (i32, i32) {
    %c0_i32 = arith.constant 0 : i32
    %c0_i32_0 = arith.constant 0 : i32
    return %arg0, %c0_i32 : i32, i32
  }
  func.func @transform_1(%arg0: i32) -> (i32, i32, i32) {
    %c0_i32 = arith.constant 0 : i32
    %c0_i32_0 = arith.constant 0 : i32
    %c0_i32_1 = arith.constant 0 : i32
    %c0_i32_2 = arith.constant 0 : i32
    return %c0_i32, %c0_i32_0, %c0_i32_1 : i32, i32, i32
  }
  func.func @transform_2(%arg0: i32) -> (i32, i32, i32) {
    %c0_i32 = arith.constant 0 : i32
    %c0_i32_0 = arith.constant 0 : i32
    %c0_i32_1 = arith.constant 0 : i32
    %c0_i32_2 = arith.constant 0 : i32
    return %c0_i32, %c0_i32_0, %c0_i32_1 : i32, i32, i32
  }
  func.func @transform_3(%arg0: i32) -> (i32, i32) {
    %c0_i32 = arith.constant 0 : i32
    %c0_i32_0 = arith.constant 0 : i32
    %c0_i32_1 = arith.constant 0 : i32
    return %c0_i32, %c0_i32_0 : i32, i32
  }
  func.func @transform_4(%arg0: i32) -> (i32, i32, i32) {
    %c0_i32 = arith.constant 0 : i32
    %c0_i32_0 = arith.constant 0 : i32
    %c0_i32_1 = arith.constant 0 : i32
    %c0_i32_2 = arith.constant 0 : i32
    return %c0_i32, %c0_i32_0, %c0_i32_1 : i32, i32, i32
  }
  func.func @transform_5(%arg0: i32) -> (i32, i32, i32) {
    %c0_i32 = arith.constant 0 : i32
    %c0_i32_0 = arith.constant 0 : i32
    %c0_i32_1 = arith.constant 0 : i32
    %c0_i32_2 = arith.constant 0 : i32
    return %c0_i32, %c0_i32_0, %c0_i32_1 : i32, i32, i32
  }
  func.func @transform_6(%arg0: i32) -> (i32, i32) {
    %c0_i32 = arith.constant 0 : i32
    %c0_i32_0 = arith.constant 0 : i32
    %c0_i32_1 = arith.constant 0 : i32
    return %c0_i32, %c0_i32_0 : i32, i32
  }
  func.func @transform_7(%arg0: i32) -> (i32, i32, i32) {
    %c0_i32 = arith.constant 0 : i32
    %c0_i32_0 = arith.constant 0 : i32
    %c0_i32_1 = arith.constant 0 : i32
    %c0_i32_2 = arith.constant 0 : i32
    return %c0_i32, %c0_i32_0, %c0_i32_1 : i32, i32, i32
  }
  func.func @transform_8(%arg0: i32) -> (i32, i32, i32) {
    %c0_i32 = arith.constant 0 : i32
    %c0_i32_0 = arith.constant 0 : i32
    %c0_i32_1 = arith.constant 0 : i32
    %c0_i32_2 = arith.constant 0 : i32
    return %c0_i32, %c0_i32_0, %c0_i32_1 : i32, i32, i32
  }
  func.func @transform_9(%arg0: i32) -> (i32, i32) {
    %c0_i32 = arith.constant 0 : i32
    %c0_i32_0 = arith.constant 0 : i32
    %c0_i32_1 = arith.constant 0 : i32
    return %c0_i32, %c0_i32_0 : i32, i32
  }
  func.func @transform_10(%arg0: i32) -> (i32, i32, i32) {
    %c0_i32 = arith.constant 0 : i32
    %c0_i32_0 = arith.constant 0 : i32
    %c0_i32_1 = arith.constant 0 : i32
    %c0_i32_2 = arith.constant 0 : i32
    return %c0_i32, %c0_i32_0, %c0_i32_1 : i32, i32, i32
  }
  func.func @transform_11(%arg0: i32) -> (i32, i32, i32) {
    %c0_i32 = arith.constant 0 : i32
    %c0_i32_0 = arith.constant 0 : i32
    %c0_i32_1 = arith.constant 0 : i32
    %c0_i32_2 = arith.constant 0 : i32
    return %c0_i32, %c0_i32_0, %c0_i32_1 : i32, i32, i32
  }
  func.func @transform_12(%arg0: i32) -> (i32, i32) {
    %c0_i32 = arith.constant 0 : i32
    %c0_i32_0 = arith.constant 0 : i32
    %c0_i32_1 = arith.constant 0 : i32
    return %c0_i32, %c0_i32_0 : i32, i32
  }
  func.func @transform_13(%arg0: i32) -> (i32, i32, i32) {
    %c0_i32 = arith.constant 0 : i32
    %c0_i32_0 = arith.constant 0 : i32
    %c0_i32_1 = arith.constant 0 : i32
    %c0_i32_2 = arith.constant 0 : i32
    return %c0_i32, %c0_i32_0, %c0_i32_1 : i32, i32, i32
  }
  func.func @transform_14(%arg0: i32) -> (i32, i32, i32) {
    %c0_i32 = arith.constant 0 : i32
    %c0_i32_0 = arith.constant 0 : i32
    %c0_i32_1 = arith.constant 0 : i32
    %c0_i32_2 = arith.constant 0 : i32
    return %c0_i32, %c0_i32_0, %c0_i32_1 : i32, i32, i32
  }
  func.func @transform_15(%arg0: i32) -> (i32, i32) {
    %c0_i32 = arith.constant 0 : i32
    %c0_i32_0 = arith.constant 0 : i32
    %c0_i32_1 = arith.constant 0 : i32
    return %c0_i32, %c0_i32_0 : i32, i32
  }
  func.func @transform_16(%arg0: i32) -> (i32, i32, i32) {
    %c0_i32 = arith.constant 0 : i32
    %c0_i32_0 = arith.constant 0 : i32
    %c0_i32_1 = arith.constant 0 : i32
    %c0_i32_2 = arith.constant 0 : i32
    return %c0_i32, %c0_i32_0, %c0_i32_1 : i32, i32, i32
  }
  func.func @transform_17(%arg0: i32) -> (i32, i32, i32) {
    %c0_i32 = arith.constant 0 : i32
    %c0_i32_0 = arith.constant 0 : i32
    %c0_i32_1 = arith.constant 0 : i32
    %c0_i32_2 = arith.constant 0 : i32
    return %c0_i32, %c0_i32_0, %c0_i32_1 : i32, i32, i32
  }
  func.func @transform_18(%arg0: i32) -> (i32, i32) {
    %c0_i32 = arith.constant 0 : i32
    %c0_i32_0 = arith.constant 0 : i32
    %c0_i32_1 = arith.constant 0 : i32
    return %c0_i32, %c0_i32_0 : i32, i32
  }
  func.func @transform_19(%arg0: i32) -> (i32, i32) {
    %c0_i32 = arith.constant 0 : i32
    %c0_i32_0 = arith.constant 0 : i32
    return %arg0, %c0_i32 : i32, i32
  }
}

</mosaic_0001>

<llo_original>
// kernel: autoencoder_forward.1
$region0: #{autoencoder_forward.1}
  #allocation0 [shape = 'u32[]', space=smem, size = 0x4, offset = 0x4, fixed_abs, tag = 'smem constant byte address 0x4 - core index']
  #allocation1 [shape = 'u32[144,128]{1,0:T(1,128)}', space=vmem, size = 0x12000, scoped, tag = 'internal scratch']
  %s0 = inlined_call_operand.vmem [shape: f32[32,48], index: 0, kind: input, shape index: {}]
  %s1 = inlined_call_operand.hbm [shape: f32[3,8,16], index: 1, kind: input, shape index: {}]
  %s2 = inlined_call_operand.vmem [shape: f32[3,48,32], index: 2, kind: input, shape index: {}]
  %s3 = inlined_call_operand.hbm [shape: f32[1,32], index: 3, kind: input, shape index: {}]
  %s4 = inlined_call_operand.hbm [shape: f32[3,4,8], index: 4, kind: input, shape index: {}]
  %s5 = inlined_call_operand.hbm [shape: f32[3,32,32], index: 5, kind: input, shape index: {}]
  %s6 = inlined_call_operand.vmem [shape: f32[1,32], index: 6, kind: input, shape index: {}]
  %s7 = inlined_call_operand.hbm [shape: f32[3,2,4], index: 7, kind: input, shape index: {}]
  %s8 = inlined_call_operand.hbm [shape: f32[3,32,32], index: 8, kind: input, shape index: {}]
  %s9 = inlined_call_operand.vmem [shape: f32[1,32], index: 9, kind: input, shape index: {}]
  %s10 = inlined_call_operand.hbm [shape: f32[3,4,2], index: 10, kind: input, shape index: {}]
  %s11 = inlined_call_operand.vmem [shape: f32[3,32,32], index: 11, kind: input, shape index: {}]
  %s12 = inlined_call_operand.vmem [shape: f32[1,32], index: 12, kind: input, shape index: {}]
  %s13 = inlined_call_operand.vmem [shape: f32[3,8,4], index: 13, kind: input, shape index: {}]
  %s14 = inlined_call_operand.vmem [shape: f32[3,32,32], index: 14, kind: input, shape index: {}]
  %s15 = inlined_call_operand.vmem [shape: f32[1,32], index: 15, kind: input, shape index: {}]
  %s16 = inlined_call_operand.hbm [shape: f32[3,16,8], index: 16, kind: input, shape index: {}]
  %s17 = inlined_call_operand.vmem [shape: f32[3,32,48], index: 17, kind: input, shape index: {}]
  %s18 = inlined_call_operand.vmem [shape: f32[1,48], index: 18, kind: input, shape index: {}]
  %s19 = inlined_call_operand.vmem [shape: f32[32,48], index: 19, kind: output, shape index: {}]
  %s20 = sld [smem:[#allocation0]]
  $region141: #{autoencoder_forward.1} parent=0
    _
  %s22 = ssub.s32 1, %s20
  %s23 = scalar_select 0, %s22, %s20
  $region1: #{autoencoder_forward.1} parent=0
    #allocation2 [shape = 'u8[12288]{0}', space=vmem, size = 0x3000, scoped, tag = 'input window, operand 1, single buffered']
    #allocation3 [shape = 's32[2]{0}', space=sflag, size = 0x8, scoped, tag = 'scoped memory for autoencoder_forward.1']
    #allocation4 [shape = 'u8[512]{0}', space=vmem, size = 0x400, scoped, tag = 'input window, operand 3, single buffered']
    #allocation5 [shape = 's32[1]{0}', space=sflag, size = 0x4, scoped, tag = 'scoped memory for autoencoder_forward.1']
    #allocation6 [shape = 'u8[6144]{0}', space=vmem, size = 0x1800, scoped, tag = 'input window, operand 4, single buffered']
    #allocation7 [shape = 'u8[49152]{0}', space=vmem, size = 0xc000, scoped, tag = 'input window, operand 5, single buffered']
    #allocation8 [shape = 's32[1]{0}', space=sflag, size = 0x4, scoped, tag = 'scoped memory for autoencoder_forward.1']
    #allocation9 [shape = 'u8[3072]{0}', space=vmem, size = 0xc00, scoped, tag = 'input window, operand 7, single buffered']
    #allocation10 [shape = 'u8[49152]{0}', space=vmem, size = 0xc000, scoped, tag = 'input window, operand 8, single buffered']
    #allocation11 [shape = 's32[1]{0}', space=sflag, size = 0x4, scoped, tag = 'scoped memory for autoencoder_forward.1']
    #allocation12 [shape = 'u8[6144]{0}', space=vmem, size = 0x1800, scoped, tag = 'input window, operand 10, single buffered']
    #allocation13 [shape = 'u8[24576]{0}', space=vmem, size = 0x6000, scoped, tag = 'input window, operand 16, single buffered']
    #allocation14 [shape = 's32[1]{0}', space=sflag, size = 0x4, scoped, tag = 'scoped memory for autoencoder_forward.1']
    %24 = vsyncpa [#allocation3], 0
    %25 = vsyncpa [#allocation5], 0
    %26 = vsyncpa [#allocation8], 0
    %27 = vsyncpa [#allocation11], 0
    %28 = vsyncpa [#allocation14], 0
    loop: start=0, step=1, limit=4
    $region2: #{autoencoder_forward.1} parent=1 // loop_pre_header
      _
    $region3: #{autoencoder_forward.1} parent=1 // loop_header
      %s30 = sphi 0, %s34
      %p31 = scmp.ge.s32.totalorder %s30, 4
      %s40 = sphi 0, %s42
      %s43 = sphi 0, %s40
      %s44 = sphi 0, %s43
      %s60 = sphi 0, %s44
      %s64 = sphi 0, %s64
      %s66 = sphi 0, %s64
      %s67 = sphi 0, %s66
      %s81 = sphi 0, %s67
      %s85 = sphi 0, %s85
      %s87 = sphi 0, %s85
      %s88 = sphi 0, %s87
      %s102 = sphi 0, %s88
      %s106 = sphi 0, %s106
      %s108 = sphi 0, %s106
      %s109 = sphi 0, %s108
      %s123 = sphi 0, %s109
      %s127 = sphi 0, %s127
      %s129 = sphi 0, %s127
      %s130 = sphi 0, %s129
      %s144 = sphi 0, %s130
      %s148 = sphi 0, %s148
      %s150 = sphi 0, %s148
      %s151 = sphi 0, %s150
      %s165 = sphi 0, %s151
      %s169 = sphi 0, %s169
      %s171 = sphi 0, %s169
      %s172 = sphi 0, %s171
      %s186 = sphi 0, %s172
      %s190 = sphi 0, %s190
      %s192 = sphi 0, %s190
      %s193 = sphi 0, %s192
      %s207 = sphi 0, %s193
      %s211 = sphi 0, %s211
      %s213 = sphi 0, %s211
      %s214 = sphi 0, %s213
      %s228 = sphi 0, %s214
      %s232 = sphi 0, %s232
      %s234 = sphi 0, %s232
      %s235 = sphi 0, %s234
      %s249 = sphi 0, %s235
      %s253 = sphi 0, %s253
      %s255 = sphi 0, %s253
      %s256 = sphi 0, %s255
      %s270 = sphi 0, %s256
      %s274 = sphi 0, %s274
      %s276 = sphi 0, %s274
      %s277 = sphi 0, %s276
      %s291 = sphi 0, %s277
      %s295 = sphi 0, %s295
      %s297 = sphi 0, %s295
      %s298 = sphi 0, %s297
      %s312 = sphi 0, %s298
      %s316 = sphi 0, %s316
      %s318 = sphi 0, %s316
      %s319 = sphi 0, %s318
      %s333 = sphi 0, %s319
      %s337 = sphi 0, %s337
      %s339 = sphi 0, %s337
      %s340 = sphi 0, %s339
      %s354 = sphi 0, %s340
      %s358 = sphi 0, %s358
      %s360 = sphi 0, %s358
      %s361 = sphi 0, %s360
      %s375 = sphi 0, %s361
      %s379 = sphi 0, %s379
      %s381 = sphi 0, %s379
      %s382 = sphi 0, %s381
      %s396 = sphi 0, %s382
      %s400 = sphi 0, %s400
      %s402 = sphi 0, %s400
      %s403 = sphi 0, %s402
      %s417 = sphi 0, %s403
      %s421 = sphi 0, %s421
      %s423 = sphi 0, %s421
      %s424 = sphi 0, %s423
      %s438 = sphi 0, %s424
      %s444 = sphi 0, %s446
      %s447 = sphi 0, %s444
      %s448 = sphi 0, %s447
      %s464 = sphi 0, %s448
    $region4: #{autoencoder_forward.1} parent=1 // loop_header_branch
      %33 = sbr.rel (%p31) target = $region8
    $region5: #{autoencoder_forward.1} parent=1 // loop_body
      %s35 = ssub.s32 %s30, 1
      %s36 = ssub.s32 %s30, 2
      %s37 = sadd.s32 %s30, 1
      %s38 = ssub.s32 %s30, %s37
      %p39 = scmp.eq.s32.totalorder %s38, 0
      %s41 = sadd.s32 %s40, 1
      %s42 = scalar_select %p39, %s40, %s41
      %p45 = pneg %p39
      %p46 = scmp.eq.s32.totalorder %s30, 1
      %p47 = por %p45, %p46
      %p48 = scmp.ne.s32.totalorder %s40, %s43
      %p49 = scmp.eq.s32.totalorder %s30, 0
      %p50 = por %p48, %p49
      %p51 = scmp.ne.s32.totalorder %s40, %s43
      %p52 = scmp.eq.s32.totalorder %s35, 1
      %p53 = por %p51, %p52
      %p54 = scmp.ne.s32.totalorder %s43, %s44
      %p55 = scmp.eq.s32.totalorder %s35, 0
      %p56 = por %p54, %p55
      %p57 = scmp.ne.s32.totalorder %s43, %s44
      %p58 = scmp.eq.s32.totalorder %s36, 1
      %p59 = por %p57, %p58
      %p61 = scmp.ne.s32.totalorder %s44, %s60
      %p62 = scmp.eq.s32.totalorder %s36, 0
      %p63 = por %p61, %p62
      %s65 = sadd.s32 %s64, 1
      %p68 = scmp.eq.s32.totalorder %s30, 1
      %p69 = scmp.ne.s32.totalorder %s64, %s66
      %p70 = scmp.eq.s32.totalorder %s30, 0
      %p71 = por %p69, %p70
      %p72 = scmp.ne.s32.totalorder %s64, %s66
      %p73 = scmp.eq.s32.totalorder %s35, 1
      %p74 = por %p72, %p73
      %p75 = scmp.ne.s32.totalorder %s66, %s67
      %p76 = scmp.eq.s32.totalorder %s35, 0
      %p77 = por %p75, %p76
      %p78 = scmp.ne.s32.totalorder %s66, %s67
      %p79 = scmp.eq.s32.totalorder %s36, 1
      %p80 = por %p78, %p79
      %p82 = scmp.ne.s32.totalorder %s67, %s81
      %p83 = scmp.eq.s32.totalorder %s36, 0
      %p84 = por %p82, %p83
      %s86 = sadd.s32 %s85, 1
      %p89 = scmp.eq.s32.totalorder %s30, 1
      %p90 = scmp.ne.s32.totalorder %s85, %s87
      %p91 = scmp.eq.s32.totalorder %s30, 0
      %p92 = por %p90, %p91
      %p93 = scmp.ne.s32.totalorder %s85, %s87
      %p94 = scmp.eq.s32.totalorder %s35, 1
      %p95 = por %p93, %p94
      %p96 = scmp.ne.s32.totalorder %s87, %s88
      %p97 = scmp.eq.s32.totalorder %s35, 0
      %p98 = por %p96, %p97
      %p99 = scmp.ne.s32.totalorder %s87, %s88
      %p100 = scmp.eq.s32.totalorder %s36, 1
      %p101 = por %p99, %p100
      %p103 = scmp.ne.s32.totalorder %s88, %s102
      %p104 = scmp.eq.s32.totalorder %s36, 0
      %p105 = por %p103, %p104
      %s107 = sadd.s32 %s106, 1
      %p110 = scmp.eq.s32.totalorder %s30, 1
      %p111 = scmp.ne.s32.totalorder %s106, %s108
      %p112 = scmp.eq.s32.totalorder %s30, 0
      %p113 = por %p111, %p112
      %p114 = scmp.ne.s32.totalorder %s106, %s108
      %p115 = scmp.eq.s32.totalorder %s35, 1
      %p116 = por %p114, %p115
      %p117 = scmp.ne.s32.totalorder %s108, %s109
      %p118 = scmp.eq.s32.totalorder %s35, 0
      %p119 = por %p117, %p118
      %p120 = scmp.ne.s32.totalorder %s108, %s109
      %p121 = scmp.eq.s32.totalorder %s36, 1
      %p122 = por %p120, %p121
      %p124 = scmp.ne.s32.totalorder %s109, %s123
      %p125 = scmp.eq.s32.totalorder %s36, 0
      %p126 = por %p124, %p125
      %s128 = sadd.s32 %s127, 1
      %p131 = scmp.eq.s32.totalorder %s30, 1
      %p132 = scmp.ne.s32.totalorder %s127, %s129
      %p133 = scmp.eq.s32.totalorder %s30, 0
      %p134 = por %p132, %p133
      %p135 = scmp.ne.s32.totalorder %s127, %s129
      %p136 = scmp.eq.s32.totalorder %s35, 1
      %p137 = por %p135, %p136
      %p138 = scmp.ne.s32.totalorder %s129, %s130
      %p139 = scmp.eq.s32.totalorder %s35, 0
      %p140 = por %p138, %p139
      %p141 = scmp.ne.s32.totalorder %s129, %s130
      %p142 = scmp.eq.s32.totalorder %s36, 1
      %p143 = por %p141, %p142
      %p145 = scmp.ne.s32.totalorder %s130, %s144
      %p146 = scmp.eq.s32.totalorder %s36, 0
      %p147 = por %p145, %p146
      %s149 = sadd.s32 %s148, 1
      %p152 = scmp.eq.s32.totalorder %s30, 1
      %p153 = scmp.ne.s32.totalorder %s148, %s150
      %p154 = scmp.eq.s32.totalorder %s30, 0
      %p155 = por %p153, %p154
      %p156 = scmp.ne.s32.totalorder %s148, %s150
      %p157 = scmp.eq.s32.totalorder %s35, 1
      %p158 = por %p156, %p157
      %p159 = scmp.ne.s32.totalorder %s150, %s151
      %p160 = scmp.eq.s32.totalorder %s35, 0
      %p161 = por %p159, %p160
      %p162 = scmp.ne.s32.totalorder %s150, %s151
      %p163 = scmp.eq.s32.totalorder %s36, 1
      %p164 = por %p162, %p163
      %p166 = scmp.ne.s32.totalorder %s151, %s165
      %p167 = scmp.eq.s32.totalorder %s36, 0
      %p168 = por %p166, %p167
      %s170 = sadd.s32 %s169, 1
      %p173 = scmp.eq.s32.totalorder %s30, 1
      %p174 = scmp.ne.s32.totalorder %s169, %s171
      %p175 = scmp.eq.s32.totalorder %s30, 0
      %p176 = por %p174, %p175
      %p177 = scmp.ne.s32.totalorder %s169, %s171
      %p178 = scmp.eq.s32.totalorder %s35, 1
      %p179 = por %p177, %p178
      %p180 = scmp.ne.s32.totalorder %s171, %s172
      %p181 = scmp.eq.s32.totalorder %s35, 0
      %p182 = por %p180, %p181
      %p183 = scmp.ne.s32.totalorder %s171, %s172
      %p184 = scmp.eq.s32.totalorder %s36, 1
      %p185 = por %p183, %p184
      %p187 = scmp.ne.s32.totalorder %s172, %s186
      %p188 = scmp.eq.s32.totalorder %s36, 0
      %p189 = por %p187, %p188
      %s191 = sadd.s32 %s190, 1
      %p194 = scmp.eq.s32.totalorder %s30, 1
      %p195 = scmp.ne.s32.totalorder %s190, %s192
      %p196 = scmp.eq.s32.totalorder %s30, 0
      %p197 = por %p195, %p196
      %p198 = scmp.ne.s32.totalorder %s190, %s192
      %p199 = scmp.eq.s32.totalorder %s35, 1
      %p200 = por %p198, %p199
      %p201 = scmp.ne.s32.totalorder %s192, %s193
      %p202 = scmp.eq.s32.totalorder %s35, 0
      %p203 = por %p201, %p202
      %p204 = scmp.ne.s32.totalorder %s192, %s193
      %p205 = scmp.eq.s32.totalorder %s36, 1
      %p206 = por %p204, %p205
      %p208 = scmp.ne.s32.totalorder %s193, %s207
      %p209 = scmp.eq.s32.totalorder %s36, 0
      %p210 = por %p208, %p209
      %s212 = sadd.s32 %s211, 1
      %p215 = scmp.eq.s32.totalorder %s30, 1
      %p216 = scmp.ne.s32.totalorder %s211, %s213
      %p217 = scmp.eq.s32.totalorder %s30, 0
      %p218 = por %p216, %p217
      %p219 = scmp.ne.s32.totalorder %s211, %s213
      %p220 = scmp.eq.s32.totalorder %s35, 1
      %p221 = por %p219, %p220
      %p222 = scmp.ne.s32.totalorder %s213, %s214
      %p223 = scmp.eq.s32.totalorder %s35, 0
      %p224 = por %p222, %p223
      %p225 = scmp.ne.s32.totalorder %s213, %s214
      %p226 = scmp.eq.s32.totalorder %s36, 1
      %p227 = por %p225, %p226
      %p229 = scmp.ne.s32.totalorder %s214, %s228
      %p230 = scmp.eq.s32.totalorder %s36, 0
      %p231 = por %p229, %p230
      %s233 = sadd.s32 %s232, 1
      %p236 = scmp.eq.s32.totalorder %s30, 1
      %p237 = scmp.ne.s32.totalorder %s232, %s234
      %p238 = scmp.eq.s32.totalorder %s30, 0
      %p239 = por %p237, %p238
      %p240 = scmp.ne.s32.totalorder %s232, %s234
      %p241 = scmp.eq.s32.totalorder %s35, 1
      %p242 = por %p240, %p241
      %p243 = scmp.ne.s32.totalorder %s234, %s235
      %p244 = scmp.eq.s32.totalorder %s35, 0
      %p245 = por %p243, %p244
      %p246 = scmp.ne.s32.totalorder %s234, %s235
      %p247 = scmp.eq.s32.totalorder %s36, 1
      %p248 = por %p246, %p247
      %p250 = scmp.ne.s32.totalorder %s235, %s249
      %p251 = scmp.eq.s32.totalorder %s36, 0
      %p252 = por %p250, %p251
      %s254 = sadd.s32 %s253, 1
      %p257 = scmp.eq.s32.totalorder %s30, 1
      %p258 = scmp.ne.s32.totalorder %s253, %s255
      %p259 = scmp.eq.s32.totalorder %s30, 0
      %p260 = por %p258, %p259
      %p261 = scmp.ne.s32.totalorder %s253, %s255
      %p262 = scmp.eq.s32.totalorder %s35, 1
      %p263 = por %p261, %p262
      %p264 = scmp.ne.s32.totalorder %s255, %s256
      %p265 = scmp.eq.s32.totalorder %s35, 0
      %p266 = por %p264, %p265
      %p267 = scmp.ne.s32.totalorder %s255, %s256
      %p268 = scmp.eq.s32.totalorder %s36, 1
      %p269 = por %p267, %p268
      %p271 = scmp.ne.s32.totalorder %s256, %s270
      %p272 = scmp.eq.s32.totalorder %s36, 0
      %p273 = por %p271, %p272
      %s275 = sadd.s32 %s274, 1
      %p278 = scmp.eq.s32.totalorder %s30, 1
      %p279 = scmp.ne.s32.totalorder %s274, %s276
      %p280 = scmp.eq.s32.totalorder %s30, 0
      %p281 = por %p279, %p280
      %p282 = scmp.ne.s32.totalorder %s274, %s276
      %p283 = scmp.eq.s32.totalorder %s35, 1
      %p284 = por %p282, %p283
      %p285 = scmp.ne.s32.totalorder %s276, %s277
      %p286 = scmp.eq.s32.totalorder %s35, 0
      %p287 = por %p285, %p286
      %p288 = scmp.ne.s32.totalorder %s276, %s277
      %p289 = scmp.eq.s32.totalorder %s36, 1
      %p290 = por %p288, %p289
      %p292 = scmp.ne.s32.totalorder %s277, %s291
      %p293 = scmp.eq.s32.totalorder %s36, 0
      %p294 = por %p292, %p293
      %s296 = sadd.s32 %s295, 1
      %p299 = scmp.eq.s32.totalorder %s30, 1
      %p300 = scmp.ne.s32.totalorder %s295, %s297
      %p301 = scmp.eq.s32.totalorder %s30, 0
      %p302 = por %p300, %p301
      %p303 = scmp.ne.s32.totalorder %s295, %s297
      %p304 = scmp.eq.s32.totalorder %s35, 1
      %p305 = por %p303, %p304
      %p306 = scmp.ne.s32.totalorder %s297, %s298
      %p307 = scmp.eq.s32.totalorder %s35, 0
      %p308 = por %p306, %p307
      %p309 = scmp.ne.s32.totalorder %s297, %s298
      %p310 = scmp.eq.s32.totalorder %s36, 1
      %p311 = por %p309, %p310
      %p313 = scmp.ne.s32.totalorder %s298, %s312
      %p314 = scmp.eq.s32.totalorder %s36, 0
      %p315 = por %p313, %p314
      %s317 = sadd.s32 %s316, 1
      %p320 = scmp.eq.s32.totalorder %s30, 1
      %p321 = scmp.ne.s32.totalorder %s316, %s318
      %p322 = scmp.eq.s32.totalorder %s30, 0
      %p323 = por %p321, %p322
      %p324 = scmp.ne.s32.totalorder %s316, %s318
      %p325 = scmp.eq.s32.totalorder %s35, 1
      %p326 = por %p324, %p325
      %p327 = scmp.ne.s32.totalorder %s318, %s319
      %p328 = scmp.eq.s32.totalorder %s35, 0
      %p329 = por %p327, %p328
      %p330 = scmp.ne.s32.totalorder %s318, %s319
      %p331 = scmp.eq.s32.totalorder %s36, 1
      %p332 = por %p330, %p331
      %p334 = scmp.ne.s32.totalorder %s319, %s333
      %p335 = scmp.eq.s32.totalorder %s36, 0
      %p336 = por %p334, %p335
      %s338 = sadd.s32 %s337, 1
      %p341 = scmp.eq.s32.totalorder %s30, 1
      %p342 = scmp.ne.s32.totalorder %s337, %s339
      %p343 = scmp.eq.s32.totalorder %s30, 0
      %p344 = por %p342, %p343
      %p345 = scmp.ne.s32.totalorder %s337, %s339
      %p346 = scmp.eq.s32.totalorder %s35, 1
      %p347 = por %p345, %p346
      %p348 = scmp.ne.s32.totalorder %s339, %s340
      %p349 = scmp.eq.s32.totalorder %s35, 0
      %p350 = por %p348, %p349
      %p351 = scmp.ne.s32.totalorder %s339, %s340
      %p352 = scmp.eq.s32.totalorder %s36, 1
      %p353 = por %p351, %p352
      %p355 = scmp.ne.s32.totalorder %s340, %s354
      %p356 = scmp.eq.s32.totalorder %s36, 0
      %p357 = por %p355, %p356
      %s359 = sadd.s32 %s358, 1
      %p362 = scmp.eq.s32.totalorder %s30, 1
      %p363 = scmp.ne.s32.totalorder %s358, %s360
      %p364 = scmp.eq.s32.totalorder %s30, 0
      %p365 = por %p363, %p364
      %p366 = scmp.ne.s32.totalorder %s358, %s360
      %p367 = scmp.eq.s32.totalorder %s35, 1
      %p368 = por %p366, %p367
      %p369 = scmp.ne.s32.totalorder %s360, %s361
      %p370 = scmp.eq.s32.totalorder %s35, 0
      %p371 = por %p369, %p370
      %p372 = scmp.ne.s32.totalorder %s360, %s361
      %p373 = scmp.eq.s32.totalorder %s36, 1
      %p374 = por %p372, %p373
      %p376 = scmp.ne.s32.totalorder %s361, %s375
      %p377 = scmp.eq.s32.totalorder %s36, 0
      %p378 = por %p376, %p377
      %s380 = sadd.s32 %s379, 1
      %p383 = scmp.eq.s32.totalorder %s30, 1
      %p384 = scmp.ne.s32.totalorder %s379, %s381
      %p385 = scmp.eq.s32.totalorder %s30, 0
      %p386 = por %p384, %p385
      %p387 = scmp.ne.s32.totalorder %s379, %s381
      %p388 = scmp.eq.s32.totalorder %s35, 1
      %p389 = por %p387, %p388
      %p390 = scmp.ne.s32.totalorder %s381, %s382
      %p391 = scmp.eq.s32.totalorder %s35, 0
      %p392 = por %p390, %p391
      %p393 = scmp.ne.s32.totalorder %s381, %s382
      %p394 = scmp.eq.s32.totalorder %s36, 1
      %p395 = por %p393, %p394
      %p397 = scmp.ne.s32.totalorder %s382, %s396
      %p398 = scmp.eq.s32.totalorder %s36, 0
      %p399 = por %p397, %p398
      %s401 = sadd.s32 %s400, 1
      %p404 = scmp.eq.s32.totalorder %s30, 1
      %p405 = scmp.ne.s32.totalorder %s400, %s402
      %p406 = scmp.eq.s32.totalorder %s30, 0
      %p407 = por %p405, %p406
      %p408 = scmp.ne.s32.totalorder %s400, %s402
      %p409 = scmp.eq.s32.totalorder %s35, 1
      %p410 = por %p408, %p409
      %p411 = scmp.ne.s32.totalorder %s402, %s403
      %p412 = scmp.eq.s32.totalorder %s35, 0
      %p413 = por %p411, %p412
      %p414 = scmp.ne.s32.totalorder %s402, %s403
      %p415 = scmp.eq.s32.totalorder %s36, 1
      %p416 = por %p414, %p415
      %p418 = scmp.ne.s32.totalorder %s403, %s417
      %p419 = scmp.eq.s32.totalorder %s36, 0
      %p420 = por %p418, %p419
      %s422 = sadd.s32 %s421, 1
      %p425 = scmp.eq.s32.totalorder %s30, 1
      %p426 = scmp.ne.s32.totalorder %s421, %s423
      %p427 = scmp.eq.s32.totalorder %s30, 0
      %p428 = por %p426, %p427
      %p429 = scmp.ne.s32.totalorder %s421, %s423
      %p430 = scmp.eq.s32.totalorder %s35, 1
      %p431 = por %p429, %p430
      %p432 = scmp.ne.s32.totalorder %s423, %s424
      %p433 = scmp.eq.s32.totalorder %s35, 0
      %p434 = por %p432, %p433
      %p435 = scmp.ne.s32.totalorder %s423, %s424
      %p436 = scmp.eq.s32.totalorder %s36, 1
      %p437 = por %p435, %p436
      %p439 = scmp.ne.s32.totalorder %s424, %s438
      %p440 = scmp.eq.s32.totalorder %s36, 0
      %p441 = por %p439, %p440
      %s442 = ssub.s32 %s30, %s37
      %p443 = scmp.eq.s32.totalorder %s442, 0
      %s445 = sadd.s32 %s444, 1
      %s446 = scalar_select %p443, %s444, %s445
      %p449 = pneg %p443
      %p450 = scmp.eq.s32.totalorder %s30, 1
      %p451 = por %p449, %p450
      %p452 = scmp.ne.s32.totalorder %s444, %s447
      %p453 = scmp.eq.s32.totalorder %s30, 0
      %p454 = por %p452, %p453
      %p455 = scmp.ne.s32.totalorder %s444, %s447
      %p456 = scmp.eq.s32.totalorder %s35, 1
      %p457 = por %p455, %p456
      %p458 = scmp.ne.s32.totalorder %s447, %s448
      %p459 = scmp.eq.s32.totalorder %s35, 0
      %p460 = por %p458, %p459
      %p461 = scmp.ne.s32.totalorder %s447, %s448
      %p462 = scmp.eq.s32.totalorder %s36, 1
      %p463 = por %p461, %p462
      %p465 = scmp.ne.s32.totalorder %s448, %s464
      %p466 = scmp.eq.s32.totalorder %s36, 0
      %p467 = por %p465, %p466
      %p468 = scmp.le.s32.totalorder 1, %s30
      %p469 = scmp.lt.s32.totalorder %s30, 3
      %p470 = pnand %p468, %p469
      %p471 = pneg %p470
      // Predicated region
      $region9: #{autoencoder_forward.1} parent=5 // pred_check
        _
      $region10: #{autoencoder_forward.1} parent=5 // pred_check_branch
        %473 = sbr.rel (%p470) target = $region12
      $region11: #{autoencoder_forward.1} parent=5 // pred_region
        %s474 = ssub.s32 %s30, 1
        // Predicated region
        $region13: #{autoencoder_forward.1} parent=11 // pred_check
          %p475 = pneg %p77
        $region14: #{autoencoder_forward.1} parent=11 // pred_check_branch
          %477 = sbr.rel (%p475) target = $region16
        $region15: #{autoencoder_forward.1} parent=11 // pred_region
          %s479 = ssub.s32 384, 384
          %480 = vsyncadd [#allocation3], %s479
          %s481 = sshll.u32 [#allocation2], 4
          %s482 = int_to_ptr.vmem [resolvable:$true] %s481
          %487 = dma.hbm_to_vmem [thread:$0]  %s1, 384, %s482, [#allocation3], 128, 128, 8
        $region16: #{autoencoder_forward.1} parent=11 // pred_fallthru
          _
        // Predicated region
        $region17: #{autoencoder_forward.1} parent=11 // pred_check
          %p488 = pneg %p98
        $region18: #{autoencoder_forward.1} parent=11 // pred_check_branch
          %490 = sbr.rel (%p488) target = $region20
        $region19: #{autoencoder_forward.1} parent=11 // pred_region
          _
        $region20: #{autoencoder_forward.1} parent=11 // pred_fallthru
          _
        // Predicated region
        $region21: #{autoencoder_forward.1} parent=11 // pred_check
          %p491 = pneg %p119
        $region22: #{autoencoder_forward.1} parent=11 // pred_check_branch
          %493 = sbr.rel (%p491) target = $region24
        $region23: #{autoencoder_forward.1} parent=11 // pred_region
          %s495 = ssub.s32 16, 16
          %496 = vsyncadd [#allocation5], %s495
          %s498 = sshll.u32 [#allocation4], 4
          %s499 = int_to_ptr.vmem [resolvable:$true] %s498
          %501 = dma.hbm_to_vmem [thread:$0]  %s3, 16, %s499, [#allocation5]
        $region24: #{autoencoder_forward.1} parent=11 // pred_fallthru
          _
        // Predicated region
        $region25: #{autoencoder_forward.1} parent=11 // pred_check
          %p502 = pneg %p140
        $region26: #{autoencoder_forward.1} parent=11 // pred_check_branch
          %504 = sbr.rel (%p502) target = $region28
        $region27: #{autoencoder_forward.1} parent=11 // pred_region
          %s506 = ssub.s32 192, 192
          %507 = vsyncadd [#allocation5], %s506
          %s508 = sshll.u32 [#allocation6], 4
          %s509 = int_to_ptr.vmem [resolvable:$true] %s508
          %514 = dma.hbm_to_vmem [thread:$0]  %s4, 192, %s509, [#allocation5], 64, 64, 4
        $region28: #{autoencoder_forward.1} parent=11 // pred_fallthru
          _
        // Predicated region
        $region29: #{autoencoder_forward.1} parent=11 // pred_check
          %p515 = pneg %p161
        $region30: #{autoencoder_forward.1} parent=11 // pred_check_branch
          %517 = sbr.rel (%p515) target = $region32
        $region31: #{autoencoder_forward.1} parent=11 // pred_region
          %s519 = ssub.s32 1536, 1536
          %520 = vsyncadd [#allocation8], %s519
          %s521 = sshll.u32 [#allocation7], 4
          %s522 = int_to_ptr.vmem [resolvable:$true] %s521
          %527 = dma.hbm_to_vmem [thread:$0]  %s5, 1536, %s522, [#allocation8], 128, 128, 8
        $region32: #{autoencoder_forward.1} parent=11 // pred_fallthru
          _
        // Predicated region
        $region33: #{autoencoder_forward.1} parent=11 // pred_check
          %p528 = pneg %p182
        $region34: #{autoencoder_forward.1} parent=11 // pred_check_branch
          %530 = sbr.rel (%p528) target = $region36
        $region35: #{autoencoder_forward.1} parent=11 // pred_region
          _
        $region36: #{autoencoder_forward.1} parent=11 // pred_fallthru
          _
        // Predicated region
        $region37: #{autoencoder_forward.1} parent=11 // pred_check
          %p531 = pneg %p203
        $region38: #{autoencoder_forward.1} parent=11 // pred_check_branch
          %533 = sbr.rel (%p531) target = $region40
        $region39: #{autoencoder_forward.1} parent=11 // pred_region
          %s535 = ssub.s32 96, 96
          %536 = vsyncadd [#allocation8], %s535
          %s537 = sshll.u32 [#allocation9], 4
          %s538 = int_to_ptr.vmem [resolvable:$true] %s537
          %543 = dma.hbm_to_vmem [thread:$0]  %s7, 96, %s538, [#allocation8], 32, 32, 2
        $region40: #{autoencoder_forward.1} parent=11 // pred_fallthru
          _
        // Predicated region
        $region41: #{autoencoder_forward.1} parent=11 // pred_check
          %p544 = pneg %p224
        $region42: #{autoencoder_forward.1} parent=11 // pred_check_branch
          %546 = sbr.rel (%p544) target = $region44
        $region43: #{autoencoder_forward.1} parent=11 // pred_region
          %s548 = ssub.s32 1536, 1536
          %549 = vsyncadd [#allocation11], %s548
          %s550 = sshll.u32 [#allocation10], 4
          %s551 = int_to_ptr.vmem [resolvable:$true] %s550
          %556 = dma.hbm_to_vmem [thread:$0]  %s8, 1536, %s551, [#allocation11], 128, 128, 8
        $region44: #{autoencoder_forward.1} parent=11 // pred_fallthru
          _
        // Predicated region
        $region45: #{autoencoder_forward.1} parent=11 // pred_check
          %p557 = pneg %p245
        $region46: #{autoencoder_forward.1} parent=11 // pred_check_branch
          %559 = sbr.rel (%p557) target = $region48
        $region47: #{autoencoder_forward.1} parent=11 // pred_region
          _
        $region48: #{autoencoder_forward.1} parent=11 // pred_fallthru
          _
        // Predicated region
        $region49: #{autoencoder_forward.1} parent=11 // pred_check
          %p560 = pneg %p266
        $region50: #{autoencoder_forward.1} parent=11 // pred_check_branch
          %562 = sbr.rel (%p560) target = $region52
        $region51: #{autoencoder_forward.1} parent=11 // pred_region
          %s564 = ssub.s32 192, 192
          %565 = vsyncadd [#allocation11], %s564
          %s566 = sshll.u32 [#allocation12], 4
          %s567 = int_to_ptr.vmem [resolvable:$true] %s566
          %572 = dma.hbm_to_vmem [thread:$0]  %s10, 192, %s567, [#allocation11], 64, 64, 4
        $region52: #{autoencoder_forward.1} parent=11 // pred_fallthru
          _
        // Predicated region
        $region53: #{autoencoder_forward.1} parent=11 // pred_check
          %p573 = pneg %p287
        $region54: #{autoencoder_forward.1} parent=11 // pred_check_branch
          %575 = sbr.rel (%p573) target = $region56
        $region55: #{autoencoder_forward.1} parent=11 // pred_region
          _
        $region56: #{autoencoder_forward.1} parent=11 // pred_fallthru
          _
        // Predicated region
        $region57: #{autoencoder_forward.1} parent=11 // pred_check
          %p576 = pneg %p308
        $region58: #{autoencoder_forward.1} parent=11 // pred_check_branch
          %578 = sbr.rel (%p576) target = $region60
        $region59: #{autoencoder_forward.1} parent=11 // pred_region
          _
        $region60: #{autoencoder_forward.1} parent=11 // pred_fallthru
          _
        // Predicated region
        $region61: #{autoencoder_forward.1} parent=11 // pred_check
          %p579 = pneg %p329
        $region62: #{autoencoder_forward.1} parent=11 // pred_check_branch
          %581 = sbr.rel (%p579) target = $region64
        $region63: #{autoencoder_forward.1} parent=11 // pred_region
          _
        $region64: #{autoencoder_forward.1} parent=11 // pred_fallthru
          _
        // Predicated region
        $region65: #{autoencoder_forward.1} parent=11 // pred_check
          %p582 = pneg %p350
        $region66: #{autoencoder_forward.1} parent=11 // pred_check_branch
          %584 = sbr.rel (%p582) target = $region68
        $region67: #{autoencoder_forward.1} parent=11 // pred_region
          _
        $region68: #{autoencoder_forward.1} parent=11 // pred_fallthru
          _
        // Predicated region
        $region69: #{autoencoder_forward.1} parent=11 // pred_check
          %p585 = pneg %p371
        $region70: #{autoencoder_forward.1} parent=11 // pred_check_branch
          %587 = sbr.rel (%p585) target = $region72
        $region71: #{autoencoder_forward.1} parent=11 // pred_region
          _
        $region72: #{autoencoder_forward.1} parent=11 // pred_fallthru
          _
        // Predicated region
        $region73: #{autoencoder_forward.1} parent=11 // pred_check
          %p588 = pneg %p392
        $region74: #{autoencoder_forward.1} parent=11 // pred_check_branch
          %590 = sbr.rel (%p588) target = $region76
        $region75: #{autoencoder_forward.1} parent=11 // pred_region
          %s592 = ssub.s32 768, 768
          %593 = vsyncadd [#allocation14], %s592
          %s594 = sshll.u32 [#allocation13], 4
          %s595 = int_to_ptr.vmem [resolvable:$true] %s594
          %600 = dma.hbm_to_vmem [thread:$0]  %s16, 768, %s595, [#allocation14], 128, 128, 8
        $region76: #{autoencoder_forward.1} parent=11 // pred_fallthru
          _
        // Predicated region
        $region77: #{autoencoder_forward.1} parent=11 // pred_check
          %p601 = pneg %p413
        $region78: #{autoencoder_forward.1} parent=11 // pred_check_branch
          %603 = sbr.rel (%p601) target = $region80
        $region79: #{autoencoder_forward.1} parent=11 // pred_region
          _
        $region80: #{autoencoder_forward.1} parent=11 // pred_fallthru
          _
        // Predicated region
        $region81: #{autoencoder_forward.1} parent=11 // pred_check
          %p604 = pneg %p434
        $region82: #{autoencoder_forward.1} parent=11 // pred_check_branch
          %606 = sbr.rel (%p604) target = $region84
        $region83: #{autoencoder_forward.1} parent=11 // pred_region
          _
        $region84: #{autoencoder_forward.1} parent=11 // pred_fallthru
          _
      $region12: #{autoencoder_forward.1} parent=5 // pred_fallthru
        _
      %p607 = scmp.lt.s32.totalorder %s30, 2
      // Predicated region
      $region85: #{autoencoder_forward.1} parent=5 // pred_check
        %p608 = pneg %p607
      $region86: #{autoencoder_forward.1} parent=5 // pred_check_branch
        %610 = sbr.rel (%p608) target = $region88
      $region87: #{autoencoder_forward.1} parent=5 // pred_region
        // Predicated region
        $region89: #{autoencoder_forward.1} parent=87 // pred_check
          %p611 = pneg %p50
        $region90: #{autoencoder_forward.1} parent=87 // pred_check_branch
          %613 = sbr.rel (%p611) target = $region92
        $region91: #{autoencoder_forward.1} parent=87 // pred_region
          %s614 = smul.u32 2, %s30
          %p615 = scmp.lt.s32.totalorder %s614, 3
          %s616 = scalar_select %p615, %s614, 3
          %s617 = smul.addr %s616, 8
          %s618 = scalar_lea.vmem %s0, %s617
          %s619 = smul.u32 2, %s30
        $region92: #{autoencoder_forward.1} parent=87 // pred_fallthru
          _
      $region88: #{autoencoder_forward.1} parent=5 // pred_fallthru
        _
      %p620 = scmp.le.s32.totalorder 1, %s30
      %p621 = scmp.lt.s32.totalorder %s30, 3
      %p622 = pnand %p620, %p621
      %p623 = pneg %p622
      // Predicated region
      $region93: #{autoencoder_forward.1} parent=5 // pred_check
        _
      $region94: #{autoencoder_forward.1} parent=5 // pred_check_branch
        %625 = sbr.rel (%p622) target = $region96
      $region95: #{autoencoder_forward.1} parent=5 // pred_region
        %s626 = ssub.s32 %s30, 1
        // Predicated region
        $region97: #{autoencoder_forward.1} parent=95 // pred_check
          %p627 = pneg %p77
        $region98: #{autoencoder_forward.1} parent=95 // pred_check_branch
          %629 = sbr.rel (%p627) target = $region100
        $region99: #{autoencoder_forward.1} parent=95 // pred_region
          %630 = dma.done [#allocation3], 384
        $region100: #{autoencoder_forward.1} parent=95 // pred_fallthru
          _
        // Predicated region
        $region101: #{autoencoder_forward.1} parent=95 // pred_check
          %p631 = pneg %p119
        $region102: #{autoencoder_forward.1} parent=95 // pred_check_branch
          %633 = sbr.rel (%p631) target = $region104
        $region103: #{autoencoder_forward.1} parent=95 // pred_region
          %634 = dma.done [#allocation5], 16
        $region104: #{autoencoder_forward.1} parent=95 // pred_fallthru
          _
        // Predicated region
        $region105: #{autoencoder_forward.1} parent=95 // pred_check
          %p635 = pneg %p140
        $region106: #{autoencoder_forward.1} parent=95 // pred_check_branch
          %637 = sbr.rel (%p635) target = $region108
        $region107: #{autoencoder_forward.1} parent=95 // pred_region
          %638 = dma.done [#allocation5], 192
        $region108: #{autoencoder_forward.1} parent=95 // pred_fallthru
          _
        // Predicated region
        $region109: #{autoencoder_forward.1} parent=95 // pred_check
          %p639 = pneg %p161
        $region110: #{autoencoder_forward.1} parent=95 // pred_check_branch
          %641 = sbr.rel (%p639) target = $region112
        $region111: #{autoencoder_forward.1} parent=95 // pred_region
          %642 = dma.done [#allocation8], 1536
        $region112: #{autoencoder_forward.1} parent=95 // pred_fallthru
          _
        // Predicated region
        $region113: #{autoencoder_forward.1} parent=95 // pred_check
          %p643 = pneg %p203
        $region114: #{autoencoder_forward.1} parent=95 // pred_check_branch
          %645 = sbr.rel (%p643) target = $region116
        $region115: #{autoencoder_forward.1} parent=95 // pred_region
          %646 = dma.done [#allocation8], 96
        $region116: #{autoencoder_forward.1} parent=95 // pred_fallthru
          _
        // Predicated region
        $region117: #{autoencoder_forward.1} parent=95 // pred_check
          %p647 = pneg %p224
        $region118: #{autoencoder_forward.1} parent=95 // pred_check_branch
          %649 = sbr.rel (%p647) target = $region120
        $region119: #{autoencoder_forward.1} parent=95 // pred_region
          %650 = dma.done [#allocation11], 1536
        $region120: #{autoencoder_forward.1} parent=95 // pred_fallthru
          _
        // Predicated region
        $region121: #{autoencoder_forward.1} parent=95 // pred_check
          %p651 = pneg %p266
        $region122: #{autoencoder_forward.1} parent=95 // pred_check_branch
          %653 = sbr.rel (%p651) target = $region124
        $region123: #{autoencoder_forward.1} parent=95 // pred_region
          %654 = dma.done [#allocation11], 192
        $region124: #{autoencoder_forward.1} parent=95 // pred_fallthru
          _
        // Predicated region
        $region125: #{autoencoder_forward.1} parent=95 // pred_check
          %p655 = pneg %p392
        $region126: #{autoencoder_forward.1} parent=95 // pred_check_branch
          %657 = sbr.rel (%p655) target = $region128
        $region127: #{autoencoder_forward.1} parent=95 // pred_region
          %658 = dma.done [#allocation14], 768
        $region128: #{autoencoder_forward.1} parent=95 // pred_fallthru
          _
        %s659 = smul.u32 2, %s35
        %p660 = scmp.lt.s32.totalorder %s659, 3
        %s661 = scalar_select %p660, %s659, 3
        %s662 = smul.addr %s661, 8
        %s663 = scalar_lea.vmem %s0, %s662
        %p664 = pneg %p56
        %p665 = pneg %p53
        %p666 = pneg %p77
        %p667 = pneg %p74
        %p668 = pneg %p98
        %p669 = pneg %p95
        %p670 = pneg %p119
        %p671 = pneg %p116
        %p672 = pneg %p140
        %p673 = pneg %p137
        %p674 = pneg %p161
        %p675 = pneg %p158
        %p676 = pneg %p182
        %p677 = pneg %p179
        %p678 = pneg %p203
        %p679 = pneg %p200
        %p680 = pneg %p224
        %p681 = pneg %p221
        %p682 = pneg %p245
        %p683 = pneg %p242
        %p684 = pneg %p266
        %p685 = pneg %p263
        %p686 = pneg %p287
        %p687 = pneg %p284
        %p688 = pneg %p308
        %p689 = pneg %p305
        %p690 = pneg %p329
        %p691 = pneg %p326
        %p692 = pneg %p350
        %p693 = pneg %p347
        %p694 = pneg %p371
        %p695 = pneg %p368
        %p696 = pneg %p392
        %p697 = pneg %p389
        %p698 = pneg %p413
        %p699 = pneg %p410
        %p700 = pneg %p434
        %p701 = pneg %p431
        %p702 = pneg %p460
        %p703 = pneg %p457
        %s704 = smul.u32 2, %s35
        %p705 = scmp.lt.s32.totalorder %s704, 3
        %s706 = scalar_select %p705, %s704, 3
        %s707 = smul.addr %s706, 8
        %s708 = scalar_lea.vmem %s19, %s707
        %s709 = smul.u32 2, %s35
        %p710 = scmp.lt.s32.totalorder %s709, 3
        %s711 = scalar_select %p710, %s709, 3
        %s712 = smul.addr %s711, 8
        %s713 = scalar_lea.vmem %s0, %s712
        %s714 = smul.u32 2, %s35
        %s715 = smul.u32 2, %s35
        %p716 = scmp.lt.s32.totalorder %s715, 3
        %s717 = scalar_select %p716, %s715, 3
        %s718 = smul.addr %s717, 8
        %s719 = scalar_lea.vmem %s19, %s718
        %s720 = smul.u32 2, %s35
        %v721 = vld [vmem:[%s713] sm:$0xff]
        %v722 = vld [vmem:[%s713 + $0x8] sm:$0xff]
        %v723 = vld [vmem:[#allocation2] sm:$0xff]
        %vm724 = vcmask 130048
        %v726 = vsel %vm724, %v723, 0
        %728 = vmatprep.subr.mxu0 0.0
        %729 = vmatpush1.msra.mxu0 %v721
        %730 = vmatprep.subr.mxu0 0.0
        %731 = vmatpush1.msra.mxu0 %v722
        %732 = vmatprep.subr.mxu0 0.0
        %733 = vmatpush1.msra.mxu0 0.0
        %734 = vmatprep.subr.mxu0 0.0
        %735 = vmatpush1.msra.mxu0 0.0
        %736 = vmatprep.subr.mxu0 0.0
        %737 = vmatpush1.msra.mxu0 0.0
        %738 = vmatprep.subr.mxu0 0.0
        %739 = vmatpush1.msra.mxu0 0.0
        %740 = vmatprep.subr.mxu0 0.0
        %741 = vmatpush1.msra.mxu0 0.0
        %742 = vmatprep.subr.mxu0 0.0
        %743 = vmatpush1.msra.mxu0 0.0
        %744 = vmatprep.subr.mxu0 0.0
        %745 = vmatpush1.msra.mxu0 0.0
        %746 = vmatprep.subr.mxu0 0.0
        %747 = vmatpush1.msra.mxu0 0.0
        %748 = vmatprep.subr.mxu0 0.0
        %749 = vmatpush1.msra.mxu0 0.0
        %750 = vmatprep.subr.mxu0 0.0
        %751 = vmatpush1.msra.mxu0 0.0
        %752 = vmatprep.subr.mxu0 0.0
        %753 = vmatpush1.msra.mxu0 0.0
        %754 = vmatprep.subr.mxu0 0.0
        %755 = vmatpush1.msra.mxu0 0.0
        %756 = vmatprep.subr.mxu0 0.0
        %757 = vmatpush1.msra.mxu0 0.0
        %758 = vmatprep.subr.mxu0 0.0
        %759 = vmatpush1.msra.mxu0 0.0
        %760 = vmatprep.subr.mxu0 0.0
        %761 = vmatpush1.msra.mxu0 0.0
        %762 = vmatprep.subr.mxu0 0.0
        %763 = vmatpush1.msra.mxu0 0.0
        %764 = vmatprep.subr.mxu0 0.0
        %765 = vmatpush1.msra.mxu0 0.0
        %766 = vmatprep.subr.mxu0 0.0
        %767 = vmatpush1.msra.mxu0 0.0
        %768 = vmatprep.subr.mxu0 0.0
        %769 = vmatpush1.msra.mxu0 0.0
        %770 = vmatprep.subr.mxu0 0.0
        %771 = vmatpush1.msra.mxu0 0.0
        %772 = vmatprep.subr.mxu0 0.0
        %773 = vmatpush1.msra.mxu0 0.0
        %774 = vmatprep.subr.mxu0 0.0
        %775 = vmatpush1.msra.mxu0 0.0
        %776 = vmatprep.subr.mxu0 0.0
        %777 = vmatpush1.msra.mxu0 0.0
        %778 = vmatprep.subr.mxu0 0.0
        %779 = vmatpush1.msra.mxu0 0.0
        %780 = vmatprep.subr.mxu0 0.0
        %781 = vmatpush1.msra.mxu0 0.0
        %782 = vmatprep.subr.mxu0 0.0
        %783 = vmatpush1.msra.mxu0 0.0
        %784 = vmatprep.subr.mxu0 0.0
        %785 = vmatpush1.msra.mxu0 0.0
        %786 = vmatprep.subr.mxu0 0.0
        %787 = vmatpush1.msra.mxu0 0.0
        %788 = vmatprep.subr.mxu0 0.0
        %789 = vmatpush1.msra.mxu0 0.0
        %790 = vmatprep.subr.mxu0 0.0
        %791 = vmatpush1.msra.mxu0 0.0
        %792 = vmatprep.mubr.f32.mxu0 0.0
        %793 = vmatmul.mubr.f32.gmra.mrb[0].mxu0 %v726
        %v794 = vpop.f32.mrb[0].mxu0
        %v795 = vadd.f32 0.0, %v794
        %v796 = vpop.f32.mrb[0].mxu0
        %797 = vdwg.mxu0
        %v798 = vld [vmem:[%s2] sm:$0xff]
        %v799 = vld [vmem:[%s2 + $0x8] sm:$0xff]
        %v800 = vld [vmem:[%s2 + $0x10] sm:$0xff]
        %v801 = vld [vmem:[%s2 + $0x18] sm:$0xff]
        %v802 = vld [vmem:[%s2 + $0x20] sm:$0xff]
        %v803 = vld [vmem:[%s2 + $0x28] sm:$0xff]
        %s804 = scalar_lea.vmem [#allocation2], 8
        %v805 = vld [vmem:[%s804] sm:$0xff]
        %v807 = vsel %vm724, %v805, 0
        %809 = vmatprep.subr.mxu0 0.0
        %810 = vmatpush1.msra.mxu0 %v721
        %811 = vmatprep.subr.mxu0 0.0
        %812 = vmatpush1.msra.mxu0 %v722
        %813 = vmatprep.subr.mxu0 0.0
        %814 = vmatpush1.msra.mxu0 0.0
        %815 = vmatprep.subr.mxu0 0.0
        %816 = vmatpush1.msra.mxu0 0.0
        %817 = vmatprep.subr.mxu0 0.0
        %818 = vmatpush1.msra.mxu0 0.0
        %819 = vmatprep.subr.mxu0 0.0
        %820 = vmatpush1.msra.mxu0 0.0
        %821 = vmatprep.subr.mxu0 0.0
        %822 = vmatpush1.msra.mxu0 0.0
        %823 = vmatprep.subr.mxu0 0.0
        %824 = vmatpush1.msra.mxu0 0.0
        %825 = vmatprep.subr.mxu0 0.0
        %826 = vmatpush1.msra.mxu0 0.0
        %827 = vmatprep.subr.mxu0 0.0
        %828 = vmatpush1.msra.mxu0 0.0
        %829 = vmatprep.subr.mxu0 0.0
        %830 = vmatpush1.msra.mxu0 0.0
        %831 = vmatprep.subr.mxu0 0.0
        %832 = vmatpush1.msra.mxu0 0.0
        %833 = vmatprep.subr.mxu0 0.0
        %834 = vmatpush1.msra.mxu0 0.0
        %835 = vmatprep.subr.mxu0 0.0
        %836 = vmatpush1.msra.mxu0 0.0
        %837 = vmatprep.subr.mxu0 0.0
        %838 = vmatpush1.msra.mxu0 0.0
        %839 = vmatprep.subr.mxu0 0.0
        %840 = vmatpush1.msra.mxu0 0.0
        %841 = vmatprep.subr.mxu0 0.0
        %842 = vmatpush1.msra.mxu0 0.0
        %843 = vmatprep.subr.mxu0 0.0
        %844 = vmatpush1.msra.mxu0 0.0
        %845 = vmatprep.subr.mxu0 0.0
        %846 = vmatpush1.msra.mxu0 0.0
        %847 = vmatprep.subr.mxu0 0.0
        %848 = vmatpush1.msra.mxu0 0.0
        %849 = vmatprep.subr.mxu0 0.0
        %850 = vmatpush1.msra.mxu0 0.0
        %851 = vmatprep.subr.mxu0 0.0
        %852 = vmatpush1.msra.mxu0 0.0
        %853 = vmatprep.subr.mxu0 0.0
        %854 = vmatpush1.msra.mxu0 0.0
        %855 = vmatprep.subr.mxu0 0.0
        %856 = vmatpush1.msra.mxu0 0.0
        %857 = vmatprep.subr.mxu0 0.0
        %858 = vmatpush1.msra.mxu0 0.0
        %859 = vmatprep.subr.mxu0 0.0
        %860 = vmatpush1.msra.mxu0 0.0
        %861 = vmatprep.subr.mxu0 0.0
        %862 = vmatpush1.msra.mxu0 0.0
        %863 = vmatprep.subr.mxu0 0.0
        %864 = vmatpush1.msra.mxu0 0.0
        %865 = vmatprep.subr.mxu0 0.0
        %866 = vmatpush1.msra.mxu0 0.0
        %867 = vmatprep.subr.mxu0 0.0
        %868 = vmatpush1.msra.mxu0 0.0
        %869 = vmatprep.subr.mxu0 0.0
        %870 = vmatpush1.msra.mxu0 0.0
        %871 = vmatprep.subr.mxu0 0.0
        %872 = vmatpush1.msra.mxu0 0.0
        %873 = vmatprep.mubr.f32.mxu0 0.0
        %874 = vmatmul.mubr.f32.gmra.mrb[0].mxu0 %v807
        %v875 = vpop.f32.mrb[0].mxu0
        %v876 = vadd.f32 0.0, %v875
        %v877 = vpop.f32.mrb[0].mxu0
        %878 = vdwg.mxu0
        %s879 = scalar_lea.vmem %s2, 48
        %v880 = vld [vmem:[%s879] sm:$0xff]
        %v881 = vld [vmem:[%s879 + $0x8] sm:$0xff]
        %v882 = vld [vmem:[%s879 + $0x10] sm:$0xff]
        %v883 = vld [vmem:[%s879 + $0x18] sm:$0xff]
        %v884 = vld [vmem:[%s879 + $0x20] sm:$0xff]
        %v885 = vld [vmem:[%s879 + $0x28] sm:$0xff]
        %vm886 = vcmask 392192
        %v888 = vsel %vm886, %v876, 0
        %890 = vmatprep.subr.mxu0 0.0
        %891 = vmatpush1.msra.mxu0 %v880
        %892 = vmatprep.subr.mxu0 0.0
        %893 = vmatpush1.msra.mxu0 %v881
        %894 = vmatprep.subr.mxu0 0.0
        %895 = vmatpush1.msra.mxu0 %v882
        %896 = vmatprep.subr.mxu0 0.0
        %897 = vmatpush1.msra.mxu0 %v883
        %898 = vmatprep.subr.mxu0 0.0
        %899 = vmatpush1.msra.mxu0 %v884
        %900 = vmatprep.subr.mxu0 0.0
        %901 = vmatpush1.msra.mxu0 %v885
        %902 = vmatprep.subr.mxu0 0.0
        %903 = vmatpush1.msra.mxu0 0.0
        %904 = vmatprep.subr.mxu0 0.0
        %905 = vmatpush1.msra.mxu0 0.0
        %906 = vmatprep.subr.mxu0 0.0
        %907 = vmatpush1.msra.mxu0 0.0
        %908 = vmatprep.subr.mxu0 0.0
        %909 = vmatpush1.msra.mxu0 0.0
        %910 = vmatprep.subr.mxu0 0.0
        %911 = vmatpush1.msra.mxu0 0.0
        %912 = vmatprep.subr.mxu0 0.0
        %913 = vmatpush1.msra.mxu0 0.0
        %914 = vmatprep.subr.mxu0 0.0
        %915 = vmatpush1.msra.mxu0 0.0
        %916 = vmatprep.subr.mxu0 0.0
        %917 = vmatpush1.msra.mxu0 0.0
        %918 = vmatprep.subr.mxu0 0.0
        %919 = vmatpush1.msra.mxu0 0.0
        %920 = vmatprep.subr.mxu0 0.0
        %921 = vmatpush1.msra.mxu0 0.0
        %922 = vmatprep.subr.mxu0 0.0
        %923 = vmatpush1.msra.mxu0 0.0
        %924 = vmatprep.subr.mxu0 0.0
        %925 = vmatpush1.msra.mxu0 0.0
        %926 = vmatprep.subr.mxu0 0.0
        %927 = vmatpush1.msra.mxu0 0.0
        %928 = vmatprep.subr.mxu0 0.0
        %929 = vmatpush1.msra.mxu0 0.0
        %930 = vmatprep.subr.mxu0 0.0
        %931 = vmatpush1.msra.mxu0 0.0
        %932 = vmatprep.subr.mxu0 0.0
        %933 = vmatpush1.msra.mxu0 0.0
        %934 = vmatprep.subr.mxu0 0.0
        %935 = vmatpush1.msra.mxu0 0.0
        %936 = vmatprep.subr.mxu0 0.0
        %937 = vmatpush1.msra.mxu0 0.0
        %938 = vmatprep.subr.mxu0 0.0
        %939 = vmatpush1.msra.mxu0 0.0
        %940 = vmatprep.subr.mxu0 0.0
        %941 = vmatpush1.msra.mxu0 0.0
        %942 = vmatprep.subr.mxu0 0.0
        %943 = vmatpush1.msra.mxu0 0.0
        %944 = vmatprep.subr.mxu0 0.0
        %945 = vmatpush1.msra.mxu0 0.0
        %946 = vmatprep.subr.mxu0 0.0
        %947 = vmatpush1.msra.mxu0 0.0
        %948 = vmatprep.subr.mxu0 0.0
        %949 = vmatpush1.msra.mxu0 0.0
        %950 = vmatprep.subr.mxu0 0.0
        %951 = vmatpush1.msra.mxu0 0.0
        %952 = vmatprep.subr.mxu0 0.0
        %953 = vmatpush1.msra.mxu0 0.0
        %954 = vmatprep.mubr.f32.mxu0 0.0
        %955 = vmatmul.mubr.f32.gmra.mrb[0].mxu0 %v888
        %v956 = vpop.f32.mrb[0].mxu0
        %v957 = vadd.f32 0.0, %v956
        %v958 = vpop.f32.mrb[0].mxu0
        %959 = vdwg.mxu0
        %v961 = vsel %vm886, %v795, 0
        %963 = vmatprep.subr.mxu0 0.0
        %964 = vmatpush1.msra.mxu0 %v798
        %965 = vmatprep.subr.mxu0 0.0
        %966 = vmatpush1.msra.mxu0 %v799
        %967 = vmatprep.subr.mxu0 0.0
        %968 = vmatpush1.msra.mxu0 %v800
        %969 = vmatprep.subr.mxu0 0.0
        %970 = vmatpush1.msra.mxu0 %v801
        %971 = vmatprep.subr.mxu0 0.0
        %972 = vmatpush1.msra.mxu0 %v802
        %973 = vmatprep.subr.mxu0 0.0
        %974 = vmatpush1.msra.mxu0 %v803
        %975 = vmatprep.subr.mxu0 0.0
        %976 = vmatpush1.msra.mxu0 0.0
        %977 = vmatprep.subr.mxu0 0.0
        %978 = vmatpush1.msra.mxu0 0.0
        %979 = vmatprep.subr.mxu0 0.0
        %980 = vmatpush1.msra.mxu0 0.0
        %981 = vmatprep.subr.mxu0 0.0
        %982 = vmatpush1.msra.mxu0 0.0
        %983 = vmatprep.subr.mxu0 0.0
        %984 = vmatpush1.msra.mxu0 0.0
        %985 = vmatprep.subr.mxu0 0.0
        %986 = vmatpush1.msra.mxu0 0.0
        %987 = vmatprep.subr.mxu0 0.0
        %988 = vmatpush1.msra.mxu0 0.0
        %989 = vmatprep.subr.mxu0 0.0
        %990 = vmatpush1.msra.mxu0 0.0
        %991 = vmatprep.subr.mxu0 0.0
        %992 = vmatpush1.msra.mxu0 0.0
        %993 = vmatprep.subr.mxu0 0.0
        %994 = vmatpush1.msra.mxu0 0.0
        %995 = vmatprep.subr.mxu0 0.0
        %996 = vmatpush1.msra.mxu0 0.0
        %997 = vmatprep.subr.mxu0 0.0
        %998 = vmatpush1.msra.mxu0 0.0
        %999 = vmatprep.subr.mxu0 0.0
        %1000 = vmatpush1.msra.mxu0 0.0
        %1001 = vmatprep.subr.mxu0 0.0
        %1002 = vmatpush1.msra.mxu0 0.0
        %1003 = vmatprep.subr.mxu0 0.0
        %1004 = vmatpush1.msra.mxu0 0.0
        %1005 = vmatprep.subr.mxu0 0.0
        %1006 = vmatpush1.msra.mxu0 0.0
        %1007 = vmatprep.subr.mxu0 0.0
        %1008 = vmatpush1.msra.mxu0 0.0
        %1009 = vmatprep.subr.mxu0 0.0
        %1010 = vmatpush1.msra.mxu0 0.0
        %1011 = vmatprep.subr.mxu0 0.0
        %1012 = vmatpush1.msra.mxu0 0.0
        %1013 = vmatprep.subr.mxu0 0.0
        %1014 = vmatpush1.msra.mxu0 0.0
        %1015 = vmatprep.subr.mxu0 0.0
        %1016 = vmatpush1.msra.mxu0 0.0
        %1017 = vmatprep.subr.mxu0 0.0
        %1018 = vmatpush1.msra.mxu0 0.0
        %1019 = vmatprep.subr.mxu0 0.0
        %1020 = vmatpush1.msra.mxu0 0.0
        %1021 = vmatprep.subr.mxu0 0.0
        %1022 = vmatpush1.msra.mxu0 0.0
        %1023 = vmatprep.subr.mxu0 0.0
        %1024 = vmatpush1.msra.mxu0 0.0
        %1025 = vmatprep.subr.mxu0 0.0
        %1026 = vmatpush1.msra.mxu0 0.0
        %1027 = vmatprep.mubr.f32.mxu0 0.0
        %1028 = vmatmul.mubr.f32.gmra.mrb[0].mxu0 %v961
        %v1029 = vpop.f32.mrb[0].mxu0
        %v1030 = vadd.f32 %v957, %v1029
        %v1031 = vpop.f32.mrb[0].mxu0
        %1032 = vdwg.mxu0
        %s1033 = scalar_lea.vmem [#allocation2], 16
        %v1034 = vld [vmem:[%s1033] sm:$0xff]
        %v1036 = vsel %vm724, %v1034, 0
        %1038 = vmatprep.subr.mxu0 0.0
        %1039 = vmatpush1.msra.mxu0 %v721
        %1040 = vmatprep.subr.mxu0 0.0
        %1041 = vmatpush1.msra.mxu0 %v722
        %1042 = vmatprep.subr.mxu0 0.0
        %1043 = vmatpush1.msra.mxu0 0.0
        %1044 = vmatprep.subr.mxu0 0.0
        %1045 = vmatpush1.msra.mxu0 0.0
        %1046 = vmatprep.subr.mxu0 0.0
        %1047 = vmatpush1.msra.mxu0 0.0
        %1048 = vmatprep.subr.mxu0 0.0
        %1049 = vmatpush1.msra.mxu0 0.0
        %1050 = vmatprep.subr.mxu0 0.0
        %1051 = vmatpush1.msra.mxu0 0.0
        %1052 = vmatprep.subr.mxu0 0.0
        %1053 = vmatpush1.msra.mxu0 0.0
        %1054 = vmatprep.subr.mxu0 0.0
        %1055 = vmatpush1.msra.mxu0 0.0
        %1056 = vmatprep.subr.mxu0 0.0
        %1057 = vmatpush1.msra.mxu0 0.0
        %1058 = vmatprep.subr.mxu0 0.0
        %1059 = vmatpush1.msra.mxu0 0.0
        %1060 = vmatprep.subr.mxu0 0.0
        %1061 = vmatpush1.msra.mxu0 0.0
        %1062 = vmatprep.subr.mxu0 0.0
        %1063 = vmatpush1.msra.mxu0 0.0
        %1064 = vmatprep.subr.mxu0 0.0
        %1065 = vmatpush1.msra.mxu0 0.0
        %1066 = vmatprep.subr.mxu0 0.0
        %1067 = vmatpush1.msra.mxu0 0.0
        %1068 = vmatprep.subr.mxu0 0.0
        %1069 = vmatpush1.msra.mxu0 0.0
        %1070 = vmatprep.subr.mxu0 0.0
        %1071 = vmatpush1.msra.mxu0 0.0
        %1072 = vmatprep.subr.mxu0 0.0
        %1073 = vmatpush1.msra.mxu0 0.0
        %1074 = vmatprep.subr.mxu0 0.0
        %1075 = vmatpush1.msra.mxu0 0.0
        %1076 = vmatprep.subr.mxu0 0.0
        %1077 = vmatpush1.msra.mxu0 0.0
        %1078 = vmatprep.subr.mxu0 0.0
        %1079 = vmatpush1.msra.mxu0 0.0
        %1080 = vmatprep.subr.mxu0 0.0
        %1081 = vmatpush1.msra.mxu0 0.0
        %1082 = vmatprep.subr.mxu0 0.0
        %1083 = vmatpush1.msra.mxu0 0.0
        %1084 = vmatprep.subr.mxu0 0.0
        %1085 = vmatpush1.msra.mxu0 0.0
        %1086 = vmatprep.subr.mxu0 0.0
        %1087 = vmatpush1.msra.mxu0 0.0
        %1088 = vmatprep.subr.mxu0 0.0
        %1089 = vmatpush1.msra.mxu0 0.0
        %1090 = vmatprep.subr.mxu0 0.0
        %1091 = vmatpush1.msra.mxu0 0.0
        %1092 = vmatprep.subr.mxu0 0.0
        %1093 = vmatpush1.msra.mxu0 0.0
        %1094 = vmatprep.subr.mxu0 0.0
        %1095 = vmatpush1.msra.mxu0 0.0
        %1096 = vmatprep.subr.mxu0 0.0
        %1097 = vmatpush1.msra.mxu0 0.0
        %1098 = vmatprep.subr.mxu0 0.0
        %1099 = vmatpush1.msra.mxu0 0.0
        %1100 = vmatprep.subr.mxu0 0.0
        %1101 = vmatpush1.msra.mxu0 0.0
        %1102 = vmatprep.mubr.f32.mxu0 0.0
        %1103 = vmatmul.mubr.f32.gmra.mrb[0].mxu0 %v1036
        %v1104 = vpop.f32.mrb[0].mxu0
        %v1105 = vadd.f32 0.0, %v1104
        %v1106 = vpop.f32.mrb[0].mxu0
        %1107 = vdwg.mxu0
        %s1108 = scalar_lea.vmem %s2, 96
        %v1109 = vld [vmem:[%s1108] sm:$0xff]
        %v1110 = vld [vmem:[%s1108 + $0x8] sm:$0xff]
        %v1111 = vld [vmem:[%s1108 + $0x10] sm:$0xff]
        %v1112 = vld [vmem:[%s1108 + $0x18] sm:$0xff]
        %v1113 = vld [vmem:[%s1108 + $0x20] sm:$0xff]
        %v1114 = vld [vmem:[%s1108 + $0x28] sm:$0xff]
        %v1116 = vsel %vm886, %v1105, 0
        %1118 = vmatprep.subr.mxu0 0.0
        %1119 = vmatpush1.msra.mxu0 %v1109
        %1120 = vmatprep.subr.mxu0 0.0
        %1121 = vmatpush1.msra.mxu0 %v1110
        %1122 = vmatprep.subr.mxu0 0.0
        %1123 = vmatpush1.msra.mxu0 %v1111
        %1124 = vmatprep.subr.mxu0 0.0
        %1125 = vmatpush1.msra.mxu0 %v1112
        %1126 = vmatprep.subr.mxu0 0.0
        %1127 = vmatpush1.msra.mxu0 %v1113
        %1128 = vmatprep.subr.mxu0 0.0
        %1129 = vmatpush1.msra.mxu0 %v1114
        %1130 = vmatprep.subr.mxu0 0.0
        %1131 = vmatpush1.msra.mxu0 0.0
        %1132 = vmatprep.subr.mxu0 0.0
        %1133 = vmatpush1.msra.mxu0 0.0
        %1134 = vmatprep.subr.mxu0 0.0
        %1135 = vmatpush1.msra.mxu0 0.0
        %1136 = vmatprep.subr.mxu0 0.0
        %1137 = vmatpush1.msra.mxu0 0.0
        %1138 = vmatprep.subr.mxu0 0.0
        %1139 = vmatpush1.msra.mxu0 0.0
        %1140 = vmatprep.subr.mxu0 0.0
        %1141 = vmatpush1.msra.mxu0 0.0
        %1142 = vmatprep.subr.mxu0 0.0
        %1143 = vmatpush1.msra.mxu0 0.0
        %1144 = vmatprep.subr.mxu0 0.0
        %1145 = vmatpush1.msra.mxu0 0.0
        %1146 = vmatprep.subr.mxu0 0.0
        %1147 = vmatpush1.msra.mxu0 0.0
        %1148 = vmatprep.subr.mxu0 0.0
        %1149 = vmatpush1.msra.mxu0 0.0
        %1150 = vmatprep.subr.mxu0 0.0
        %1151 = vmatpush1.msra.mxu0 0.0
        %1152 = vmatprep.subr.mxu0 0.0
        %1153 = vmatpush1.msra.mxu0 0.0
        %1154 = vmatprep.subr.mxu0 0.0
        %1155 = vmatpush1.msra.mxu0 0.0
        %1156 = vmatprep.subr.mxu0 0.0
        %1157 = vmatpush1.msra.mxu0 0.0
        %1158 = vmatprep.subr.mxu0 0.0
        %1159 = vmatpush1.msra.mxu0 0.0
        %1160 = vmatprep.subr.mxu0 0.0
        %1161 = vmatpush1.msra.mxu0 0.0
        %1162 = vmatprep.subr.mxu0 0.0
        %1163 = vmatpush1.msra.mxu0 0.0
        %1164 = vmatprep.subr.mxu0 0.0
        %1165 = vmatpush1.msra.mxu0 0.0
        %1166 = vmatprep.subr.mxu0 0.0
        %1167 = vmatpush1.msra.mxu0 0.0
        %1168 = vmatprep.subr.mxu0 0.0
        %1169 = vmatpush1.msra.mxu0 0.0
        %1170 = vmatprep.subr.mxu0 0.0
        %1171 = vmatpush1.msra.mxu0 0.0
        %1172 = vmatprep.subr.mxu0 0.0
        %1173 = vmatpush1.msra.mxu0 0.0
        %1174 = vmatprep.subr.mxu0 0.0
        %1175 = vmatpush1.msra.mxu0 0.0
        %1176 = vmatprep.subr.mxu0 0.0
        %1177 = vmatpush1.msra.mxu0 0.0
        %1178 = vmatprep.subr.mxu0 0.0
        %1179 = vmatpush1.msra.mxu0 0.0
        %1180 = vmatprep.subr.mxu0 0.0
        %1181 = vmatpush1.msra.mxu0 0.0
        %1182 = vmatprep.mubr.f32.mxu0 0.0
        %1183 = vmatmul.mubr.f32.gmra.mrb[0].mxu0 %v1116
        %v1184 = vpop.f32.mrb[0].mxu0
        %v1185 = vadd.f32 0.0, %v1184
        %v1186 = vpop.f32.mrb[0].mxu0
        %1187 = vdwg.mxu0
        %v1188 = vadd.f32 %v1030, %v1185
        %v1189 = vld [vmem:[#allocation4] sm:$0x1]
        %v1191 = vlaneseq
        %v1192 = vshrl.u32 %v1191, 7
        %v1193 = vsub.s32 0, %v1192
        %v1194 = vrot.slane %v1189, %v1193
        %v1196 = vadd.f32 %v1188, %v1194
        %v1197 = vmax.f32 %v1196, 0.0
        %v1198 = vld [vmem:[#allocation6] sm:$0xf]
        %vm1199 = vcmask 64512
        %v1201 = vsel %vm1199, %v1198, 0
        %1203 = vmatprep.subr.mxu0 0.0
        %1204 = vmatpush1.msra.mxu0 %v1197
        %1205 = vmatprep.subr.mxu0 0.0
        %1206 = vmatpush1.msra.mxu0 0.0
        %1207 = vmatprep.subr.mxu0 0.0
        %1208 = vmatpush1.msra.mxu0 0.0
        %1209 = vmatprep.subr.mxu0 0.0
        %1210 = vmatpush1.msra.mxu0 0.0
        %1211 = vmatprep.subr.mxu0 0.0
        %1212 = vmatpush1.msra.mxu0 0.0
        %1213 = vmatprep.subr.mxu0 0.0
        %1214 = vmatpush1.msra.mxu0 0.0
        %1215 = vmatprep.subr.mxu0 0.0
        %1216 = vmatpush1.msra.mxu0 0.0
        %1217 = vmatprep.subr.mxu0 0.0
        %1218 = vmatpush1.msra.mxu0 0.0
        %1219 = vmatprep.subr.mxu0 0.0
        %1220 = vmatpush1.msra.mxu0 0.0
        %1221 = vmatprep.subr.mxu0 0.0
        %1222 = vmatpush1.msra.mxu0 0.0
        %1223 = vmatprep.subr.mxu0 0.0
        %1224 = vmatpush1.msra.mxu0 0.0
        %1225 = vmatprep.subr.mxu0 0.0
        %1226 = vmatpush1.msra.mxu0 0.0
        %1227 = vmatprep.subr.mxu0 0.0
        %1228 = vmatpush1.msra.mxu0 0.0
        %1229 = vmatprep.subr.mxu0 0.0
        %1230 = vmatpush1.msra.mxu0 0.0
        %1231 = vmatprep.subr.mxu0 0.0
        %1232 = vmatpush1.msra.mxu0 0.0
        %1233 = vmatprep.subr.mxu0 0.0
        %1234 = vmatpush1.msra.mxu0 0.0
        %1235 = vmatprep.subr.mxu0 0.0
        %1236 = vmatpush1.msra.mxu0 0.0
        %1237 = vmatprep.subr.mxu0 0.0
        %1238 = vmatpush1.msra.mxu0 0.0
        %1239 = vmatprep.subr.mxu0 0.0
        %1240 = vmatpush1.msra.mxu0 0.0
        %1241 = vmatprep.subr.mxu0 0.0
        %1242 = vmatpush1.msra.mxu0 0.0
        %1243 = vmatprep.subr.mxu0 0.0
        %1244 = vmatpush1.msra.mxu0 0.0
        %1245 = vmatprep.subr.mxu0 0.0
        %1246 = vmatpush1.msra.mxu0 0.0
        %1247 = vmatprep.subr.mxu0 0.0
        %1248 = vmatpush1.msra.mxu0 0.0
        %1249 = vmatprep.subr.mxu0 0.0
        %1250 = vmatpush1.msra.mxu0 0.0
        %1251 = vmatprep.subr.mxu0 0.0
        %1252 = vmatpush1.msra.mxu0 0.0
        %1253 = vmatprep.subr.mxu0 0.0
        %1254 = vmatpush1.msra.mxu0 0.0
        %1255 = vmatprep.subr.mxu0 0.0
        %1256 = vmatpush1.msra.mxu0 0.0
        %1257 = vmatprep.subr.mxu0 0.0
        %1258 = vmatpush1.msra.mxu0 0.0
        %1259 = vmatprep.subr.mxu0 0.0
        %1260 = vmatpush1.msra.mxu0 0.0
        %1261 = vmatprep.subr.mxu0 0.0
        %1262 = vmatpush1.msra.mxu0 0.0
        %1263 = vmatprep.subr.mxu0 0.0
        %1264 = vmatpush1.msra.mxu0 0.0
        %1265 = vmatprep.subr.mxu0 0.0
        %1266 = vmatpush1.msra.mxu0 0.0
        %1267 = vmatprep.mubr.f32.mxu0 0.0
        %1268 = vmatmul.mubr.f32.gmra.mrb[0].mxu0 %v1201
        %v1269 = vpop.f32.mrb[0].mxu0
        %v1270 = vadd.f32 0.0, %v1269
        %v1271 = vpop.f32.mrb[0].mxu0
        %1272 = vdwg.mxu0
        %v1273 = vld [vmem:[#allocation7] sm:$0xff]
        %v1274 = vld [vmem:[#allocation7 + $0x8] sm:$0xff]
        %v1275 = vld [vmem:[#allocation7 + $0x10] sm:$0xff]
        %v1276 = vld [vmem:[#allocation7 + $0x18] sm:$0xff]
        %s1277 = scalar_lea.vmem [#allocation6], 4
        %v1278 = vld [vmem:[%s1277] sm:$0xf]
        %v1280 = vsel %vm1199, %v1278, 0
        %1282 = vmatprep.subr.mxu0 0.0
        %1283 = vmatpush1.msra.mxu0 %v1197
        %1284 = vmatprep.subr.mxu0 0.0
        %1285 = vmatpush1.msra.mxu0 0.0
        %1286 = vmatprep.subr.mxu0 0.0
        %1287 = vmatpush1.msra.mxu0 0.0
        %1288 = vmatprep.subr.mxu0 0.0
        %1289 = vmatpush1.msra.mxu0 0.0
        %1290 = vmatprep.subr.mxu0 0.0
        %1291 = vmatpush1.msra.mxu0 0.0
        %1292 = vmatprep.subr.mxu0 0.0
        %1293 = vmatpush1.msra.mxu0 0.0
        %1294 = vmatprep.subr.mxu0 0.0
        %1295 = vmatpush1.msra.mxu0 0.0
        %1296 = vmatprep.subr.mxu0 0.0
        %1297 = vmatpush1.msra.mxu0 0.0
        %1298 = vmatprep.subr.mxu0 0.0
        %1299 = vmatpush1.msra.mxu0 0.0
        %1300 = vmatprep.subr.mxu0 0.0
        %1301 = vmatpush1.msra.mxu0 0.0
        %1302 = vmatprep.subr.mxu0 0.0
        %1303 = vmatpush1.msra.mxu0 0.0
        %1304 = vmatprep.subr.mxu0 0.0
        %1305 = vmatpush1.msra.mxu0 0.0
        %1306 = vmatprep.subr.mxu0 0.0
        %1307 = vmatpush1.msra.mxu0 0.0
        %1308 = vmatprep.subr.mxu0 0.0
        %1309 = vmatpush1.msra.mxu0 0.0
        %1310 = vmatprep.subr.mxu0 0.0
        %1311 = vmatpush1.msra.mxu0 0.0
        %1312 = vmatprep.subr.mxu0 0.0
        %1313 = vmatpush1.msra.mxu0 0.0
        %1314 = vmatprep.subr.mxu0 0.0
        %1315 = vmatpush1.msra.mxu0 0.0
        %1316 = vmatprep.subr.mxu0 0.0
        %1317 = vmatpush1.msra.mxu0 0.0
        %1318 = vmatprep.subr.mxu0 0.0
        %1319 = vmatpush1.msra.mxu0 0.0
        %1320 = vmatprep.subr.mxu0 0.0
        %1321 = vmatpush1.msra.mxu0 0.0
        %1322 = vmatprep.subr.mxu0 0.0
        %1323 = vmatpush1.msra.mxu0 0.0
        %1324 = vmatprep.subr.mxu0 0.0
        %1325 = vmatpush1.msra.mxu0 0.0
        %1326 = vmatprep.subr.mxu0 0.0
        %1327 = vmatpush1.msra.mxu0 0.0
        %1328 = vmatprep.subr.mxu0 0.0
        %1329 = vmatpush1.msra.mxu0 0.0
        %1330 = vmatprep.subr.mxu0 0.0
        %1331 = vmatpush1.msra.mxu0 0.0
        %1332 = vmatprep.subr.mxu0 0.0
        %1333 = vmatpush1.msra.mxu0 0.0
        %1334 = vmatprep.subr.mxu0 0.0
        %1335 = vmatpush1.msra.mxu0 0.0
        %1336 = vmatprep.subr.mxu0 0.0
        %1337 = vmatpush1.msra.mxu0 0.0
        %1338 = vmatprep.subr.mxu0 0.0
        %1339 = vmatpush1.msra.mxu0 0.0
        %1340 = vmatprep.subr.mxu0 0.0
        %1341 = vmatpush1.msra.mxu0 0.0
        %1342 = vmatprep.subr.mxu0 0.0
        %1343 = vmatpush1.msra.mxu0 0.0
        %1344 = vmatprep.subr.mxu0 0.0
        %1345 = vmatpush1.msra.mxu0 0.0
        %1346 = vmatprep.mubr.f32.mxu0 0.0
        %1347 = vmatmul.mubr.f32.gmra.mrb[0].mxu0 %v1280
        %v1348 = vpop.f32.mrb[0].mxu0
        %v1349 = vadd.f32 0.0, %v1348
        %v1350 = vpop.f32.mrb[0].mxu0
        %1351 = vdwg.mxu0
        %s1352 = scalar_lea.vmem [#allocation7], 32
        %v1353 = vld [vmem:[%s1352] sm:$0xff]
        %v1354 = vld [vmem:[%s1352 + $0x8] sm:$0xff]
        %v1355 = vld [vmem:[%s1352 + $0x10] sm:$0xff]
        %v1356 = vld [vmem:[%s1352 + $0x18] sm:$0xff]
        %vm1357 = vcmask 261120
        %v1359 = vsel %vm1357, %v1349, 0
        %1361 = vmatprep.subr.mxu0 0.0
        %1362 = vmatpush1.msra.mxu0 %v1353
        %1363 = vmatprep.subr.mxu0 0.0
        %1364 = vmatpush1.msra.mxu0 %v1354
        %1365 = vmatprep.subr.mxu0 0.0
        %1366 = vmatpush1.msra.mxu0 %v1355
        %1367 = vmatprep.subr.mxu0 0.0
        %1368 = vmatpush1.msra.mxu0 %v1356
        %1369 = vmatprep.subr.mxu0 0.0
        %1370 = vmatpush1.msra.mxu0 0.0
        %1371 = vmatprep.subr.mxu0 0.0
        %1372 = vmatpush1.msra.mxu0 0.0
        %1373 = vmatprep.subr.mxu0 0.0
        %1374 = vmatpush1.msra.mxu0 0.0
        %1375 = vmatprep.subr.mxu0 0.0
        %1376 = vmatpush1.msra.mxu0 0.0
        %1377 = vmatprep.subr.mxu0 0.0
        %1378 = vmatpush1.msra.mxu0 0.0
        %1379 = vmatprep.subr.mxu0 0.0
        %1380 = vmatpush1.msra.mxu0 0.0
        %1381 = vmatprep.subr.mxu0 0.0
        %1382 = vmatpush1.msra.mxu0 0.0
        %1383 = vmatprep.subr.mxu0 0.0
        %1384 = vmatpush1.msra.mxu0 0.0
        %1385 = vmatprep.subr.mxu0 0.0
        %1386 = vmatpush1.msra.mxu0 0.0
        %1387 = vmatprep.subr.mxu0 0.0
        %1388 = vmatpush1.msra.mxu0 0.0
        %1389 = vmatprep.subr.mxu0 0.0
        %1390 = vmatpush1.msra.mxu0 0.0
        %1391 = vmatprep.subr.mxu0 0.0
        %1392 = vmatpush1.msra.mxu0 0.0
        %1393 = vmatprep.subr.mxu0 0.0
        %1394 = vmatpush1.msra.mxu0 0.0
        %1395 = vmatprep.subr.mxu0 0.0
        %1396 = vmatpush1.msra.mxu0 0.0
        %1397 = vmatprep.subr.mxu0 0.0
        %1398 = vmatpush1.msra.mxu0 0.0
        %1399 = vmatprep.subr.mxu0 0.0
        %1400 = vmatpush1.msra.mxu0 0.0
        %1401 = vmatprep.subr.mxu0 0.0
        %1402 = vmatpush1.msra.mxu0 0.0
        %1403 = vmatprep.subr.mxu0 0.0
        %1404 = vmatpush1.msra.mxu0 0.0
        %1405 = vmatprep.subr.mxu0 0.0
        %1406 = vmatpush1.msra.mxu0 0.0
        %1407 = vmatprep.subr.mxu0 0.0
        %1408 = vmatpush1.msra.mxu0 0.0
        %1409 = vmatprep.subr.mxu0 0.0
        %1410 = vmatpush1.msra.mxu0 0.0
        %1411 = vmatprep.subr.mxu0 0.0
        %1412 = vmatpush1.msra.mxu0 0.0
        %1413 = vmatprep.subr.mxu0 0.0
        %1414 = vmatpush1.msra.mxu0 0.0
        %1415 = vmatprep.subr.mxu0 0.0
        %1416 = vmatpush1.msra.mxu0 0.0
        %1417 = vmatprep.subr.mxu0 0.0
        %1418 = vmatpush1.msra.mxu0 0.0
        %1419 = vmatprep.subr.mxu0 0.0
        %1420 = vmatpush1.msra.mxu0 0.0
        %1421 = vmatprep.subr.mxu0 0.0
        %1422 = vmatpush1.msra.mxu0 0.0
        %1423 = vmatprep.subr.mxu0 0.0
        %1424 = vmatpush1.msra.mxu0 0.0
        %1425 = vmatprep.mubr.f32.mxu0 0.0
        %1426 = vmatmul.mubr.f32.gmra.mrb[0].mxu0 %v1359
        %v1427 = vpop.f32.mrb[0].mxu0
        %v1428 = vadd.f32 0.0, %v1427
        %v1429 = vpop.f32.mrb[0].mxu0
        %1430 = vdwg.mxu0
        %v1432 = vsel %vm1357, %v1270, 0
        %1434 = vmatprep.subr.mxu0 0.0
        %1435 = vmatpush1.msra.mxu0 %v1273
        %1436 = vmatprep.subr.mxu0 0.0
        %1437 = vmatpush1.msra.mxu0 %v1274
        %1438 = vmatprep.subr.mxu0 0.0
        %1439 = vmatpush1.msra.mxu0 %v1275
        %1440 = vmatprep.subr.mxu0 0.0
        %1441 = vmatpush1.msra.mxu0 %v1276
        %1442 = vmatprep.subr.mxu0 0.0
        %1443 = vmatpush1.msra.mxu0 0.0
        %1444 = vmatprep.subr.mxu0 0.0
        %1445 = vmatpush1.msra.mxu0 0.0
        %1446 = vmatprep.subr.mxu0 0.0
        %1447 = vmatpush1.msra.mxu0 0.0
        %1448 = vmatprep.subr.mxu0 0.0
        %1449 = vmatpush1.msra.mxu0 0.0
        %1450 = vmatprep.subr.mxu0 0.0
        %1451 = vmatpush1.msra.mxu0 0.0
        %1452 = vmatprep.subr.mxu0 0.0
        %1453 = vmatpush1.msra.mxu0 0.0
        %1454 = vmatprep.subr.mxu0 0.0
        %1455 = vmatpush1.msra.mxu0 0.0
        %1456 = vmatprep.subr.mxu0 0.0
        %1457 = vmatpush1.msra.mxu0 0.0
        %1458 = vmatprep.subr.mxu0 0.0
        %1459 = vmatpush1.msra.mxu0 0.0
        %1460 = vmatprep.subr.mxu0 0.0
        %1461 = vmatpush1.msra.mxu0 0.0
        %1462 = vmatprep.subr.mxu0 0.0
        %1463 = vmatpush1.msra.mxu0 0.0
        %1464 = vmatprep.subr.mxu0 0.0
        %1465 = vmatpush1.msra.mxu0 0.0
        %1466 = vmatprep.subr.mxu0 0.0
        %1467 = vmatpush1.msra.mxu0 0.0
        %1468 = vmatprep.subr.mxu0 0.0
        %1469 = vmatpush1.msra.mxu0 0.0
        %1470 = vmatprep.subr.mxu0 0.0
        %1471 = vmatpush1.msra.mxu0 0.0
        %1472 = vmatprep.subr.mxu0 0.0
        %1473 = vmatpush1.msra.mxu0 0.0
        %1474 = vmatprep.subr.mxu0 0.0
        %1475 = vmatpush1.msra.mxu0 0.0
        %1476 = vmatprep.subr.mxu0 0.0
        %1477 = vmatpush1.msra.mxu0 0.0
        %1478 = vmatprep.subr.mxu0 0.0
        %1479 = vmatpush1.msra.mxu0 0.0
        %1480 = vmatprep.subr.mxu0 0.0
        %1481 = vmatpush1.msra.mxu0 0.0
        %1482 = vmatprep.subr.mxu0 0.0
        %1483 = vmatpush1.msra.mxu0 0.0
        %1484 = vmatprep.subr.mxu0 0.0
        %1485 = vmatpush1.msra.mxu0 0.0
        %1486 = vmatprep.subr.mxu0 0.0
        %1487 = vmatpush1.msra.mxu0 0.0
        %1488 = vmatprep.subr.mxu0 0.0
        %1489 = vmatpush1.msra.mxu0 0.0
        %1490 = vmatprep.subr.mxu0 0.0
        %1491 = vmatpush1.msra.mxu0 0.0
        %1492 = vmatprep.subr.mxu0 0.0
        %1493 = vmatpush1.msra.mxu0 0.0
        %1494 = vmatprep.subr.mxu0 0.0
        %1495 = vmatpush1.msra.mxu0 0.0
        %1496 = vmatprep.subr.mxu0 0.0
        %1497 = vmatpush1.msra.mxu0 0.0
        %1498 = vmatprep.mubr.f32.mxu0 0.0
        %1499 = vmatmul.mubr.f32.gmra.mrb[0].mxu0 %v1432
        %v1500 = vpop.f32.mrb[0].mxu0
        %v1501 = vadd.f32 %v1428, %v1500
        %v1502 = vpop.f32.mrb[0].mxu0
        %1503 = vdwg.mxu0
        %s1504 = scalar_lea.vmem [#allocation6], 8
        %v1505 = vld [vmem:[%s1504] sm:$0xf]
        %v1507 = vsel %vm1199, %v1505, 0
        %1509 = vmatprep.subr.mxu0 0.0
        %1510 = vmatpush1.msra.mxu0 %v1197
        %1511 = vmatprep.subr.mxu0 0.0
        %1512 = vmatpush1.msra.mxu0 0.0
        %1513 = vmatprep.subr.mxu0 0.0
        %1514 = vmatpush1.msra.mxu0 0.0
        %1515 = vmatprep.subr.mxu0 0.0
        %1516 = vmatpush1.msra.mxu0 0.0
        %1517 = vmatprep.subr.mxu0 0.0
        %1518 = vmatpush1.msra.mxu0 0.0
        %1519 = vmatprep.subr.mxu0 0.0
        %1520 = vmatpush1.msra.mxu0 0.0
        %1521 = vmatprep.subr.mxu0 0.0
        %1522 = vmatpush1.msra.mxu0 0.0
        %1523 = vmatprep.subr.mxu0 0.0
        %1524 = vmatpush1.msra.mxu0 0.0
        %1525 = vmatprep.subr.mxu0 0.0
        %1526 = vmatpush1.msra.mxu0 0.0
        %1527 = vmatprep.subr.mxu0 0.0
        %1528 = vmatpush1.msra.mxu0 0.0
        %1529 = vmatprep.subr.mxu0 0.0
        %1530 = vmatpush1.msra.mxu0 0.0
        %1531 = vmatprep.subr.mxu0 0.0
        %1532 = vmatpush1.msra.mxu0 0.0
        %1533 = vmatprep.subr.mxu0 0.0
        %1534 = vmatpush1.msra.mxu0 0.0
        %1535 = vmatprep.subr.mxu0 0.0
        %1536 = vmatpush1.msra.mxu0 0.0
        %1537 = vmatprep.subr.mxu0 0.0
        %1538 = vmatpush1.msra.mxu0 0.0
        %1539 = vmatprep.subr.mxu0 0.0
        %1540 = vmatpush1.msra.mxu0 0.0
        %1541 = vmatprep.subr.mxu0 0.0
        %1542 = vmatpush1.msra.mxu0 0.0
        %1543 = vmatprep.subr.mxu0 0.0
        %1544 = vmatpush1.msra.mxu0 0.0
        %1545 = vmatprep.subr.mxu0 0.0
        %1546 = vmatpush1.msra.mxu0 0.0
        %1547 = vmatprep.subr.mxu0 0.0
        %1548 = vmatpush1.msra.mxu0 0.0
        %1549 = vmatprep.subr.mxu0 0.0
        %1550 = vmatpush1.msra.mxu0 0.0
        %1551 = vmatprep.subr.mxu0 0.0
        %1552 = vmatpush1.msra.mxu0 0.0
        %1553 = vmatprep.subr.mxu0 0.0
        %1554 = vmatpush1.msra.mxu0 0.0
        %1555 = vmatprep.subr.mxu0 0.0
        %1556 = vmatpush1.msra.mxu0 0.0
        %1557 = vmatprep.subr.mxu0 0.0
        %1558 = vmatpush1.msra.mxu0 0.0
        %1559 = vmatprep.subr.mxu0 0.0
        %1560 = vmatpush1.msra.mxu0 0.0
        %1561 = vmatprep.subr.mxu0 0.0
        %1562 = vmatpush1.msra.mxu0 0.0
        %1563 = vmatprep.subr.mxu0 0.0
        %1564 = vmatpush1.msra.mxu0 0.0
        %1565 = vmatprep.subr.mxu0 0.0
        %1566 = vmatpush1.msra.mxu0 0.0
        %1567 = vmatprep.subr.mxu0 0.0
        %1568 = vmatpush1.msra.mxu0 0.0
        %1569 = vmatprep.subr.mxu0 0.0
        %1570 = vmatpush1.msra.mxu0 0.0
        %1571 = vmatprep.subr.mxu0 0.0
        %1572 = vmatpush1.msra.mxu0 0.0
        %1573 = vmatprep.mubr.f32.mxu0 0.0
        %1574 = vmatmul.mubr.f32.gmra.mrb[0].mxu0 %v1507
        %v1575 = vpop.f32.mrb[0].mxu0
        %v1576 = vadd.f32 0.0, %v1575
        %v1577 = vpop.f32.mrb[0].mxu0
        %1578 = vdwg.mxu0
        %s1579 = scalar_lea.vmem [#allocation7], 64
        %v1580 = vld [vmem:[%s1579] sm:$0xff]
        %v1581 = vld [vmem:[%s1579 + $0x8] sm:$0xff]
        %v1582 = vld [vmem:[%s1579 + $0x10] sm:$0xff]
        %v1583 = vld [vmem:[%s1579 + $0x18] sm:$0xff]
        %v1585 = vsel %vm1357, %v1576, 0
        %1587 = vmatprep.subr.mxu0 0.0
        %1588 = vmatpush1.msra.mxu0 %v1580
        %1589 = vmatprep.subr.mxu0 0.0
        %1590 = vmatpush1.msra.mxu0 %v1581
        %1591 = vmatprep.subr.mxu0 0.0
        %1592 = vmatpush1.msra.mxu0 %v1582
        %1593 = vmatprep.subr.mxu0 0.0
        %1594 = vmatpush1.msra.mxu0 %v1583
        %1595 = vmatprep.subr.mxu0 0.0
        %1596 = vmatpush1.msra.mxu0 0.0
        %1597 = vmatprep.subr.mxu0 0.0
        %1598 = vmatpush1.msra.mxu0 0.0
        %1599 = vmatprep.subr.mxu0 0.0
        %1600 = vmatpush1.msra.mxu0 0.0
        %1601 = vmatprep.subr.mxu0 0.0
        %1602 = vmatpush1.msra.mxu0 0.0
        %1603 = vmatprep.subr.mxu0 0.0
        %1604 = vmatpush1.msra.mxu0 0.0
        %1605 = vmatprep.subr.mxu0 0.0
        %1606 = vmatpush1.msra.mxu0 0.0
        %1607 = vmatprep.subr.mxu0 0.0
        %1608 = vmatpush1.msra.mxu0 0.0
        %1609 = vmatprep.subr.mxu0 0.0
        %1610 = vmatpush1.msra.mxu0 0.0
        %1611 = vmatprep.subr.mxu0 0.0
        %1612 = vmatpush1.msra.mxu0 0.0
        %1613 = vmatprep.subr.mxu0 0.0
        %1614 = vmatpush1.msra.mxu0 0.0
        %1615 = vmatprep.subr.mxu0 0.0
        %1616 = vmatpush1.msra.mxu0 0.0
        %1617 = vmatprep.subr.mxu0 0.0
        %1618 = vmatpush1.msra.mxu0 0.0
        %1619 = vmatprep.subr.mxu0 0.0
        %1620 = vmatpush1.msra.mxu0 0.0
        %1621 = vmatprep.subr.mxu0 0.0
        %1622 = vmatpush1.msra.mxu0 0.0
        %1623 = vmatprep.subr.mxu0 0.0
        %1624 = vmatpush1.msra.mxu0 0.0
        %1625 = vmatprep.subr.mxu0 0.0
        %1626 = vmatpush1.msra.mxu0 0.0
        %1627 = vmatprep.subr.mxu0 0.0
        %1628 = vmatpush1.msra.mxu0 0.0
        %1629 = vmatprep.subr.mxu0 0.0
        %1630 = vmatpush1.msra.mxu0 0.0
        %1631 = vmatprep.subr.mxu0 0.0
        %1632 = vmatpush1.msra.mxu0 0.0
        %1633 = vmatprep.subr.mxu0 0.0
        %1634 = vmatpush1.msra.mxu0 0.0
        %1635 = vmatprep.subr.mxu0 0.0
        %1636 = vmatpush1.msra.mxu0 0.0
        %1637 = vmatprep.subr.mxu0 0.0
        %1638 = vmatpush1.msra.mxu0 0.0
        %1639 = vmatprep.subr.mxu0 0.0
        %1640 = vmatpush1.msra.mxu0 0.0
        %1641 = vmatprep.subr.mxu0 0.0
        %1642 = vmatpush1.msra.mxu0 0.0
        %1643 = vmatprep.subr.mxu0 0.0
        %1644 = vmatpush1.msra.mxu0 0.0
        %1645 = vmatprep.subr.mxu0 0.0
        %1646 = vmatpush1.msra.mxu0 0.0
        %1647 = vmatprep.subr.mxu0 0.0
        %1648 = vmatpush1.msra.mxu0 0.0
        %1649 = vmatprep.subr.mxu0 0.0
        %1650 = vmatpush1.msra.mxu0 0.0
        %1651 = vmatprep.mubr.f32.mxu0 0.0
        %1652 = vmatmul.mubr.f32.gmra.mrb[0].mxu0 %v1585
        %v1653 = vpop.f32.mrb[0].mxu0
        %v1654 = vadd.f32 0.0, %v1653
        %v1655 = vpop.f32.mrb[0].mxu0
        %1656 = vdwg.mxu0
        %v1657 = vadd.f32 %v1501, %v1654
        %v1658 = vld [vmem:[%s6] sm:$0x1]
        %v1660 = vlaneseq
        %v1661 = vshrl.u32 %v1660, 7
        %v1662 = vsub.s32 0, %v1661
        %v1663 = vrot.slane %v1658, %v1662
        %v1665 = vadd.f32 %v1657, %v1663
        %v1666 = vmax.f32 %v1665, 0.0
        %v1667 = vld [vmem:[#allocation9] sm:$0x3]
        %vm1668 = vcmask 31744
        %v1670 = vsel %vm1668, %v1667, 0
        %vm1672 = vcmask 1043456
        %v1674 = vsel %vm1672, %v1666, 0
        %1676 = vmatprep.subr.mxu0 0.0
        %1677 = vmatpush1.msra.mxu0 %v1674
        %1678 = vmatprep.subr.mxu0 0.0
        %1679 = vmatpush1.msra.mxu0 0.0
        %1680 = vmatprep.subr.mxu0 0.0
        %1681 = vmatpush1.msra.mxu0 0.0
        %1682 = vmatprep.subr.mxu0 0.0
        %1683 = vmatpush1.msra.mxu0 0.0
        %1684 = vmatprep.subr.mxu0 0.0
        %1685 = vmatpush1.msra.mxu0 0.0
        %1686 = vmatprep.subr.mxu0 0.0
        %1687 = vmatpush1.msra.mxu0 0.0
        %1688 = vmatprep.subr.mxu0 0.0
        %1689 = vmatpush1.msra.mxu0 0.0
        %1690 = vmatprep.subr.mxu0 0.0
        %1691 = vmatpush1.msra.mxu0 0.0
        %1692 = vmatprep.subr.mxu0 0.0
        %1693 = vmatpush1.msra.mxu0 0.0
        %1694 = vmatprep.subr.mxu0 0.0
        %1695 = vmatpush1.msra.mxu0 0.0
        %1696 = vmatprep.subr.mxu0 0.0
        %1697 = vmatpush1.msra.mxu0 0.0
        %1698 = vmatprep.subr.mxu0 0.0
        %1699 = vmatpush1.msra.mxu0 0.0
        %1700 = vmatprep.subr.mxu0 0.0
        %1701 = vmatpush1.msra.mxu0 0.0
        %1702 = vmatprep.subr.mxu0 0.0
        %1703 = vmatpush1.msra.mxu0 0.0
        %1704 = vmatprep.subr.mxu0 0.0
        %1705 = vmatpush1.msra.mxu0 0.0
        %1706 = vmatprep.subr.mxu0 0.0
        %1707 = vmatpush1.msra.mxu0 0.0
        %1708 = vmatprep.subr.mxu0 0.0
        %1709 = vmatpush1.msra.mxu0 0.0
        %1710 = vmatprep.subr.mxu0 0.0
        %1711 = vmatpush1.msra.mxu0 0.0
        %1712 = vmatprep.subr.mxu0 0.0
        %1713 = vmatpush1.msra.mxu0 0.0
        %1714 = vmatprep.subr.mxu0 0.0
        %1715 = vmatpush1.msra.mxu0 0.0
        %1716 = vmatprep.subr.mxu0 0.0
        %1717 = vmatpush1.msra.mxu0 0.0
        %1718 = vmatprep.subr.mxu0 0.0
        %1719 = vmatpush1.msra.mxu0 0.0
        %1720 = vmatprep.subr.mxu0 0.0
        %1721 = vmatpush1.msra.mxu0 0.0
        %1722 = vmatprep.subr.mxu0 0.0
        %1723 = vmatpush1.msra.mxu0 0.0
        %1724 = vmatprep.subr.mxu0 0.0
        %1725 = vmatpush1.msra.mxu0 0.0
        %1726 = vmatprep.subr.mxu0 0.0
        %1727 = vmatpush1.msra.mxu0 0.0
        %1728 = vmatprep.subr.mxu0 0.0
        %1729 = vmatpush1.msra.mxu0 0.0
        %1730 = vmatprep.subr.mxu0 0.0
        %1731 = vmatpush1.msra.mxu0 0.0
        %1732 = vmatprep.subr.mxu0 0.0
        %1733 = vmatpush1.msra.mxu0 0.0
        %1734 = vmatprep.subr.mxu0 0.0
        %1735 = vmatpush1.msra.mxu0 0.0
        %1736 = vmatprep.subr.mxu0 0.0
        %1737 = vmatpush1.msra.mxu0 0.0
        %1738 = vmatprep.subr.mxu0 0.0
        %1739 = vmatpush1.msra.mxu0 0.0
        %1740 = vmatprep.mubr.f32.mxu0 0.0
        %1741 = vmatmul.mubr.f32.gmra.mrb[0].mxu0 %v1670
        %v1742 = vpop.f32.mrb[0].mxu0
        %v1743 = vadd.f32 0.0, %v1742
        %v1744 = vpop.f32.mrb[0].mxu0
        %1745 = vdwg.mxu0
        %v1746 = vld [vmem:[#allocation10] sm:$0xff]
        %v1747 = vld [vmem:[#allocation10 + $0x8] sm:$0xff]
        %v1748 = vld [vmem:[#allocation10 + $0x10] sm:$0xff]
        %v1749 = vld [vmem:[#allocation10 + $0x18] sm:$0xff]
        %s1750 = scalar_lea.vmem [#allocation9], 2
        %v1751 = vld [vmem:[%s1750] sm:$0x3]
        %v1753 = vsel %vm1668, %v1751, 0
        %1755 = vmatprep.subr.mxu0 0.0
        %1756 = vmatpush1.msra.mxu0 %v1674
        %1757 = vmatprep.subr.mxu0 0.0
        %1758 = vmatpush1.msra.mxu0 0.0
        %1759 = vmatprep.subr.mxu0 0.0
        %1760 = vmatpush1.msra.mxu0 0.0
        %1761 = vmatprep.subr.mxu0 0.0
        %1762 = vmatpush1.msra.mxu0 0.0
        %1763 = vmatprep.subr.mxu0 0.0
        %1764 = vmatpush1.msra.mxu0 0.0
        %1765 = vmatprep.subr.mxu0 0.0
        %1766 = vmatpush1.msra.mxu0 0.0
        %1767 = vmatprep.subr.mxu0 0.0
        %1768 = vmatpush1.msra.mxu0 0.0
        %1769 = vmatprep.subr.mxu0 0.0
        %1770 = vmatpush1.msra.mxu0 0.0
        %1771 = vmatprep.subr.mxu0 0.0
        %1772 = vmatpush1.msra.mxu0 0.0
        %1773 = vmatprep.subr.mxu0 0.0
        %1774 = vmatpush1.msra.mxu0 0.0
        %1775 = vmatprep.subr.mxu0 0.0
        %1776 = vmatpush1.msra.mxu0 0.0
        %1777 = vmatprep.subr.mxu0 0.0
        %1778 = vmatpush1.msra.mxu0 0.0
        %1779 = vmatprep.subr.mxu0 0.0
        %1780 = vmatpush1.msra.mxu0 0.0
        %1781 = vmatprep.subr.mxu0 0.0
        %1782 = vmatpush1.msra.mxu0 0.0
        %1783 = vmatprep.subr.mxu0 0.0
        %1784 = vmatpush1.msra.mxu0 0.0
        %1785 = vmatprep.subr.mxu0 0.0
        %1786 = vmatpush1.msra.mxu0 0.0
        %1787 = vmatprep.subr.mxu0 0.0
        %1788 = vmatpush1.msra.mxu0 0.0
        %1789 = vmatprep.subr.mxu0 0.0
        %1790 = vmatpush1.msra.mxu0 0.0
        %1791 = vmatprep.subr.mxu0 0.0
        %1792 = vmatpush1.msra.mxu0 0.0
        %1793 = vmatprep.subr.mxu0 0.0
        %1794 = vmatpush1.msra.mxu0 0.0
        %1795 = vmatprep.subr.mxu0 0.0
        %1796 = vmatpush1.msra.mxu0 0.0
        %1797 = vmatprep.subr.mxu0 0.0
        %1798 = vmatpush1.msra.mxu0 0.0
        %1799 = vmatprep.subr.mxu0 0.0
        %1800 = vmatpush1.msra.mxu0 0.0
        %1801 = vmatprep.subr.mxu0 0.0
        %1802 = vmatpush1.msra.mxu0 0.0
        %1803 = vmatprep.subr.mxu0 0.0
        %1804 = vmatpush1.msra.mxu0 0.0
        %1805 = vmatprep.subr.mxu0 0.0
        %1806 = vmatpush1.msra.mxu0 0.0
        %1807 = vmatprep.subr.mxu0 0.0
        %1808 = vmatpush1.msra.mxu0 0.0
        %1809 = vmatprep.subr.mxu0 0.0
        %1810 = vmatpush1.msra.mxu0 0.0
        %1811 = vmatprep.subr.mxu0 0.0
        %1812 = vmatpush1.msra.mxu0 0.0
        %1813 = vmatprep.subr.mxu0 0.0
        %1814 = vmatpush1.msra.mxu0 0.0
        %1815 = vmatprep.subr.mxu0 0.0
        %1816 = vmatpush1.msra.mxu0 0.0
        %1817 = vmatprep.subr.mxu0 0.0
        %1818 = vmatpush1.msra.mxu0 0.0
        %1819 = vmatprep.mubr.f32.mxu0 0.0
        %1820 = vmatmul.mubr.f32.gmra.mrb[0].mxu0 %v1753
        %v1821 = vpop.f32.mrb[0].mxu0
        %v1822 = vadd.f32 0.0, %v1821
        %v1823 = vpop.f32.mrb[0].mxu0
        %1824 = vdwg.mxu0
        %s1825 = scalar_lea.vmem [#allocation10], 32
        %v1826 = vld [vmem:[%s1825] sm:$0xff]
        %v1827 = vld [vmem:[%s1825 + $0x8] sm:$0xff]
        %v1828 = vld [vmem:[%s1825 + $0x10] sm:$0xff]
        %v1829 = vld [vmem:[%s1825 + $0x18] sm:$0xff]
        %v1831 = vsel %vm1357, %v1822, 0
        %1833 = vmatprep.subr.mxu0 0.0
        %1834 = vmatpush1.msra.mxu0 %v1826
        %1835 = vmatprep.subr.mxu0 0.0
        %1836 = vmatpush1.msra.mxu0 %v1827
        %1837 = vmatprep.subr.mxu0 0.0
        %1838 = vmatpush1.msra.mxu0 %v1828
        %1839 = vmatprep.subr.mxu0 0.0
        %1840 = vmatpush1.msra.mxu0 %v1829
        %1841 = vmatprep.subr.mxu0 0.0
        %1842 = vmatpush1.msra.mxu0 0.0
        %1843 = vmatprep.subr.mxu0 0.0
        %1844 = vmatpush1.msra.mxu0 0.0
        %1845 = vmatprep.subr.mxu0 0.0
        %1846 = vmatpush1.msra.mxu0 0.0
        %1847 = vmatprep.subr.mxu0 0.0
        %1848 = vmatpush1.msra.mxu0 0.0
        %1849 = vmatprep.subr.mxu0 0.0
        %1850 = vmatpush1.msra.mxu0 0.0
        %1851 = vmatprep.subr.mxu0 0.0
        %1852 = vmatpush1.msra.mxu0 0.0
        %1853 = vmatprep.subr.mxu0 0.0
        %1854 = vmatpush1.msra.mxu0 0.0
        %1855 = vmatprep.subr.mxu0 0.0
        %1856 = vmatpush1.msra.mxu0 0.0
        %1857 = vmatprep.subr.mxu0 0.0
        %1858 = vmatpush1.msra.mxu0 0.0
        %1859 = vmatprep.subr.mxu0 0.0
        %1860 = vmatpush1.msra.mxu0 0.0
        %1861 = vmatprep.subr.mxu0 0.0
        %1862 = vmatpush1.msra.mxu0 0.0
        %1863 = vmatprep.subr.mxu0 0.0
        %1864 = vmatpush1.msra.mxu0 0.0
        %1865 = vmatprep.subr.mxu0 0.0
        %1866 = vmatpush1.msra.mxu0 0.0
        %1867 = vmatprep.subr.mxu0 0.0
        %1868 = vmatpush1.msra.mxu0 0.0
        %1869 = vmatprep.subr.mxu0 0.0
        %1870 = vmatpush1.msra.mxu0 0.0
        %1871 = vmatprep.subr.mxu0 0.0
        %1872 = vmatpush1.msra.mxu0 0.0
        %1873 = vmatprep.subr.mxu0 0.0
        %1874 = vmatpush1.msra.mxu0 0.0
        %1875 = vmatprep.subr.mxu0 0.0
        %1876 = vmatpush1.msra.mxu0 0.0
        %1877 = vmatprep.subr.mxu0 0.0
        %1878 = vmatpush1.msra.mxu0 0.0
        %1879 = vmatprep.subr.mxu0 0.0
        %1880 = vmatpush1.msra.mxu0 0.0
        %1881 = vmatprep.subr.mxu0 0.0
        %1882 = vmatpush1.msra.mxu0 0.0
        %1883 = vmatprep.subr.mxu0 0.0
        %1884 = vmatpush1.msra.mxu0 0.0
        %1885 = vmatprep.subr.mxu0 0.0
        %1886 = vmatpush1.msra.mxu0 0.0
        %1887 = vmatprep.subr.mxu0 0.0
        %1888 = vmatpush1.msra.mxu0 0.0
        %1889 = vmatprep.subr.mxu0 0.0
        %1890 = vmatpush1.msra.mxu0 0.0
        %1891 = vmatprep.subr.mxu0 0.0
        %1892 = vmatpush1.msra.mxu0 0.0
        %1893 = vmatprep.subr.mxu0 0.0
        %1894 = vmatpush1.msra.mxu0 0.0
        %1895 = vmatprep.subr.mxu0 0.0
        %1896 = vmatpush1.msra.mxu0 0.0
        %1897 = vmatprep.mubr.f32.mxu0 0.0
        %1898 = vmatmul.mubr.f32.gmra.mrb[0].mxu0 %v1831
        %v1899 = vpop.f32.mrb[0].mxu0
        %v1900 = vadd.f32 0.0, %v1899
        %v1901 = vpop.f32.mrb[0].mxu0
        %1902 = vdwg.mxu0
        %v1904 = vsel %vm1357, %v1743, 0
        %1906 = vmatprep.subr.mxu0 0.0
        %1907 = vmatpush1.msra.mxu0 %v1746
        %1908 = vmatprep.subr.mxu0 0.0
        %1909 = vmatpush1.msra.mxu0 %v1747
        %1910 = vmatprep.subr.mxu0 0.0
        %1911 = vmatpush1.msra.mxu0 %v1748
        %1912 = vmatprep.subr.mxu0 0.0
        %1913 = vmatpush1.msra.mxu0 %v1749
        %1914 = vmatprep.subr.mxu0 0.0
        %1915 = vmatpush1.msra.mxu0 0.0
        %1916 = vmatprep.subr.mxu0 0.0
        %1917 = vmatpush1.msra.mxu0 0.0
        %1918 = vmatprep.subr.mxu0 0.0
        %1919 = vmatpush1.msra.mxu0 0.0
        %1920 = vmatprep.subr.mxu0 0.0
        %1921 = vmatpush1.msra.mxu0 0.0
        %1922 = vmatprep.subr.mxu0 0.0
        %1923 = vmatpush1.msra.mxu0 0.0
        %1924 = vmatprep.subr.mxu0 0.0
        %1925 = vmatpush1.msra.mxu0 0.0
        %1926 = vmatprep.subr.mxu0 0.0
        %1927 = vmatpush1.msra.mxu0 0.0
        %1928 = vmatprep.subr.mxu0 0.0
        %1929 = vmatpush1.msra.mxu0 0.0
        %1930 = vmatprep.subr.mxu0 0.0
        %1931 = vmatpush1.msra.mxu0 0.0
        %1932 = vmatprep.subr.mxu0 0.0
        %1933 = vmatpush1.msra.mxu0 0.0
        %1934 = vmatprep.subr.mxu0 0.0
        %1935 = vmatpush1.msra.mxu0 0.0
        %1936 = vmatprep.subr.mxu0 0.0
        %1937 = vmatpush1.msra.mxu0 0.0
        %1938 = vmatprep.subr.mxu0 0.0
        %1939 = vmatpush1.msra.mxu0 0.0
        %1940 = vmatprep.subr.mxu0 0.0
        %1941 = vmatpush1.msra.mxu0 0.0
        %1942 = vmatprep.subr.mxu0 0.0
        %1943 = vmatpush1.msra.mxu0 0.0
        %1944 = vmatprep.subr.mxu0 0.0
        %1945 = vmatpush1.msra.mxu0 0.0
        %1946 = vmatprep.subr.mxu0 0.0
        %1947 = vmatpush1.msra.mxu0 0.0
        %1948 = vmatprep.subr.mxu0 0.0
        %1949 = vmatpush1.msra.mxu0 0.0
        %1950 = vmatprep.subr.mxu0 0.0
        %1951 = vmatpush1.msra.mxu0 0.0
        %1952 = vmatprep.subr.mxu0 0.0
        %1953 = vmatpush1.msra.mxu0 0.0
        %1954 = vmatprep.subr.mxu0 0.0
        %1955 = vmatpush1.msra.mxu0 0.0
        %1956 = vmatprep.subr.mxu0 0.0
        %1957 = vmatpush1.msra.mxu0 0.0
        %1958 = vmatprep.subr.mxu0 0.0
        %1959 = vmatpush1.msra.mxu0 0.0
        %1960 = vmatprep.subr.mxu0 0.0
        %1961 = vmatpush1.msra.mxu0 0.0
        %1962 = vmatprep.subr.mxu0 0.0
        %1963 = vmatpush1.msra.mxu0 0.0
        %1964 = vmatprep.subr.mxu0 0.0
        %1965 = vmatpush1.msra.mxu0 0.0
        %1966 = vmatprep.subr.mxu0 0.0
        %1967 = vmatpush1.msra.mxu0 0.0
        %1968 = vmatprep.subr.mxu0 0.0
        %1969 = vmatpush1.msra.mxu0 0.0
        %1970 = vmatprep.mubr.f32.mxu0 0.0
        %1971 = vmatmul.mubr.f32.gmra.mrb[0].mxu0 %v1904
        %v1972 = vpop.f32.mrb[0].mxu0
        %v1973 = vadd.f32 %v1900, %v1972
        %v1974 = vpop.f32.mrb[0].mxu0
        %1975 = vdwg.mxu0
        %s1976 = scalar_lea.vmem [#allocation9], 4
        %v1977 = vld [vmem:[%s1976] sm:$0x3]
        %v1979 = vsel %vm1668, %v1977, 0
        %1981 = vmatprep.subr.mxu0 0.0
        %1982 = vmatpush1.msra.mxu0 %v1674
        %1983 = vmatprep.subr.mxu0 0.0
        %1984 = vmatpush1.msra.mxu0 0.0
        %1985 = vmatprep.subr.mxu0 0.0
        %1986 = vmatpush1.msra.mxu0 0.0
        %1987 = vmatprep.subr.mxu0 0.0
        %1988 = vmatpush1.msra.mxu0 0.0
        %1989 = vmatprep.subr.mxu0 0.0
        %1990 = vmatpush1.msra.mxu0 0.0
        %1991 = vmatprep.subr.mxu0 0.0
        %1992 = vmatpush1.msra.mxu0 0.0
        %1993 = vmatprep.subr.mxu0 0.0
        %1994 = vmatpush1.msra.mxu0 0.0
        %1995 = vmatprep.subr.mxu0 0.0
        %1996 = vmatpush1.msra.mxu0 0.0
        %1997 = vmatprep.subr.mxu0 0.0
        %1998 = vmatpush1.msra.mxu0 0.0
        %1999 = vmatprep.subr.mxu0 0.0
        %2000 = vmatpush1.msra.mxu0 0.0
        %2001 = vmatprep.subr.mxu0 0.0
        %2002 = vmatpush1.msra.mxu0 0.0
        %2003 = vmatprep.subr.mxu0 0.0
        %2004 = vmatpush1.msra.mxu0 0.0
        %2005 = vmatprep.subr.mxu0 0.0
        %2006 = vmatpush1.msra.mxu0 0.0
        %2007 = vmatprep.subr.mxu0 0.0
        %2008 = vmatpush1.msra.mxu0 0.0
        %2009 = vmatprep.subr.mxu0 0.0
        %2010 = vmatpush1.msra.mxu0 0.0
        %2011 = vmatprep.subr.mxu0 0.0
        %2012 = vmatpush1.msra.mxu0 0.0
        %2013 = vmatprep.subr.mxu0 0.0
        %2014 = vmatpush1.msra.mxu0 0.0
        %2015 = vmatprep.subr.mxu0 0.0
        %2016 = vmatpush1.msra.mxu0 0.0
        %2017 = vmatprep.subr.mxu0 0.0
        %2018 = vmatpush1.msra.mxu0 0.0
        %2019 = vmatprep.subr.mxu0 0.0
        %2020 = vmatpush1.msra.mxu0 0.0
        %2021 = vmatprep.subr.mxu0 0.0
        %2022 = vmatpush1.msra.mxu0 0.0
        %2023 = vmatprep.subr.mxu0 0.0
        %2024 = vmatpush1.msra.mxu0 0.0
        %2025 = vmatprep.subr.mxu0 0.0
        %2026 = vmatpush1.msra.mxu0 0.0
        %2027 = vmatprep.subr.mxu0 0.0
        %2028 = vmatpush1.msra.mxu0 0.0
        %2029 = vmatprep.subr.mxu0 0.0
        %2030 = vmatpush1.msra.mxu0 0.0
        %2031 = vmatprep.subr.mxu0 0.0
        %2032 = vmatpush1.msra.mxu0 0.0
        %2033 = vmatprep.subr.mxu0 0.0
        %2034 = vmatpush1.msra.mxu0 0.0
        %2035 = vmatprep.subr.mxu0 0.0
        %2036 = vmatpush1.msra.mxu0 0.0
        %2037 = vmatprep.subr.mxu0 0.0
        %2038 = vmatpush1.msra.mxu0 0.0
        %2039 = vmatprep.subr.mxu0 0.0
        %2040 = vmatpush1.msra.mxu0 0.0
        %2041 = vmatprep.subr.mxu0 0.0
        %2042 = vmatpush1.msra.mxu0 0.0
        %2043 = vmatprep.subr.mxu0 0.0
        %2044 = vmatpush1.msra.mxu0 0.0
        %2045 = vmatprep.mubr.f32.mxu0 0.0
        %2046 = vmatmul.mubr.f32.gmra.mrb[0].mxu0 %v1979
        %v2047 = vpop.f32.mrb[0].mxu0
        %v2048 = vadd.f32 0.0, %v2047
        %v2049 = vpop.f32.mrb[0].mxu0
        %2050 = vdwg.mxu0
        %s2051 = scalar_lea.vmem [#allocation10], 64
        %v2052 = vld [vmem:[%s2051] sm:$0xff]
        %v2053 = vld [vmem:[%s2051 + $0x8] sm:$0xff]
        %v2054 = vld [vmem:[%s2051 + $0x10] sm:$0xff]
        %v2055 = vld [vmem:[%s2051 + $0x18] sm:$0xff]
        %v2057 = vsel %vm1357, %v2048, 0
        %2059 = vmatprep.subr.mxu0 0.0
        %2060 = vmatpush1.msra.mxu0 %v2052
        %2061 = vmatprep.subr.mxu0 0.0
        %2062 = vmatpush1.msra.mxu0 %v2053
        %2063 = vmatprep.subr.mxu0 0.0
        %2064 = vmatpush1.msra.mxu0 %v2054
        %2065 = vmatprep.subr.mxu0 0.0
        %2066 = vmatpush1.msra.mxu0 %v2055
        %2067 = vmatprep.subr.mxu0 0.0
        %2068 = vmatpush1.msra.mxu0 0.0
        %2069 = vmatprep.subr.mxu0 0.0
        %2070 = vmatpush1.msra.mxu0 0.0
        %2071 = vmatprep.subr.mxu0 0.0
        %2072 = vmatpush1.msra.mxu0 0.0
        %2073 = vmatprep.subr.mxu0 0.0
        %2074 = vmatpush1.msra.mxu0 0.0
        %2075 = vmatprep.subr.mxu0 0.0
        %2076 = vmatpush1.msra.mxu0 0.0
        %2077 = vmatprep.subr.mxu0 0.0
        %2078 = vmatpush1.msra.mxu0 0.0
        %2079 = vmatprep.subr.mxu0 0.0
        %2080 = vmatpush1.msra.mxu0 0.0
        %2081 = vmatprep.subr.mxu0 0.0
        %2082 = vmatpush1.msra.mxu0 0.0
        %2083 = vmatprep.subr.mxu0 0.0
        %2084 = vmatpush1.msra.mxu0 0.0
        %2085 = vmatprep.subr.mxu0 0.0
        %2086 = vmatpush1.msra.mxu0 0.0
        %2087 = vmatprep.subr.mxu0 0.0
        %2088 = vmatpush1.msra.mxu0 0.0
        %2089 = vmatprep.subr.mxu0 0.0
        %2090 = vmatpush1.msra.mxu0 0.0
        %2091 = vmatprep.subr.mxu0 0.0
        %2092 = vmatpush1.msra.mxu0 0.0
        %2093 = vmatprep.subr.mxu0 0.0
        %2094 = vmatpush1.msra.mxu0 0.0
        %2095 = vmatprep.subr.mxu0 0.0
        %2096 = vmatpush1.msra.mxu0 0.0
        %2097 = vmatprep.subr.mxu0 0.0
        %2098 = vmatpush1.msra.mxu0 0.0
        %2099 = vmatprep.subr.mxu0 0.0
        %2100 = vmatpush1.msra.mxu0 0.0
        %2101 = vmatprep.subr.mxu0 0.0
        %2102 = vmatpush1.msra.mxu0 0.0
        %2103 = vmatprep.subr.mxu0 0.0
        %2104 = vmatpush1.msra.mxu0 0.0
        %2105 = vmatprep.subr.mxu0 0.0
        %2106 = vmatpush1.msra.mxu0 0.0
        %2107 = vmatprep.subr.mxu0 0.0
        %2108 = vmatpush1.msra.mxu0 0.0
        %2109 = vmatprep.subr.mxu0 0.0
        %2110 = vmatpush1.msra.mxu0 0.0
        %2111 = vmatprep.subr.mxu0 0.0
        %2112 = vmatpush1.msra.mxu0 0.0
        %2113 = vmatprep.subr.mxu0 0.0
        %2114 = vmatpush1.msra.mxu0 0.0
        %2115 = vmatprep.subr.mxu0 0.0
        %2116 = vmatpush1.msra.mxu0 0.0
        %2117 = vmatprep.subr.mxu0 0.0
        %2118 = vmatpush1.msra.mxu0 0.0
        %2119 = vmatprep.subr.mxu0 0.0
        %2120 = vmatpush1.msra.mxu0 0.0
        %2121 = vmatprep.subr.mxu0 0.0
        %2122 = vmatpush1.msra.mxu0 0.0
        %2123 = vmatprep.mubr.f32.mxu0 0.0
        %2124 = vmatmul.mubr.f32.gmra.mrb[0].mxu0 %v2057
        %v2125 = vpop.f32.mrb[0].mxu0
        %v2126 = vadd.f32 0.0, %v2125
        %v2127 = vpop.f32.mrb[0].mxu0
        %2128 = vdwg.mxu0
        %v2129 = vadd.f32 %v1973, %v2126
        %v2130 = vld [vmem:[%s9] sm:$0x1]
        %v2132 = vlaneseq
        %v2133 = vshrl.u32 %v2132, 7
        %v2134 = vsub.s32 0, %v2133
        %v2135 = vrot.slane %v2130, %v2134
        %v2137 = vadd.f32 %v2129, %v2135
        %v2138 = vmax.f32 %v2137, 0.0
        %v2139 = vld [vmem:[#allocation12] sm:$0xf]
        %vm2140 = vcmask 15360
        %v2142 = vsel %vm2140, %v2139, 0
        %vm2144 = vcmask 1041408
        %v2146 = vsel %vm2144, %v2138, 0
        %2148 = vmatprep.subr.mxu0 0.0
        %2149 = vmatpush1.msra.mxu0 %v2146
        %2150 = vmatprep.subr.mxu0 0.0
        %2151 = vmatpush1.msra.mxu0 0.0
        %2152 = vmatprep.subr.mxu0 0.0
        %2153 = vmatpush1.msra.mxu0 0.0
        %2154 = vmatprep.subr.mxu0 0.0
        %2155 = vmatpush1.msra.mxu0 0.0
        %2156 = vmatprep.subr.mxu0 0.0
        %2157 = vmatpush1.msra.mxu0 0.0
        %2158 = vmatprep.subr.mxu0 0.0
        %2159 = vmatpush1.msra.mxu0 0.0
        %2160 = vmatprep.subr.mxu0 0.0
        %2161 = vmatpush1.msra.mxu0 0.0
        %2162 = vmatprep.subr.mxu0 0.0
        %2163 = vmatpush1.msra.mxu0 0.0
        %2164 = vmatprep.subr.mxu0 0.0
        %2165 = vmatpush1.msra.mxu0 0.0
        %2166 = vmatprep.subr.mxu0 0.0
        %2167 = vmatpush1.msra.mxu0 0.0
        %2168 = vmatprep.subr.mxu0 0.0
        %2169 = vmatpush1.msra.mxu0 0.0
        %2170 = vmatprep.subr.mxu0 0.0
        %2171 = vmatpush1.msra.mxu0 0.0
        %2172 = vmatprep.subr.mxu0 0.0
        %2173 = vmatpush1.msra.mxu0 0.0
        %2174 = vmatprep.subr.mxu0 0.0
        %2175 = vmatpush1.msra.mxu0 0.0
        %2176 = vmatprep.subr.mxu0 0.0
        %2177 = vmatpush1.msra.mxu0 0.0
        %2178 = vmatprep.subr.mxu0 0.0
        %2179 = vmatpush1.msra.mxu0 0.0
        %2180 = vmatprep.subr.mxu0 0.0
        %2181 = vmatpush1.msra.mxu0 0.0
        %2182 = vmatprep.subr.mxu0 0.0
        %2183 = vmatpush1.msra.mxu0 0.0
        %2184 = vmatprep.subr.mxu0 0.0
        %2185 = vmatpush1.msra.mxu0 0.0
        %2186 = vmatprep.subr.mxu0 0.0
        %2187 = vmatpush1.msra.mxu0 0.0
        %2188 = vmatprep.subr.mxu0 0.0
        %2189 = vmatpush1.msra.mxu0 0.0
        %2190 = vmatprep.subr.mxu0 0.0
        %2191 = vmatpush1.msra.mxu0 0.0
        %2192 = vmatprep.subr.mxu0 0.0
        %2193 = vmatpush1.msra.mxu0 0.0
        %2194 = vmatprep.subr.mxu0 0.0
        %2195 = vmatpush1.msra.mxu0 0.0
        %2196 = vmatprep.subr.mxu0 0.0
        %2197 = vmatpush1.msra.mxu0 0.0
        %2198 = vmatprep.subr.mxu0 0.0
        %2199 = vmatpush1.msra.mxu0 0.0
        %2200 = vmatprep.subr.mxu0 0.0
        %2201 = vmatpush1.msra.mxu0 0.0
        %2202 = vmatprep.subr.mxu0 0.0
        %2203 = vmatpush1.msra.mxu0 0.0
        %2204 = vmatprep.subr.mxu0 0.0
        %2205 = vmatpush1.msra.mxu0 0.0
        %2206 = vmatprep.subr.mxu0 0.0
        %2207 = vmatpush1.msra.mxu0 0.0
        %2208 = vmatprep.subr.mxu0 0.0
        %2209 = vmatpush1.msra.mxu0 0.0
        %2210 = vmatprep.subr.mxu0 0.0
        %2211 = vmatpush1.msra.mxu0 0.0
        %2212 = vmatprep.mubr.f32.mxu0 0.0
        %2213 = vmatmul.mubr.f32.gmra.mrb[0].mxu0 %v2142
        %v2214 = vpop.f32.mrb[0].mxu0
        %v2215 = vadd.f32 0.0, %v2214
        %v2216 = vpop.f32.mrb[0].mxu0
        %2217 = vdwg.mxu0
        %v2218 = vld [vmem:[%s11] sm:$0xff]
        %v2219 = vld [vmem:[%s11 + $0x8] sm:$0xff]
        %v2220 = vld [vmem:[%s11 + $0x10] sm:$0xff]
        %v2221 = vld [vmem:[%s11 + $0x18] sm:$0xff]
        %s2222 = scalar_lea.vmem [#allocation12], 4
        %v2223 = vld [vmem:[%s2222] sm:$0xf]
        %v2225 = vsel %vm2140, %v2223, 0
        %2227 = vmatprep.subr.mxu0 0.0
        %2228 = vmatpush1.msra.mxu0 %v2146
        %2229 = vmatprep.subr.mxu0 0.0
        %2230 = vmatpush1.msra.mxu0 0.0
        %2231 = vmatprep.subr.mxu0 0.0
        %2232 = vmatpush1.msra.mxu0 0.0
        %2233 = vmatprep.subr.mxu0 0.0
        %2234 = vmatpush1.msra.mxu0 0.0
        %2235 = vmatprep.subr.mxu0 0.0
        %2236 = vmatpush1.msra.mxu0 0.0
        %2237 = vmatprep.subr.mxu0 0.0
        %2238 = vmatpush1.msra.mxu0 0.0
        %2239 = vmatprep.subr.mxu0 0.0
        %2240 = vmatpush1.msra.mxu0 0.0
        %2241 = vmatprep.subr.mxu0 0.0
        %2242 = vmatpush1.msra.mxu0 0.0
        %2243 = vmatprep.subr.mxu0 0.0
        %2244 = vmatpush1.msra.mxu0 0.0
        %2245 = vmatprep.subr.mxu0 0.0
        %2246 = vmatpush1.msra.mxu0 0.0
        %2247 = vmatprep.subr.mxu0 0.0
        %2248 = vmatpush1.msra.mxu0 0.0
        %2249 = vmatprep.subr.mxu0 0.0
        %2250 = vmatpush1.msra.mxu0 0.0
        %2251 = vmatprep.subr.mxu0 0.0
        %2252 = vmatpush1.msra.mxu0 0.0
        %2253 = vmatprep.subr.mxu0 0.0
        %2254 = vmatpush1.msra.mxu0 0.0
        %2255 = vmatprep.subr.mxu0 0.0
        %2256 = vmatpush1.msra.mxu0 0.0
        %2257 = vmatprep.subr.mxu0 0.0
        %2258 = vmatpush1.msra.mxu0 0.0
        %2259 = vmatprep.subr.mxu0 0.0
        %2260 = vmatpush1.msra.mxu0 0.0
        %2261 = vmatprep.subr.mxu0 0.0
        %2262 = vmatpush1.msra.mxu0 0.0
        %2263 = vmatprep.subr.mxu0 0.0
        %2264 = vmatpush1.msra.mxu0 0.0
        %2265 = vmatprep.subr.mxu0 0.0
        %2266 = vmatpush1.msra.mxu0 0.0
        %2267 = vmatprep.subr.mxu0 0.0
        %2268 = vmatpush1.msra.mxu0 0.0
        %2269 = vmatprep.subr.mxu0 0.0
        %2270 = vmatpush1.msra.mxu0 0.0
        %2271 = vmatprep.subr.mxu0 0.0
        %2272 = vmatpush1.msra.mxu0 0.0
        %2273 = vmatprep.subr.mxu0 0.0
        %2274 = vmatpush1.msra.mxu0 0.0
        %2275 = vmatprep.subr.mxu0 0.0
        %2276 = vmatpush1.msra.mxu0 0.0
        %2277 = vmatprep.subr.mxu0 0.0
        %2278 = vmatpush1.msra.mxu0 0.0
        %2279 = vmatprep.subr.mxu0 0.0
        %2280 = vmatpush1.msra.mxu0 0.0
        %2281 = vmatprep.subr.mxu0 0.0
        %2282 = vmatpush1.msra.mxu0 0.0
        %2283 = vmatprep.subr.mxu0 0.0
        %2284 = vmatpush1.msra.mxu0 0.0
        %2285 = vmatprep.subr.mxu0 0.0
        %2286 = vmatpush1.msra.mxu0 0.0
        %2287 = vmatprep.subr.mxu0 0.0
        %2288 = vmatpush1.msra.mxu0 0.0
        %2289 = vmatprep.subr.mxu0 0.0
        %2290 = vmatpush1.msra.mxu0 0.0
        %2291 = vmatprep.mubr.f32.mxu0 0.0
        %2292 = vmatmul.mubr.f32.gmra.mrb[0].mxu0 %v2225
        %v2293 = vpop.f32.mrb[0].mxu0
        %v2294 = vadd.f32 0.0, %v2293
        %v2295 = vpop.f32.mrb[0].mxu0
        %2296 = vdwg.mxu0
        %s2297 = scalar_lea.vmem %s11, 32
        %v2298 = vld [vmem:[%s2297] sm:$0xff]
        %v2299 = vld [vmem:[%s2297 + $0x8] sm:$0xff]
        %v2300 = vld [vmem:[%s2297 + $0x10] sm:$0xff]
        %v2301 = vld [vmem:[%s2297 + $0x18] sm:$0xff]
        %v2303 = vsel %vm1357, %v2294, 0
        %2305 = vmatprep.subr.mxu0 0.0
        %2306 = vmatpush1.msra.mxu0 %v2298
        %2307 = vmatprep.subr.mxu0 0.0
        %2308 = vmatpush1.msra.mxu0 %v2299
        %2309 = vmatprep.subr.mxu0 0.0
        %2310 = vmatpush1.msra.mxu0 %v2300
        %2311 = vmatprep.subr.mxu0 0.0
        %2312 = vmatpush1.msra.mxu0 %v2301
        %2313 = vmatprep.subr.mxu0 0.0
        %2314 = vmatpush1.msra.mxu0 0.0
        %2315 = vmatprep.subr.mxu0 0.0
        %2316 = vmatpush1.msra.mxu0 0.0
        %2317 = vmatprep.subr.mxu0 0.0
        %2318 = vmatpush1.msra.mxu0 0.0
        %2319 = vmatprep.subr.mxu0 0.0
        %2320 = vmatpush1.msra.mxu0 0.0
        %2321 = vmatprep.subr.mxu0 0.0
        %2322 = vmatpush1.msra.mxu0 0.0
        %2323 = vmatprep.subr.mxu0 0.0
        %2324 = vmatpush1.msra.mxu0 0.0
        %2325 = vmatprep.subr.mxu0 0.0
        %2326 = vmatpush1.msra.mxu0 0.0
        %2327 = vmatprep.subr.mxu0 0.0
        %2328 = vmatpush1.msra.mxu0 0.0
        %2329 = vmatprep.subr.mxu0 0.0
        %2330 = vmatpush1.msra.mxu0 0.0
        %2331 = vmatprep.subr.mxu0 0.0
        %2332 = vmatpush1.msra.mxu0 0.0
        %2333 = vmatprep.subr.mxu0 0.0
        %2334 = vmatpush1.msra.mxu0 0.0
        %2335 = vmatprep.subr.mxu0 0.0
        %2336 = vmatpush1.msra.mxu0 0.0
        %2337 = vmatprep.subr.mxu0 0.0
        %2338 = vmatpush1.msra.mxu0 0.0
        %2339 = vmatprep.subr.mxu0 0.0
        %2340 = vmatpush1.msra.mxu0 0.0
        %2341 = vmatprep.subr.mxu0 0.0
        %2342 = vmatpush1.msra.mxu0 0.0
        %2343 = vmatprep.subr.mxu0 0.0
        %2344 = vmatpush1.msra.mxu0 0.0
        %2345 = vmatprep.subr.mxu0 0.0
        %2346 = vmatpush1.msra.mxu0 0.0
        %2347 = vmatprep.subr.mxu0 0.0
        %2348 = vmatpush1.msra.mxu0 0.0
        %2349 = vmatprep.subr.mxu0 0.0
        %2350 = vmatpush1.msra.mxu0 0.0
        %2351 = vmatprep.subr.mxu0 0.0
        %2352 = vmatpush1.msra.mxu0 0.0
        %2353 = vmatprep.subr.mxu0 0.0
        %2354 = vmatpush1.msra.mxu0 0.0
        %2355 = vmatprep.subr.mxu0 0.0
        %2356 = vmatpush1.msra.mxu0 0.0
        %2357 = vmatprep.subr.mxu0 0.0
        %2358 = vmatpush1.msra.mxu0 0.0
        %2359 = vmatprep.subr.mxu0 0.0
        %2360 = vmatpush1.msra.mxu0 0.0
        %2361 = vmatprep.subr.mxu0 0.0
        %2362 = vmatpush1.msra.mxu0 0.0
        %2363 = vmatprep.subr.mxu0 0.0
        %2364 = vmatpush1.msra.mxu0 0.0
        %2365 = vmatprep.subr.mxu0 0.0
        %2366 = vmatpush1.msra.mxu0 0.0
        %2367 = vmatprep.subr.mxu0 0.0
        %2368 = vmatpush1.msra.mxu0 0.0
        %2369 = vmatprep.mubr.f32.mxu0 0.0
        %2370 = vmatmul.mubr.f32.gmra.mrb[0].mxu0 %v2303
        %v2371 = vpop.f32.mrb[0].mxu0
        %v2372 = vadd.f32 0.0, %v2371
        %v2373 = vpop.f32.mrb[0].mxu0
        %2374 = vdwg.mxu0
        %v2376 = vsel %vm1357, %v2215, 0
        %2378 = vmatprep.subr.mxu0 0.0
        %2379 = vmatpush1.msra.mxu0 %v2218
        %2380 = vmatprep.subr.mxu0 0.0
        %2381 = vmatpush1.msra.mxu0 %v2219
        %2382 = vmatprep.subr.mxu0 0.0
        %2383 = vmatpush1.msra.mxu0 %v2220
        %2384 = vmatprep.subr.mxu0 0.0
        %2385 = vmatpush1.msra.mxu0 %v2221
        %2386 = vmatprep.subr.mxu0 0.0
        %2387 = vmatpush1.msra.mxu0 0.0
        %2388 = vmatprep.subr.mxu0 0.0
        %2389 = vmatpush1.msra.mxu0 0.0
        %2390 = vmatprep.subr.mxu0 0.0
        %2391 = vmatpush1.msra.mxu0 0.0
        %2392 = vmatprep.subr.mxu0 0.0
        %2393 = vmatpush1.msra.mxu0 0.0
        %2394 = vmatprep.subr.mxu0 0.0
        %2395 = vmatpush1.msra.mxu0 0.0
        %2396 = vmatprep.subr.mxu0 0.0
        %2397 = vmatpush1.msra.mxu0 0.0
        %2398 = vmatprep.subr.mxu0 0.0
        %2399 = vmatpush1.msra.mxu0 0.0
        %2400 = vmatprep.subr.mxu0 0.0
        %2401 = vmatpush1.msra.mxu0 0.0
        %2402 = vmatprep.subr.mxu0 0.0
        %2403 = vmatpush1.msra.mxu0 0.0
        %2404 = vmatprep.subr.mxu0 0.0
        %2405 = vmatpush1.msra.mxu0 0.0
        %2406 = vmatprep.subr.mxu0 0.0
        %2407 = vmatpush1.msra.mxu0 0.0
        %2408 = vmatprep.subr.mxu0 0.0
        %2409 = vmatpush1.msra.mxu0 0.0
        %2410 = vmatprep.subr.mxu0 0.0
        %2411 = vmatpush1.msra.mxu0 0.0
        %2412 = vmatprep.subr.mxu0 0.0
        %2413 = vmatpush1.msra.mxu0 0.0
        %2414 = vmatprep.subr.mxu0 0.0
        %2415 = vmatpush1.msra.mxu0 0.0
        %2416 = vmatprep.subr.mxu0 0.0
        %2417 = vmatpush1.msra.mxu0 0.0
        %2418 = vmatprep.subr.mxu0 0.0
        %2419 = vmatpush1.msra.mxu0 0.0
        %2420 = vmatprep.subr.mxu0 0.0
        %2421 = vmatpush1.msra.mxu0 0.0
        %2422 = vmatprep.subr.mxu0 0.0
        %2423 = vmatpush1.msra.mxu0 0.0
        %2424 = vmatprep.subr.mxu0 0.0
        %2425 = vmatpush1.msra.mxu0 0.0
        %2426 = vmatprep.subr.mxu0 0.0
        %2427 = vmatpush1.msra.mxu0 0.0
        %2428 = vmatprep.subr.mxu0 0.0
        %2429 = vmatpush1.msra.mxu0 0.0
        %2430 = vmatprep.subr.mxu0 0.0
        %2431 = vmatpush1.msra.mxu0 0.0
        %2432 = vmatprep.subr.mxu0 0.0
        %2433 = vmatpush1.msra.mxu0 0.0
        %2434 = vmatprep.subr.mxu0 0.0
        %2435 = vmatpush1.msra.mxu0 0.0
        %2436 = vmatprep.subr.mxu0 0.0
        %2437 = vmatpush1.msra.mxu0 0.0
        %2438 = vmatprep.subr.mxu0 0.0
        %2439 = vmatpush1.msra.mxu0 0.0
        %2440 = vmatprep.subr.mxu0 0.0
        %2441 = vmatpush1.msra.mxu0 0.0
        %2442 = vmatprep.mubr.f32.mxu0 0.0
        %2443 = vmatmul.mubr.f32.gmra.mrb[0].mxu0 %v2376
        %v2444 = vpop.f32.mrb[0].mxu0
        %v2445 = vadd.f32 %v2372, %v2444
        %v2446 = vpop.f32.mrb[0].mxu0
        %2447 = vdwg.mxu0
        %s2448 = scalar_lea.vmem [#allocation12], 8
        %v2449 = vld [vmem:[%s2448] sm:$0xf]
        %v2451 = vsel %vm2140, %v2449, 0
        %2453 = vmatprep.subr.mxu0 0.0
        %2454 = vmatpush1.msra.mxu0 %v2146
        %2455 = vmatprep.subr.mxu0 0.0
        %2456 = vmatpush1.msra.mxu0 0.0
        %2457 = vmatprep.subr.mxu0 0.0
        %2458 = vmatpush1.msra.mxu0 0.0
        %2459 = vmatprep.subr.mxu0 0.0
        %2460 = vmatpush1.msra.mxu0 0.0
        %2461 = vmatprep.subr.mxu0 0.0
        %2462 = vmatpush1.msra.mxu0 0.0
        %2463 = vmatprep.subr.mxu0 0.0
        %2464 = vmatpush1.msra.mxu0 0.0
        %2465 = vmatprep.subr.mxu0 0.0
        %2466 = vmatpush1.msra.mxu0 0.0
        %2467 = vmatprep.subr.mxu0 0.0
        %2468 = vmatpush1.msra.mxu0 0.0
        %2469 = vmatprep.subr.mxu0 0.0
        %2470 = vmatpush1.msra.mxu0 0.0
        %2471 = vmatprep.subr.mxu0 0.0
        %2472 = vmatpush1.msra.mxu0 0.0
        %2473 = vmatprep.subr.mxu0 0.0
        %2474 = vmatpush1.msra.mxu0 0.0
        %2475 = vmatprep.subr.mxu0 0.0
        %2476 = vmatpush1.msra.mxu0 0.0
        %2477 = vmatprep.subr.mxu0 0.0
        %2478 = vmatpush1.msra.mxu0 0.0
        %2479 = vmatprep.subr.mxu0 0.0
        %2480 = vmatpush1.msra.mxu0 0.0
        %2481 = vmatprep.subr.mxu0 0.0
        %2482 = vmatpush1.msra.mxu0 0.0
        %2483 = vmatprep.subr.mxu0 0.0
        %2484 = vmatpush1.msra.mxu0 0.0
        %2485 = vmatprep.subr.mxu0 0.0
        %2486 = vmatpush1.msra.mxu0 0.0
        %2487 = vmatprep.subr.mxu0 0.0
        %2488 = vmatpush1.msra.mxu0 0.0
        %2489 = vmatprep.subr.mxu0 0.0
        %2490 = vmatpush1.msra.mxu0 0.0
        %2491 = vmatprep.subr.mxu0 0.0
        %2492 = vmatpush1.msra.mxu0 0.0
        %2493 = vmatprep.subr.mxu0 0.0
        %2494 = vmatpush1.msra.mxu0 0.0
        %2495 = vmatprep.subr.mxu0 0.0
        %2496 = vmatpush1.msra.mxu0 0.0
        %2497 = vmatprep.subr.mxu0 0.0
        %2498 = vmatpush1.msra.mxu0 0.0
        %2499 = vmatprep.subr.mxu0 0.0
        %2500 = vmatpush1.msra.mxu0 0.0
        %2501 = vmatprep.subr.mxu0 0.0
        %2502 = vmatpush1.msra.mxu0 0.0
        %2503 = vmatprep.subr.mxu0 0.0
        %2504 = vmatpush1.msra.mxu0 0.0
        %2505 = vmatprep.subr.mxu0 0.0
        %2506 = vmatpush1.msra.mxu0 0.0
        %2507 = vmatprep.subr.mxu0 0.0
        %2508 = vmatpush1.msra.mxu0 0.0
        %2509 = vmatprep.subr.mxu0 0.0
        %2510 = vmatpush1.msra.mxu0 0.0
        %2511 = vmatprep.subr.mxu0 0.0
        %2512 = vmatpush1.msra.mxu0 0.0
        %2513 = vmatprep.subr.mxu0 0.0
        %2514 = vmatpush1.msra.mxu0 0.0
        %2515 = vmatprep.subr.mxu0 0.0
        %2516 = vmatpush1.msra.mxu0 0.0
        %2517 = vmatprep.mubr.f32.mxu0 0.0
        %2518 = vmatmul.mubr.f32.gmra.mrb[0].mxu0 %v2451
        %v2519 = vpop.f32.mrb[0].mxu0
        %v2520 = vadd.f32 0.0, %v2519
        %v2521 = vpop.f32.mrb[0].mxu0
        %2522 = vdwg.mxu0
        %s2523 = scalar_lea.vmem %s11, 64
        %v2524 = vld [vmem:[%s2523] sm:$0xff]
        %v2525 = vld [vmem:[%s2523 + $0x8] sm:$0xff]
        %v2526 = vld [vmem:[%s2523 + $0x10] sm:$0xff]
        %v2527 = vld [vmem:[%s2523 + $0x18] sm:$0xff]
        %v2529 = vsel %vm1357, %v2520, 0
        %2531 = vmatprep.subr.mxu0 0.0
        %2532 = vmatpush1.msra.mxu0 %v2524
        %2533 = vmatprep.subr.mxu0 0.0
        %2534 = vmatpush1.msra.mxu0 %v2525
        %2535 = vmatprep.subr.mxu0 0.0
        %2536 = vmatpush1.msra.mxu0 %v2526
        %2537 = vmatprep.subr.mxu0 0.0
        %2538 = vmatpush1.msra.mxu0 %v2527
        %2539 = vmatprep.subr.mxu0 0.0
        %2540 = vmatpush1.msra.mxu0 0.0
        %2541 = vmatprep.subr.mxu0 0.0
        %2542 = vmatpush1.msra.mxu0 0.0
        %2543 = vmatprep.subr.mxu0 0.0
        %2544 = vmatpush1.msra.mxu0 0.0
        %2545 = vmatprep.subr.mxu0 0.0
        %2546 = vmatpush1.msra.mxu0 0.0
        %2547 = vmatprep.subr.mxu0 0.0
        %2548 = vmatpush1.msra.mxu0 0.0
        %2549 = vmatprep.subr.mxu0 0.0
        %2550 = vmatpush1.msra.mxu0 0.0
        %2551 = vmatprep.subr.mxu0 0.0
        %2552 = vmatpush1.msra.mxu0 0.0
        %2553 = vmatprep.subr.mxu0 0.0
        %2554 = vmatpush1.msra.mxu0 0.0
        %2555 = vmatprep.subr.mxu0 0.0
        %2556 = vmatpush1.msra.mxu0 0.0
        %2557 = vmatprep.subr.mxu0 0.0
        %2558 = vmatpush1.msra.mxu0 0.0
        %2559 = vmatprep.subr.mxu0 0.0
        %2560 = vmatpush1.msra.mxu0 0.0
        %2561 = vmatprep.subr.mxu0 0.0
        %2562 = vmatpush1.msra.mxu0 0.0
        %2563 = vmatprep.subr.mxu0 0.0
        %2564 = vmatpush1.msra.mxu0 0.0
        %2565 = vmatprep.subr.mxu0 0.0
        %2566 = vmatpush1.msra.mxu0 0.0
        %2567 = vmatprep.subr.mxu0 0.0
        %2568 = vmatpush1.msra.mxu0 0.0
        %2569 = vmatprep.subr.mxu0 0.0
        %2570 = vmatpush1.msra.mxu0 0.0
        %2571 = vmatprep.subr.mxu0 0.0
        %2572 = vmatpush1.msra.mxu0 0.0
        %2573 = vmatprep.subr.mxu0 0.0
        %2574 = vmatpush1.msra.mxu0 0.0
        %2575 = vmatprep.subr.mxu0 0.0
        %2576 = vmatpush1.msra.mxu0 0.0
        %2577 = vmatprep.subr.mxu0 0.0
        %2578 = vmatpush1.msra.mxu0 0.0
        %2579 = vmatprep.subr.mxu0 0.0
        %2580 = vmatpush1.msra.mxu0 0.0
        %2581 = vmatprep.subr.mxu0 0.0
        %2582 = vmatpush1.msra.mxu0 0.0
        %2583 = vmatprep.subr.mxu0 0.0
        %2584 = vmatpush1.msra.mxu0 0.0
        %2585 = vmatprep.subr.mxu0 0.0
        %2586 = vmatpush1.msra.mxu0 0.0
        %2587 = vmatprep.subr.mxu0 0.0
        %2588 = vmatpush1.msra.mxu0 0.0
        %2589 = vmatprep.subr.mxu0 0.0
        %2590 = vmatpush1.msra.mxu0 0.0
        %2591 = vmatprep.subr.mxu0 0.0
        %2592 = vmatpush1.msra.mxu0 0.0
        %2593 = vmatprep.subr.mxu0 0.0
        %2594 = vmatpush1.msra.mxu0 0.0
        %2595 = vmatprep.mubr.f32.mxu0 0.0
        %2596 = vmatmul.mubr.f32.gmra.mrb[0].mxu0 %v2529
        %v2597 = vpop.f32.mrb[0].mxu0
        %v2598 = vadd.f32 0.0, %v2597
        %v2599 = vpop.f32.mrb[0].mxu0
        %2600 = vdwg.mxu0
        %v2601 = vadd.f32 %v2445, %v2598
        %v2602 = vld [vmem:[%s12] sm:$0x1]
        %v2604 = vlaneseq
        %v2605 = vshrl.u32 %v2604, 7
        %v2606 = vsub.s32 0, %v2605
        %v2607 = vrot.slane %v2602, %v2606
        %v2609 = vadd.f32 %v2601, %v2607
        %v2610 = vmax.f32 %v2609, 0.0
        %v2611 = vld [vmem:[%s13] sm:$0xff]
        %v2613 = vsel %vm1668, %v2611, 0
        %v2616 = vsel %vm1672, %v2610, 0
        %2618 = vmatprep.subr.mxu0 0.0
        %2619 = vmatpush1.msra.mxu0 %v2616
        %2620 = vmatprep.subr.mxu0 0.0
        %2621 = vmatpush1.msra.mxu0 0.0
        %2622 = vmatprep.subr.mxu0 0.0
        %2623 = vmatpush1.msra.mxu0 0.0
        %2624 = vmatprep.subr.mxu0 0.0
        %2625 = vmatpush1.msra.mxu0 0.0
        %2626 = vmatprep.subr.mxu0 0.0
        %2627 = vmatpush1.msra.mxu0 0.0
        %2628 = vmatprep.subr.mxu0 0.0
        %2629 = vmatpush1.msra.mxu0 0.0
        %2630 = vmatprep.subr.mxu0 0.0
        %2631 = vmatpush1.msra.mxu0 0.0
        %2632 = vmatprep.subr.mxu0 0.0
        %2633 = vmatpush1.msra.mxu0 0.0
        %2634 = vmatprep.subr.mxu0 0.0
        %2635 = vmatpush1.msra.mxu0 0.0
        %2636 = vmatprep.subr.mxu0 0.0
        %2637 = vmatpush1.msra.mxu0 0.0
        %2638 = vmatprep.subr.mxu0 0.0
        %2639 = vmatpush1.msra.mxu0 0.0
        %2640 = vmatprep.subr.mxu0 0.0
        %2641 = vmatpush1.msra.mxu0 0.0
        %2642 = vmatprep.subr.mxu0 0.0
        %2643 = vmatpush1.msra.mxu0 0.0
        %2644 = vmatprep.subr.mxu0 0.0
        %2645 = vmatpush1.msra.mxu0 0.0
        %2646 = vmatprep.subr.mxu0 0.0
        %2647 = vmatpush1.msra.mxu0 0.0
        %2648 = vmatprep.subr.mxu0 0.0
        %2649 = vmatpush1.msra.mxu0 0.0
        %2650 = vmatprep.subr.mxu0 0.0
        %2651 = vmatpush1.msra.mxu0 0.0
        %2652 = vmatprep.subr.mxu0 0.0
        %2653 = vmatpush1.msra.mxu0 0.0
        %2654 = vmatprep.subr.mxu0 0.0
        %2655 = vmatpush1.msra.mxu0 0.0
        %2656 = vmatprep.subr.mxu0 0.0
        %2657 = vmatpush1.msra.mxu0 0.0
        %2658 = vmatprep.subr.mxu0 0.0
        %2659 = vmatpush1.msra.mxu0 0.0
        %2660 = vmatprep.subr.mxu0 0.0
        %2661 = vmatpush1.msra.mxu0 0.0
        %2662 = vmatprep.subr.mxu0 0.0
        %2663 = vmatpush1.msra.mxu0 0.0
        %2664 = vmatprep.subr.mxu0 0.0
        %2665 = vmatpush1.msra.mxu0 0.0
        %2666 = vmatprep.subr.mxu0 0.0
        %2667 = vmatpush1.msra.mxu0 0.0
        %2668 = vmatprep.subr.mxu0 0.0
        %2669 = vmatpush1.msra.mxu0 0.0
        %2670 = vmatprep.subr.mxu0 0.0
        %2671 = vmatpush1.msra.mxu0 0.0
        %2672 = vmatprep.subr.mxu0 0.0
        %2673 = vmatpush1.msra.mxu0 0.0
        %2674 = vmatprep.subr.mxu0 0.0
        %2675 = vmatpush1.msra.mxu0 0.0
        %2676 = vmatprep.subr.mxu0 0.0
        %2677 = vmatpush1.msra.mxu0 0.0
        %2678 = vmatprep.subr.mxu0 0.0
        %2679 = vmatpush1.msra.mxu0 0.0
        %2680 = vmatprep.subr.mxu0 0.0
        %2681 = vmatpush1.msra.mxu0 0.0
        %2682 = vmatprep.mubr.f32.mxu0 0.0
        %2683 = vmatmul.mubr.f32.gmra.mrb[0].mxu0 %v2613
        %v2684 = vpop.f32.mrb[0].mxu0
        %v2685 = vadd.f32 0.0, %v2684
        %v2686 = vpop.f32.mrb[0].mxu0
        %2687 = vdwg.mxu0
        %v2688 = vld [vmem:[%s14] sm:$0xff]
        %v2689 = vld [vmem:[%s14 + $0x8] sm:$0xff]
        %v2690 = vld [vmem:[%s14 + $0x10] sm:$0xff]
        %v2691 = vld [vmem:[%s14 + $0x18] sm:$0xff]
        %s2692 = scalar_lea.vmem %s13, 8
        %v2693 = vld [vmem:[%s2692] sm:$0xff]
        %v2695 = vsel %vm1668, %v2693, 0
        %2697 = vmatprep.subr.mxu0 0.0
        %2698 = vmatpush1.msra.mxu0 %v2616
        %2699 = vmatprep.subr.mxu0 0.0
        %2700 = vmatpush1.msra.mxu0 0.0
        %2701 = vmatprep.subr.mxu0 0.0
        %2702 = vmatpush1.msra.mxu0 0.0
        %2703 = vmatprep.subr.mxu0 0.0
        %2704 = vmatpush1.msra.mxu0 0.0
        %2705 = vmatprep.subr.mxu0 0.0
        %2706 = vmatpush1.msra.mxu0 0.0
        %2707 = vmatprep.subr.mxu0 0.0
        %2708 = vmatpush1.msra.mxu0 0.0
        %2709 = vmatprep.subr.mxu0 0.0
        %2710 = vmatpush1.msra.mxu0 0.0
        %2711 = vmatprep.subr.mxu0 0.0
        %2712 = vmatpush1.msra.mxu0 0.0
        %2713 = vmatprep.subr.mxu0 0.0
        %2714 = vmatpush1.msra.mxu0 0.0
        %2715 = vmatprep.subr.mxu0 0.0
        %2716 = vmatpush1.msra.mxu0 0.0
        %2717 = vmatprep.subr.mxu0 0.0
        %2718 = vmatpush1.msra.mxu0 0.0
        %2719 = vmatprep.subr.mxu0 0.0
        %2720 = vmatpush1.msra.mxu0 0.0
        %2721 = vmatprep.subr.mxu0 0.0
        %2722 = vmatpush1.msra.mxu0 0.0
        %2723 = vmatprep.subr.mxu0 0.0
        %2724 = vmatpush1.msra.mxu0 0.0
        %2725 = vmatprep.subr.mxu0 0.0
        %2726 = vmatpush1.msra.mxu0 0.0
        %2727 = vmatprep.subr.mxu0 0.0
        %2728 = vmatpush1.msra.mxu0 0.0
        %2729 = vmatprep.subr.mxu0 0.0
        %2730 = vmatpush1.msra.mxu0 0.0
        %2731 = vmatprep.subr.mxu0 0.0
        %2732 = vmatpush1.msra.mxu0 0.0
        %2733 = vmatprep.subr.mxu0 0.0
        %2734 = vmatpush1.msra.mxu0 0.0
        %2735 = vmatprep.subr.mxu0 0.0
        %2736 = vmatpush1.msra.mxu0 0.0
        %2737 = vmatprep.subr.mxu0 0.0
        %2738 = vmatpush1.msra.mxu0 0.0
        %2739 = vmatprep.subr.mxu0 0.0
        %2740 = vmatpush1.msra.mxu0 0.0
        %2741 = vmatprep.subr.mxu0 0.0
        %2742 = vmatpush1.msra.mxu0 0.0
        %2743 = vmatprep.subr.mxu0 0.0
        %2744 = vmatpush1.msra.mxu0 0.0
        %2745 = vmatprep.subr.mxu0 0.0
        %2746 = vmatpush1.msra.mxu0 0.0
        %2747 = vmatprep.subr.mxu0 0.0
        %2748 = vmatpush1.msra.mxu0 0.0
        %2749 = vmatprep.subr.mxu0 0.0
        %2750 = vmatpush1.msra.mxu0 0.0
        %2751 = vmatprep.subr.mxu0 0.0
        %2752 = vmatpush1.msra.mxu0 0.0
        %2753 = vmatprep.subr.mxu0 0.0
        %2754 = vmatpush1.msra.mxu0 0.0
        %2755 = vmatprep.subr.mxu0 0.0
        %2756 = vmatpush1.msra.mxu0 0.0
        %2757 = vmatprep.subr.mxu0 0.0
        %2758 = vmatpush1.msra.mxu0 0.0
        %2759 = vmatprep.subr.mxu0 0.0
        %2760 = vmatpush1.msra.mxu0 0.0
        %2761 = vmatprep.mubr.f32.mxu0 0.0
        %2762 = vmatmul.mubr.f32.gmra.mrb[0].mxu0 %v2695
        %v2763 = vpop.f32.mrb[0].mxu0
        %v2764 = vadd.f32 0.0, %v2763
        %v2765 = vpop.f32.mrb[0].mxu0
        %2766 = vdwg.mxu0
        %s2767 = scalar_lea.vmem %s14, 32
        %v2768 = vld [vmem:[%s2767] sm:$0xff]
        %v2769 = vld [vmem:[%s2767 + $0x8] sm:$0xff]
        %v2770 = vld [vmem:[%s2767 + $0x10] sm:$0xff]
        %v2771 = vld [vmem:[%s2767 + $0x18] sm:$0xff]
        %v2773 = vsel %vm1357, %v2764, 0
        %2775 = vmatprep.subr.mxu0 0.0
        %2776 = vmatpush1.msra.mxu0 %v2768
        %2777 = vmatprep.subr.mxu0 0.0
        %2778 = vmatpush1.msra.mxu0 %v2769
        %2779 = vmatprep.subr.mxu0 0.0
        %2780 = vmatpush1.msra.mxu0 %v2770
        %2781 = vmatprep.subr.mxu0 0.0
        %2782 = vmatpush1.msra.mxu0 %v2771
        %2783 = vmatprep.subr.mxu0 0.0
        %2784 = vmatpush1.msra.mxu0 0.0
        %2785 = vmatprep.subr.mxu0 0.0
        %2786 = vmatpush1.msra.mxu0 0.0
        %2787 = vmatprep.subr.mxu0 0.0
        %2788 = vmatpush1.msra.mxu0 0.0
        %2789 = vmatprep.subr.mxu0 0.0
        %2790 = vmatpush1.msra.mxu0 0.0
        %2791 = vmatprep.subr.mxu0 0.0
        %2792 = vmatpush1.msra.mxu0 0.0
        %2793 = vmatprep.subr.mxu0 0.0
        %2794 = vmatpush1.msra.mxu0 0.0
        %2795 = vmatprep.subr.mxu0 0.0
        %2796 = vmatpush1.msra.mxu0 0.0
        %2797 = vmatprep.subr.mxu0 0.0
        %2798 = vmatpush1.msra.mxu0 0.0
        %2799 = vmatprep.subr.mxu0 0.0
        %2800 = vmatpush1.msra.mxu0 0.0
        %2801 = vmatprep.subr.mxu0 0.0
        %2802 = vmatpush1.msra.mxu0 0.0
        %2803 = vmatprep.subr.mxu0 0.0
        %2804 = vmatpush1.msra.mxu0 0.0
        %2805 = vmatprep.subr.mxu0 0.0
        %2806 = vmatpush1.msra.mxu0 0.0
        %2807 = vmatprep.subr.mxu0 0.0
        %2808 = vmatpush1.msra.mxu0 0.0
        %2809 = vmatprep.subr.mxu0 0.0
        %2810 = vmatpush1.msra.mxu0 0.0
        %2811 = vmatprep.subr.mxu0 0.0
        %2812 = vmatpush1.msra.mxu0 0.0
        %2813 = vmatprep.subr.mxu0 0.0
        %2814 = vmatpush1.msra.mxu0 0.0
        %2815 = vmatprep.subr.mxu0 0.0
        %2816 = vmatpush1.msra.mxu0 0.0
        %2817 = vmatprep.subr.mxu0 0.0
        %2818 = vmatpush1.msra.mxu0 0.0
        %2819 = vmatprep.subr.mxu0 0.0
        %2820 = vmatpush1.msra.mxu0 0.0
        %2821 = vmatprep.subr.mxu0 0.0
        %2822 = vmatpush1.msra.mxu0 0.0
        %2823 = vmatprep.subr.mxu0 0.0
        %2824 = vmatpush1.msra.mxu0 0.0
        %2825 = vmatprep.subr.mxu0 0.0
        %2826 = vmatpush1.msra.mxu0 0.0
        %2827 = vmatprep.subr.mxu0 0.0
        %2828 = vmatpush1.msra.mxu0 0.0
        %2829 = vmatprep.subr.mxu0 0.0
        %2830 = vmatpush1.msra.mxu0 0.0
        %2831 = vmatprep.subr.mxu0 0.0
        %2832 = vmatpush1.msra.mxu0 0.0
        %2833 = vmatprep.subr.mxu0 0.0
        %2834 = vmatpush1.msra.mxu0 0.0
        %2835 = vmatprep.subr.mxu0 0.0
        %2836 = vmatpush1.msra.mxu0 0.0
        %2837 = vmatprep.subr.mxu0 0.0
        %2838 = vmatpush1.msra.mxu0 0.0
        %2839 = vmatprep.mubr.f32.mxu0 0.0
        %2840 = vmatmul.mubr.f32.gmra.mrb[0].mxu0 %v2773
        %v2841 = vpop.f32.mrb[0].mxu0
        %v2842 = vadd.f32 0.0, %v2841
        %v2843 = vpop.f32.mrb[0].mxu0
        %2844 = vdwg.mxu0
        %v2846 = vsel %vm1357, %v2685, 0
        %2848 = vmatprep.subr.mxu0 0.0
        %2849 = vmatpush1.msra.mxu0 %v2688
        %2850 = vmatprep.subr.mxu0 0.0
        %2851 = vmatpush1.msra.mxu0 %v2689
        %2852 = vmatprep.subr.mxu0 0.0
        %2853 = vmatpush1.msra.mxu0 %v2690
        %2854 = vmatprep.subr.mxu0 0.0
        %2855 = vmatpush1.msra.mxu0 %v2691
        %2856 = vmatprep.subr.mxu0 0.0
        %2857 = vmatpush1.msra.mxu0 0.0
        %2858 = vmatprep.subr.mxu0 0.0
        %2859 = vmatpush1.msra.mxu0 0.0
        %2860 = vmatprep.subr.mxu0 0.0
        %2861 = vmatpush1.msra.mxu0 0.0
        %2862 = vmatprep.subr.mxu0 0.0
        %2863 = vmatpush1.msra.mxu0 0.0
        %2864 = vmatprep.subr.mxu0 0.0
        %2865 = vmatpush1.msra.mxu0 0.0
        %2866 = vmatprep.subr.mxu0 0.0
        %2867 = vmatpush1.msra.mxu0 0.0
        %2868 = vmatprep.subr.mxu0 0.0
        %2869 = vmatpush1.msra.mxu0 0.0
        %2870 = vmatprep.subr.mxu0 0.0
        %2871 = vmatpush1.msra.mxu0 0.0
        %2872 = vmatprep.subr.mxu0 0.0
        %2873 = vmatpush1.msra.mxu0 0.0
        %2874 = vmatprep.subr.mxu0 0.0
        %2875 = vmatpush1.msra.mxu0 0.0
        %2876 = vmatprep.subr.mxu0 0.0
        %2877 = vmatpush1.msra.mxu0 0.0
        %2878 = vmatprep.subr.mxu0 0.0
        %2879 = vmatpush1.msra.mxu0 0.0
        %2880 = vmatprep.subr.mxu0 0.0
        %2881 = vmatpush1.msra.mxu0 0.0
        %2882 = vmatprep.subr.mxu0 0.0
        %2883 = vmatpush1.msra.mxu0 0.0
        %2884 = vmatprep.subr.mxu0 0.0
        %2885 = vmatpush1.msra.mxu0 0.0
        %2886 = vmatprep.subr.mxu0 0.0
        %2887 = vmatpush1.msra.mxu0 0.0
        %2888 = vmatprep.subr.mxu0 0.0
        %2889 = vmatpush1.msra.mxu0 0.0
        %2890 = vmatprep.subr.mxu0 0.0
        %2891 = vmatpush1.msra.mxu0 0.0
        %2892 = vmatprep.subr.mxu0 0.0
        %2893 = vmatpush1.msra.mxu0 0.0
        %2894 = vmatprep.subr.mxu0 0.0
        %2895 = vmatpush1.msra.mxu0 0.0
        %2896 = vmatprep.subr.mxu0 0.0
        %2897 = vmatpush1.msra.mxu0 0.0
        %2898 = vmatprep.subr.mxu0 0.0
        %2899 = vmatpush1.msra.mxu0 0.0
        %2900 = vmatprep.subr.mxu0 0.0
        %2901 = vmatpush1.msra.mxu0 0.0
        %2902 = vmatprep.subr.mxu0 0.0
        %2903 = vmatpush1.msra.mxu0 0.0
        %2904 = vmatprep.subr.mxu0 0.0
        %2905 = vmatpush1.msra.mxu0 0.0
        %2906 = vmatprep.subr.mxu0 0.0
        %2907 = vmatpush1.msra.mxu0 0.0
        %2908 = vmatprep.subr.mxu0 0.0
        %2909 = vmatpush1.msra.mxu0 0.0
        %2910 = vmatprep.subr.mxu0 0.0
        %2911 = vmatpush1.msra.mxu0 0.0
        %2912 = vmatprep.mubr.f32.mxu0 0.0
        %2913 = vmatmul.mubr.f32.gmra.mrb[0].mxu0 %v2846
        %v2914 = vpop.f32.mrb[0].mxu0
        %v2915 = vadd.f32 %v2842, %v2914
        %v2916 = vpop.f32.mrb[0].mxu0
        %2917 = vdwg.mxu0
        %s2918 = scalar_lea.vmem %s13, 16
        %v2919 = vld [vmem:[%s2918] sm:$0xff]
        %v2921 = vsel %vm1668, %v2919, 0
        %2923 = vmatprep.subr.mxu0 0.0
        %2924 = vmatpush1.msra.mxu0 %v2616
        %2925 = vmatprep.subr.mxu0 0.0
        %2926 = vmatpush1.msra.mxu0 0.0
        %2927 = vmatprep.subr.mxu0 0.0
        %2928 = vmatpush1.msra.mxu0 0.0
        %2929 = vmatprep.subr.mxu0 0.0
        %2930 = vmatpush1.msra.mxu0 0.0
        %2931 = vmatprep.subr.mxu0 0.0
        %2932 = vmatpush1.msra.mxu0 0.0
        %2933 = vmatprep.subr.mxu0 0.0
        %2934 = vmatpush1.msra.mxu0 0.0
        %2935 = vmatprep.subr.mxu0 0.0
        %2936 = vmatpush1.msra.mxu0 0.0
        %2937 = vmatprep.subr.mxu0 0.0
        %2938 = vmatpush1.msra.mxu0 0.0
        %2939 = vmatprep.subr.mxu0 0.0
        %2940 = vmatpush1.msra.mxu0 0.0
        %2941 = vmatprep.subr.mxu0 0.0
        %2942 = vmatpush1.msra.mxu0 0.0
        %2943 = vmatprep.subr.mxu0 0.0
        %2944 = vmatpush1.msra.mxu0 0.0
        %2945 = vmatprep.subr.mxu0 0.0
        %2946 = vmatpush1.msra.mxu0 0.0
        %2947 = vmatprep.subr.mxu0 0.0
        %2948 = vmatpush1.msra.mxu0 0.0
        %2949 = vmatprep.subr.mxu0 0.0
        %2950 = vmatpush1.msra.mxu0 0.0
        %2951 = vmatprep.subr.mxu0 0.0
        %2952 = vmatpush1.msra.mxu0 0.0
        %2953 = vmatprep.subr.mxu0 0.0
        %2954 = vmatpush1.msra.mxu0 0.0
        %2955 = vmatprep.subr.mxu0 0.0
        %2956 = vmatpush1.msra.mxu0 0.0
        %2957 = vmatprep.subr.mxu0 0.0
        %2958 = vmatpush1.msra.mxu0 0.0
        %2959 = vmatprep.subr.mxu0 0.0
        %2960 = vmatpush1.msra.mxu0 0.0
        %2961 = vmatprep.subr.mxu0 0.0
        %2962 = vmatpush1.msra.mxu0 0.0
        %2963 = vmatprep.subr.mxu0 0.0
        %2964 = vmatpush1.msra.mxu0 0.0
        %2965 = vmatprep.subr.mxu0 0.0
        %2966 = vmatpush1.msra.mxu0 0.0
        %2967 = vmatprep.subr.mxu0 0.0
        %2968 = vmatpush1.msra.mxu0 0.0
        %2969 = vmatprep.subr.mxu0 0.0
        %2970 = vmatpush1.msra.mxu0 0.0
        %2971 = vmatprep.subr.mxu0 0.0
        %2972 = vmatpush1.msra.mxu0 0.0
        %2973 = vmatprep.subr.mxu0 0.0
        %2974 = vmatpush1.msra.mxu0 0.0
        %2975 = vmatprep.subr.mxu0 0.0
        %2976 = vmatpush1.msra.mxu0 0.0
        %2977 = vmatprep.subr.mxu0 0.0
        %2978 = vmatpush1.msra.mxu0 0.0
        %2979 = vmatprep.subr.mxu0 0.0
        %2980 = vmatpush1.msra.mxu0 0.0
        %2981 = vmatprep.subr.mxu0 0.0
        %2982 = vmatpush1.msra.mxu0 0.0
        %2983 = vmatprep.subr.mxu0 0.0
        %2984 = vmatpush1.msra.mxu0 0.0
        %2985 = vmatprep.subr.mxu0 0.0
        %2986 = vmatpush1.msra.mxu0 0.0
        %2987 = vmatprep.mubr.f32.mxu0 0.0
        %2988 = vmatmul.mubr.f32.gmra.mrb[0].mxu0 %v2921
        %v2989 = vpop.f32.mrb[0].mxu0
        %v2990 = vadd.f32 0.0, %v2989
        %v2991 = vpop.f32.mrb[0].mxu0
        %2992 = vdwg.mxu0
        %s2993 = scalar_lea.vmem %s14, 64
        %v2994 = vld [vmem:[%s2993] sm:$0xff]
        %v2995 = vld [vmem:[%s2993 + $0x8] sm:$0xff]
        %v2996 = vld [vmem:[%s2993 + $0x10] sm:$0xff]
        %v2997 = vld [vmem:[%s2993 + $0x18] sm:$0xff]
        %v2999 = vsel %vm1357, %v2990, 0
        %3001 = vmatprep.subr.mxu0 0.0
        %3002 = vmatpush1.msra.mxu0 %v2994
        %3003 = vmatprep.subr.mxu0 0.0
        %3004 = vmatpush1.msra.mxu0 %v2995
        %3005 = vmatprep.subr.mxu0 0.0
        %3006 = vmatpush1.msra.mxu0 %v2996
        %3007 = vmatprep.subr.mxu0 0.0
        %3008 = vmatpush1.msra.mxu0 %v2997
        %3009 = vmatprep.subr.mxu0 0.0
        %3010 = vmatpush1.msra.mxu0 0.0
        %3011 = vmatprep.subr.mxu0 0.0
        %3012 = vmatpush1.msra.mxu0 0.0
        %3013 = vmatprep.subr.mxu0 0.0
        %3014 = vmatpush1.msra.mxu0 0.0
        %3015 = vmatprep.subr.mxu0 0.0
        %3016 = vmatpush1.msra.mxu0 0.0
        %3017 = vmatprep.subr.mxu0 0.0
        %3018 = vmatpush1.msra.mxu0 0.0
        %3019 = vmatprep.subr.mxu0 0.0
        %3020 = vmatpush1.msra.mxu0 0.0
        %3021 = vmatprep.subr.mxu0 0.0
        %3022 = vmatpush1.msra.mxu0 0.0
        %3023 = vmatprep.subr.mxu0 0.0
        %3024 = vmatpush1.msra.mxu0 0.0
        %3025 = vmatprep.subr.mxu0 0.0
        %3026 = vmatpush1.msra.mxu0 0.0
        %3027 = vmatprep.subr.mxu0 0.0
        %3028 = vmatpush1.msra.mxu0 0.0
        %3029 = vmatprep.subr.mxu0 0.0
        %3030 = vmatpush1.msra.mxu0 0.0
        %3031 = vmatprep.subr.mxu0 0.0
        %3032 = vmatpush1.msra.mxu0 0.0
        %3033 = vmatprep.subr.mxu0 0.0
        %3034 = vmatpush1.msra.mxu0 0.0
        %3035 = vmatprep.subr.mxu0 0.0
        %3036 = vmatpush1.msra.mxu0 0.0
        %3037 = vmatprep.subr.mxu0 0.0
        %3038 = vmatpush1.msra.mxu0 0.0
        %3039 = vmatprep.subr.mxu0 0.0
        %3040 = vmatpush1.msra.mxu0 0.0
        %3041 = vmatprep.subr.mxu0 0.0
        %3042 = vmatpush1.msra.mxu0 0.0
        %3043 = vmatprep.subr.mxu0 0.0
        %3044 = vmatpush1.msra.mxu0 0.0
        %3045 = vmatprep.subr.mxu0 0.0
        %3046 = vmatpush1.msra.mxu0 0.0
        %3047 = vmatprep.subr.mxu0 0.0
        %3048 = vmatpush1.msra.mxu0 0.0
        %3049 = vmatprep.subr.mxu0 0.0
        %3050 = vmatpush1.msra.mxu0 0.0
        %3051 = vmatprep.subr.mxu0 0.0
        %3052 = vmatpush1.msra.mxu0 0.0
        %3053 = vmatprep.subr.mxu0 0.0
        %3054 = vmatpush1.msra.mxu0 0.0
        %3055 = vmatprep.subr.mxu0 0.0
        %3056 = vmatpush1.msra.mxu0 0.0
        %3057 = vmatprep.subr.mxu0 0.0
        %3058 = vmatpush1.msra.mxu0 0.0
        %3059 = vmatprep.subr.mxu0 0.0
        %3060 = vmatpush1.msra.mxu0 0.0
        %3061 = vmatprep.subr.mxu0 0.0
        %3062 = vmatpush1.msra.mxu0 0.0
        %3063 = vmatprep.subr.mxu0 0.0
        %3064 = vmatpush1.msra.mxu0 0.0
        %3065 = vmatprep.mubr.f32.mxu0 0.0
        %3066 = vmatmul.mubr.f32.gmra.mrb[0].mxu0 %v2999
        %v3067 = vpop.f32.mrb[0].mxu0
        %v3068 = vadd.f32 0.0, %v3067
        %v3069 = vpop.f32.mrb[0].mxu0
        %3070 = vdwg.mxu0
        %v3071 = vadd.f32 %v2915, %v3068
        %v3072 = vld [vmem:[%s15] sm:$0x1]
        %v3074 = vlaneseq
        %v3075 = vshrl.u32 %v3074, 7
        %v3076 = vsub.s32 0, %v3075
        %v3077 = vrot.slane %v3072, %v3076
        %v3079 = vadd.f32 %v3071, %v3077
        %v3080 = vmax.f32 %v3079, 0.0
        %v3081 = vld [vmem:[#allocation13] sm:$0xff]
        %v3082 = vld [vmem:[#allocation13 + $0x8] sm:$0xff]
        %v3084 = vsel %vm1199, %v3081, 0
        %v3087 = vsel %vm1199, %v3082, 0
        %3089 = vmatprep.subr.mxu0 0.0
        %3090 = vmatpush1.msra.mxu0 %v3080
        %3091 = vmatprep.subr.mxu0 0.0
        %3092 = vmatpush1.msra.mxu0 0.0
        %3093 = vmatprep.subr.mxu0 0.0
        %3094 = vmatpush1.msra.mxu0 0.0
        %3095 = vmatprep.subr.mxu0 0.0
        %3096 = vmatpush1.msra.mxu0 0.0
        %3097 = vmatprep.subr.mxu0 0.0
        %3098 = vmatpush1.msra.mxu0 0.0
        %3099 = vmatprep.subr.mxu0 0.0
        %3100 = vmatpush1.msra.mxu0 0.0
        %3101 = vmatprep.subr.mxu0 0.0
        %3102 = vmatpush1.msra.mxu0 0.0
        %3103 = vmatprep.subr.mxu0 0.0
        %3104 = vmatpush1.msra.mxu0 0.0
        %3105 = vmatprep.subr.mxu0 0.0
        %3106 = vmatpush1.msra.mxu0 0.0
        %3107 = vmatprep.subr.mxu0 0.0
        %3108 = vmatpush1.msra.mxu0 0.0
        %3109 = vmatprep.subr.mxu0 0.0
        %3110 = vmatpush1.msra.mxu0 0.0
        %3111 = vmatprep.subr.mxu0 0.0
        %3112 = vmatpush1.msra.mxu0 0.0
        %3113 = vmatprep.subr.mxu0 0.0
        %3114 = vmatpush1.msra.mxu0 0.0
        %3115 = vmatprep.subr.mxu0 0.0
        %3116 = vmatpush1.msra.mxu0 0.0
        %3117 = vmatprep.subr.mxu0 0.0
        %3118 = vmatpush1.msra.mxu0 0.0
        %3119 = vmatprep.subr.mxu0 0.0
        %3120 = vmatpush1.msra.mxu0 0.0
        %3121 = vmatprep.subr.mxu0 0.0
        %3122 = vmatpush1.msra.mxu0 0.0
        %3123 = vmatprep.subr.mxu0 0.0
        %3124 = vmatpush1.msra.mxu0 0.0
        %3125 = vmatprep.subr.mxu0 0.0
        %3126 = vmatpush1.msra.mxu0 0.0
        %3127 = vmatprep.subr.mxu0 0.0
        %3128 = vmatpush1.msra.mxu0 0.0
        %3129 = vmatprep.subr.mxu0 0.0
        %3130 = vmatpush1.msra.mxu0 0.0
        %3131 = vmatprep.subr.mxu0 0.0
        %3132 = vmatpush1.msra.mxu0 0.0
        %3133 = vmatprep.subr.mxu0 0.0
        %3134 = vmatpush1.msra.mxu0 0.0
        %3135 = vmatprep.subr.mxu0 0.0
        %3136 = vmatpush1.msra.mxu0 0.0
        %3137 = vmatprep.subr.mxu0 0.0
        %3138 = vmatpush1.msra.mxu0 0.0
        %3139 = vmatprep.subr.mxu0 0.0
        %3140 = vmatpush1.msra.mxu0 0.0
        %3141 = vmatprep.subr.mxu0 0.0
        %3142 = vmatpush1.msra.mxu0 0.0
        %3143 = vmatprep.subr.mxu0 0.0
        %3144 = vmatpush1.msra.mxu0 0.0
        %3145 = vmatprep.subr.mxu0 0.0
        %3146 = vmatpush1.msra.mxu0 0.0
        %3147 = vmatprep.subr.mxu0 0.0
        %3148 = vmatpush1.msra.mxu0 0.0
        %3149 = vmatprep.subr.mxu0 0.0
        %3150 = vmatpush1.msra.mxu0 0.0
        %3151 = vmatprep.subr.mxu0 0.0
        %3152 = vmatpush1.msra.mxu0 0.0
        %3153 = vmatprep.mubr.f32.mxu0 0.0
        %3154 = vmatmul.mubr.f32.gmra.mrb[0].mxu0 %v3084
        %v3155 = vpop.f32.mrb[0].mxu0
        %v3156 = vadd.f32 0.0, %v3155
        %v3157 = vpop.f32.mrb[0].mxu0
        %3158 = vmatprep.mubr.f32.mxu0 0.0
        %3159 = vmatmul.mubr.f32.gmra.mrb[0].mxu0 %v3087
        %v3160 = vpop.f32.mrb[0].mxu0
        %v3161 = vadd.f32 0.0, %v3160
        %v3162 = vpop.f32.mrb[0].mxu0
        %3163 = vdwg.mxu0
        %v3164 = vld [vmem:[%s17] sm:$0xff]
        %v3165 = vld [vmem:[%s17 + $0x8] sm:$0xff]
        %v3166 = vld [vmem:[%s17 + $0x10] sm:$0xff]
        %v3167 = vld [vmem:[%s17 + $0x18] sm:$0xff]
        %s3168 = scalar_lea.vmem [#allocation13], 16
        %v3169 = vld [vmem:[%s3168] sm:$0xff]
        %v3170 = vld [vmem:[%s3168 + $0x8] sm:$0xff]
        %v3172 = vsel %vm1199, %v3169, 0
        %v3175 = vsel %vm1199, %v3170, 0
        %3177 = vmatprep.subr.mxu0 0.0
        %3178 = vmatpush1.msra.mxu0 %v3080
        %3179 = vmatprep.subr.mxu0 0.0
        %3180 = vmatpush1.msra.mxu0 0.0
        %3181 = vmatprep.subr.mxu0 0.0
        %3182 = vmatpush1.msra.mxu0 0.0
        %3183 = vmatprep.subr.mxu0 0.0
        %3184 = vmatpush1.msra.mxu0 0.0
        %3185 = vmatprep.subr.mxu0 0.0
        %3186 = vmatpush1.msra.mxu0 0.0
        %3187 = vmatprep.subr.mxu0 0.0
        %3188 = vmatpush1.msra.mxu0 0.0
        %3189 = vmatprep.subr.mxu0 0.0
        %3190 = vmatpush1.msra.mxu0 0.0
        %3191 = vmatprep.subr.mxu0 0.0
        %3192 = vmatpush1.msra.mxu0 0.0
        %3193 = vmatprep.subr.mxu0 0.0
        %3194 = vmatpush1.msra.mxu0 0.0
        %3195 = vmatprep.subr.mxu0 0.0
        %3196 = vmatpush1.msra.mxu0 0.0
        %3197 = vmatprep.subr.mxu0 0.0
        %3198 = vmatpush1.msra.mxu0 0.0
        %3199 = vmatprep.subr.mxu0 0.0
        %3200 = vmatpush1.msra.mxu0 0.0
        %3201 = vmatprep.subr.mxu0 0.0
        %3202 = vmatpush1.msra.mxu0 0.0
        %3203 = vmatprep.subr.mxu0 0.0
        %3204 = vmatpush1.msra.mxu0 0.0
        %3205 = vmatprep.subr.mxu0 0.0
        %3206 = vmatpush1.msra.mxu0 0.0
        %3207 = vmatprep.subr.mxu0 0.0
        %3208 = vmatpush1.msra.mxu0 0.0
        %3209 = vmatprep.subr.mxu0 0.0
        %3210 = vmatpush1.msra.mxu0 0.0
        %3211 = vmatprep.subr.mxu0 0.0
        %3212 = vmatpush1.msra.mxu0 0.0
        %3213 = vmatprep.subr.mxu0 0.0
        %3214 = vmatpush1.msra.mxu0 0.0
        %3215 = vmatprep.subr.mxu0 0.0
        %3216 = vmatpush1.msra.mxu0 0.0
        %3217 = vmatprep.subr.mxu0 0.0
        %3218 = vmatpush1.msra.mxu0 0.0
        %3219 = vmatprep.subr.mxu0 0.0
        %3220 = vmatpush1.msra.mxu0 0.0
        %3221 = vmatprep.subr.mxu0 0.0
        %3222 = vmatpush1.msra.mxu0 0.0
        %3223 = vmatprep.subr.mxu0 0.0
        %3224 = vmatpush1.msra.mxu0 0.0
        %3225 = vmatprep.subr.mxu0 0.0
        %3226 = vmatpush1.msra.mxu0 0.0
        %3227 = vmatprep.subr.mxu0 0.0
        %3228 = vmatpush1.msra.mxu0 0.0
        %3229 = vmatprep.subr.mxu0 0.0
        %3230 = vmatpush1.msra.mxu0 0.0
        %3231 = vmatprep.subr.mxu0 0.0
        %3232 = vmatpush1.msra.mxu0 0.0
        %3233 = vmatprep.subr.mxu0 0.0
        %3234 = vmatpush1.msra.mxu0 0.0
        %3235 = vmatprep.subr.mxu0 0.0
        %3236 = vmatpush1.msra.mxu0 0.0
        %3237 = vmatprep.subr.mxu0 0.0
        %3238 = vmatpush1.msra.mxu0 0.0
        %3239 = vmatprep.subr.mxu0 0.0
        %3240 = vmatpush1.msra.mxu0 0.0
        %3241 = vmatprep.mubr.f32.mxu0 0.0
        %3242 = vmatmul.mubr.f32.gmra.mrb[0].mxu0 %v3172
        %v3243 = vpop.f32.mrb[0].mxu0
        %v3244 = vadd.f32 0.0, %v3243
        %v3245 = vpop.f32.mrb[0].mxu0
        %3246 = vmatprep.mubr.f32.mxu0 0.0
        %3247 = vmatmul.mubr.f32.gmra.mrb[0].mxu0 %v3175
        %v3248 = vpop.f32.mrb[0].mxu0
        %v3249 = vadd.f32 0.0, %v3248
        %v3250 = vpop.f32.mrb[0].mxu0
        %3251 = vdwg.mxu0
        %s3252 = scalar_lea.vmem %s17, 32
        %v3253 = vld [vmem:[%s3252] sm:$0xff]
        %v3254 = vld [vmem:[%s3252 + $0x8] sm:$0xff]
        %v3255 = vld [vmem:[%s3252 + $0x10] sm:$0xff]
        %v3256 = vld [vmem:[%s3252 + $0x18] sm:$0xff]
        %v3258 = vsel %vm1357, %v3244, 0
        %v3261 = vsel %vm1357, %v3249, 0
        %3263 = vmatprep.subr.mxu0 0.0
        %3264 = vmatpush1.msra.mxu0 %v3253
        %3265 = vmatprep.subr.mxu0 0.0
        %3266 = vmatpush1.msra.mxu0 %v3254
        %3267 = vmatprep.subr.mxu0 0.0
        %3268 = vmatpush1.msra.mxu0 %v3255
        %3269 = vmatprep.subr.mxu0 0.0
        %3270 = vmatpush1.msra.mxu0 %v3256
        %3271 = vmatprep.subr.mxu0 0.0
        %3272 = vmatpush1.msra.mxu0 0.0
        %3273 = vmatprep.subr.mxu0 0.0
        %3274 = vmatpush1.msra.mxu0 0.0
        %3275 = vmatprep.subr.mxu0 0.0
        %3276 = vmatpush1.msra.mxu0 0.0
        %3277 = vmatprep.subr.mxu0 0.0
        %3278 = vmatpush1.msra.mxu0 0.0
        %3279 = vmatprep.subr.mxu0 0.0
        %3280 = vmatpush1.msra.mxu0 0.0
        %3281 = vmatprep.subr.mxu0 0.0
        %3282 = vmatpush1.msra.mxu0 0.0
        %3283 = vmatprep.subr.mxu0 0.0
        %3284 = vmatpush1.msra.mxu0 0.0
        %3285 = vmatprep.subr.mxu0 0.0
        %3286 = vmatpush1.msra.mxu0 0.0
        %3287 = vmatprep.subr.mxu0 0.0
        %3288 = vmatpush1.msra.mxu0 0.0
        %3289 = vmatprep.subr.mxu0 0.0
        %3290 = vmatpush1.msra.mxu0 0.0
        %3291 = vmatprep.subr.mxu0 0.0
        %3292 = vmatpush1.msra.mxu0 0.0
        %3293 = vmatprep.subr.mxu0 0.0
        %3294 = vmatpush1.msra.mxu0 0.0
        %3295 = vmatprep.subr.mxu0 0.0
        %3296 = vmatpush1.msra.mxu0 0.0
        %3297 = vmatprep.subr.mxu0 0.0
        %3298 = vmatpush1.msra.mxu0 0.0
        %3299 = vmatprep.subr.mxu0 0.0
        %3300 = vmatpush1.msra.mxu0 0.0
        %3301 = vmatprep.subr.mxu0 0.0
        %3302 = vmatpush1.msra.mxu0 0.0
        %3303 = vmatprep.subr.mxu0 0.0
        %3304 = vmatpush1.msra.mxu0 0.0
        %3305 = vmatprep.subr.mxu0 0.0
        %3306 = vmatpush1.msra.mxu0 0.0
        %3307 = vmatprep.subr.mxu0 0.0
        %3308 = vmatpush1.msra.mxu0 0.0
        %3309 = vmatprep.subr.mxu0 0.0
        %3310 = vmatpush1.msra.mxu0 0.0
        %3311 = vmatprep.subr.mxu0 0.0
        %3312 = vmatpush1.msra.mxu0 0.0
        %3313 = vmatprep.subr.mxu0 0.0
        %3314 = vmatpush1.msra.mxu0 0.0
        %3315 = vmatprep.subr.mxu0 0.0
        %3316 = vmatpush1.msra.mxu0 0.0
        %3317 = vmatprep.subr.mxu0 0.0
        %3318 = vmatpush1.msra.mxu0 0.0
        %3319 = vmatprep.subr.mxu0 0.0
        %3320 = vmatpush1.msra.mxu0 0.0
        %3321 = vmatprep.subr.mxu0 0.0
        %3322 = vmatpush1.msra.mxu0 0.0
        %3323 = vmatprep.subr.mxu0 0.0
        %3324 = vmatpush1.msra.mxu0 0.0
        %3325 = vmatprep.subr.mxu0 0.0
        %3326 = vmatpush1.msra.mxu0 0.0
        %3327 = vmatprep.mubr.f32.mxu0 0.0
        %3328 = vmatmul.mubr.f32.gmra.mrb[0].mxu0 %v3258
        %v3329 = vpop.f32.mrb[0].mxu0
        %v3330 = vadd.f32 0.0, %v3329
        %v3331 = vpop.f32.mrb[0].mxu0
        %3332 = vmatprep.mubr.f32.mxu0 0.0
        %3333 = vmatmul.mubr.f32.gmra.mrb[0].mxu0 %v3261
        %v3334 = vpop.f32.mrb[0].mxu0
        %v3335 = vadd.f32 0.0, %v3334
        %v3336 = vpop.f32.mrb[0].mxu0
        %3337 = vdwg.mxu0
        %v3339 = vsel %vm1357, %v3156, 0
        %v3342 = vsel %vm1357, %v3161, 0
        %3344 = vmatprep.subr.mxu0 0.0
        %3345 = vmatpush1.msra.mxu0 %v3164
        %3346 = vmatprep.subr.mxu0 0.0
        %3347 = vmatpush1.msra.mxu0 %v3165
        %3348 = vmatprep.subr.mxu0 0.0
        %3349 = vmatpush1.msra.mxu0 %v3166
        %3350 = vmatprep.subr.mxu0 0.0
        %3351 = vmatpush1.msra.mxu0 %v3167
        %3352 = vmatprep.subr.mxu0 0.0
        %3353 = vmatpush1.msra.mxu0 0.0
        %3354 = vmatprep.subr.mxu0 0.0
        %3355 = vmatpush1.msra.mxu0 0.0
        %3356 = vmatprep.subr.mxu0 0.0
        %3357 = vmatpush1.msra.mxu0 0.0
        %3358 = vmatprep.subr.mxu0 0.0
        %3359 = vmatpush1.msra.mxu0 0.0
        %3360 = vmatprep.subr.mxu0 0.0
        %3361 = vmatpush1.msra.mxu0 0.0
        %3362 = vmatprep.subr.mxu0 0.0
        %3363 = vmatpush1.msra.mxu0 0.0
        %3364 = vmatprep.subr.mxu0 0.0
        %3365 = vmatpush1.msra.mxu0 0.0
        %3366 = vmatprep.subr.mxu0 0.0
        %3367 = vmatpush1.msra.mxu0 0.0
        %3368 = vmatprep.subr.mxu0 0.0
        %3369 = vmatpush1.msra.mxu0 0.0
        %3370 = vmatprep.subr.mxu0 0.0
        %3371 = vmatpush1.msra.mxu0 0.0
        %3372 = vmatprep.subr.mxu0 0.0
        %3373 = vmatpush1.msra.mxu0 0.0
        %3374 = vmatprep.subr.mxu0 0.0
        %3375 = vmatpush1.msra.mxu0 0.0
        %3376 = vmatprep.subr.mxu0 0.0
        %3377 = vmatpush1.msra.mxu0 0.0
        %3378 = vmatprep.subr.mxu0 0.0
        %3379 = vmatpush1.msra.mxu0 0.0
        %3380 = vmatprep.subr.mxu0 0.0
        %3381 = vmatpush1.msra.mxu0 0.0
        %3382 = vmatprep.subr.mxu0 0.0
        %3383 = vmatpush1.msra.mxu0 0.0
        %3384 = vmatprep.subr.mxu0 0.0
        %3385 = vmatpush1.msra.mxu0 0.0
        %3386 = vmatprep.subr.mxu0 0.0
        %3387 = vmatpush1.msra.mxu0 0.0
        %3388 = vmatprep.subr.mxu0 0.0
        %3389 = vmatpush1.msra.mxu0 0.0
        %3390 = vmatprep.subr.mxu0 0.0
        %3391 = vmatpush1.msra.mxu0 0.0
        %3392 = vmatprep.subr.mxu0 0.0
        %3393 = vmatpush1.msra.mxu0 0.0
        %3394 = vmatprep.subr.mxu0 0.0
        %3395 = vmatpush1.msra.mxu0 0.0
        %3396 = vmatprep.subr.mxu0 0.0
        %3397 = vmatpush1.msra.mxu0 0.0
        %3398 = vmatprep.subr.mxu0 0.0
        %3399 = vmatpush1.msra.mxu0 0.0
        %3400 = vmatprep.subr.mxu0 0.0
        %3401 = vmatpush1.msra.mxu0 0.0
        %3402 = vmatprep.subr.mxu0 0.0
        %3403 = vmatpush1.msra.mxu0 0.0
        %3404 = vmatprep.subr.mxu0 0.0
        %3405 = vmatpush1.msra.mxu0 0.0
        %3406 = vmatprep.subr.mxu0 0.0
        %3407 = vmatpush1.msra.mxu0 0.0
        %3408 = vmatprep.mubr.f32.mxu0 0.0
        %3409 = vmatmul.mubr.f32.gmra.mrb[0].mxu0 %v3339
        %v3410 = vpop.f32.mrb[0].mxu0
        %v3411 = vadd.f32 %v3330, %v3410
        %v3412 = vpop.f32.mrb[0].mxu0
        %3413 = vmatprep.mubr.f32.mxu0 0.0
        %3414 = vmatmul.mubr.f32.gmra.mrb[0].mxu0 %v3342
        %v3415 = vpop.f32.mrb[0].mxu0
        %v3416 = vadd.f32 %v3335, %v3415
        %v3417 = vpop.f32.mrb[0].mxu0
        %3418 = vdwg.mxu0
        %s3419 = scalar_lea.vmem [#allocation13], 32
        %v3420 = vld [vmem:[%s3419] sm:$0xff]
        %v3421 = vld [vmem:[%s3419 + $0x8] sm:$0xff]
        %v3423 = vsel %vm1199, %v3420, 0
        %v3426 = vsel %vm1199, %v3421, 0
        %3428 = vmatprep.subr.mxu0 0.0
        %3429 = vmatpush1.msra.mxu0 %v3080
        %3430 = vmatprep.subr.mxu0 0.0
        %3431 = vmatpush1.msra.mxu0 0.0
        %3432 = vmatprep.subr.mxu0 0.0
        %3433 = vmatpush1.msra.mxu0 0.0
        %3434 = vmatprep.subr.mxu0 0.0
        %3435 = vmatpush1.msra.mxu0 0.0
        %3436 = vmatprep.subr.mxu0 0.0
        %3437 = vmatpush1.msra.mxu0 0.0
        %3438 = vmatprep.subr.mxu0 0.0
        %3439 = vmatpush1.msra.mxu0 0.0
        %3440 = vmatprep.subr.mxu0 0.0
        %3441 = vmatpush1.msra.mxu0 0.0
        %3442 = vmatprep.subr.mxu0 0.0
        %3443 = vmatpush1.msra.mxu0 0.0
        %3444 = vmatprep.subr.mxu0 0.0
        %3445 = vmatpush1.msra.mxu0 0.0
        %3446 = vmatprep.subr.mxu0 0.0
        %3447 = vmatpush1.msra.mxu0 0.0
        %3448 = vmatprep.subr.mxu0 0.0
        %3449 = vmatpush1.msra.mxu0 0.0
        %3450 = vmatprep.subr.mxu0 0.0
        %3451 = vmatpush1.msra.mxu0 0.0
        %3452 = vmatprep.subr.mxu0 0.0
        %3453 = vmatpush1.msra.mxu0 0.0
        %3454 = vmatprep.subr.mxu0 0.0
        %3455 = vmatpush1.msra.mxu0 0.0
        %3456 = vmatprep.subr.mxu0 0.0
        %3457 = vmatpush1.msra.mxu0 0.0
        %3458 = vmatprep.subr.mxu0 0.0
        %3459 = vmatpush1.msra.mxu0 0.0
        %3460 = vmatprep.subr.mxu0 0.0
        %3461 = vmatpush1.msra.mxu0 0.0
        %3462 = vmatprep.subr.mxu0 0.0
        %3463 = vmatpush1.msra.mxu0 0.0
        %3464 = vmatprep.subr.mxu0 0.0
        %3465 = vmatpush1.msra.mxu0 0.0
        %3466 = vmatprep.subr.mxu0 0.0
        %3467 = vmatpush1.msra.mxu0 0.0
        %3468 = vmatprep.subr.mxu0 0.0
        %3469 = vmatpush1.msra.mxu0 0.0
        %3470 = vmatprep.subr.mxu0 0.0
        %3471 = vmatpush1.msra.mxu0 0.0
        %3472 = vmatprep.subr.mxu0 0.0
        %3473 = vmatpush1.msra.mxu0 0.0
        %3474 = vmatprep.subr.mxu0 0.0
        %3475 = vmatpush1.msra.mxu0 0.0
        %3476 = vmatprep.subr.mxu0 0.0
        %3477 = vmatpush1.msra.mxu0 0.0
        %3478 = vmatprep.subr.mxu0 0.0
        %3479 = vmatpush1.msra.mxu0 0.0
        %3480 = vmatprep.subr.mxu0 0.0
        %3481 = vmatpush1.msra.mxu0 0.0
        %3482 = vmatprep.subr.mxu0 0.0
        %3483 = vmatpush1.msra.mxu0 0.0
        %3484 = vmatprep.subr.mxu0 0.0
        %3485 = vmatpush1.msra.mxu0 0.0
        %3486 = vmatprep.subr.mxu0 0.0
        %3487 = vmatpush1.msra.mxu0 0.0
        %3488 = vmatprep.subr.mxu0 0.0
        %3489 = vmatpush1.msra.mxu0 0.0
        %3490 = vmatprep.subr.mxu0 0.0
        %3491 = vmatpush1.msra.mxu0 0.0
        %3492 = vmatprep.mubr.f32.mxu0 0.0
        %3493 = vmatmul.mubr.f32.gmra.mrb[0].mxu0 %v3423
        %v3494 = vpop.f32.mrb[0].mxu0
        %v3495 = vadd.f32 0.0, %v3494
        %v3496 = vpop.f32.mrb[0].mxu0
        %3497 = vmatprep.mubr.f32.mxu0 0.0
        %3498 = vmatmul.mubr.f32.gmra.mrb[0].mxu0 %v3426
        %v3499 = vpop.f32.mrb[0].mxu0
        %v3500 = vadd.f32 0.0, %v3499
        %v3501 = vpop.f32.mrb[0].mxu0
        %3502 = vdwg.mxu0
        %s3503 = scalar_lea.vmem %s17, 64
        %v3504 = vld [vmem:[%s3503] sm:$0xff]
        %v3505 = vld [vmem:[%s3503 + $0x8] sm:$0xff]
        %v3506 = vld [vmem:[%s3503 + $0x10] sm:$0xff]
        %v3507 = vld [vmem:[%s3503 + $0x18] sm:$0xff]
        %v3509 = vsel %vm1357, %v3495, 0
        %v3512 = vsel %vm1357, %v3500, 0
        %3514 = vmatprep.subr.mxu0 0.0
        %3515 = vmatpush1.msra.mxu0 %v3504
        %3516 = vmatprep.subr.mxu0 0.0
        %3517 = vmatpush1.msra.mxu0 %v3505
        %3518 = vmatprep.subr.mxu0 0.0
        %3519 = vmatpush1.msra.mxu0 %v3506
        %3520 = vmatprep.subr.mxu0 0.0
        %3521 = vmatpush1.msra.mxu0 %v3507
        %3522 = vmatprep.subr.mxu0 0.0
        %3523 = vmatpush1.msra.mxu0 0.0
        %3524 = vmatprep.subr.mxu0 0.0
        %3525 = vmatpush1.msra.mxu0 0.0
        %3526 = vmatprep.subr.mxu0 0.0
        %3527 = vmatpush1.msra.mxu0 0.0
        %3528 = vmatprep.subr.mxu0 0.0
        %3529 = vmatpush1.msra.mxu0 0.0
        %3530 = vmatprep.subr.mxu0 0.0
        %3531 = vmatpush1.msra.mxu0 0.0
        %3532 = vmatprep.subr.mxu0 0.0
        %3533 = vmatpush1.msra.mxu0 0.0
        %3534 = vmatprep.subr.mxu0 0.0
        %3535 = vmatpush1.msra.mxu0 0.0
        %3536 = vmatprep.subr.mxu0 0.0
        %3537 = vmatpush1.msra.mxu0 0.0
        %3538 = vmatprep.subr.mxu0 0.0
        %3539 = vmatpush1.msra.mxu0 0.0
        %3540 = vmatprep.subr.mxu0 0.0
        %3541 = vmatpush1.msra.mxu0 0.0
        %3542 = vmatprep.subr.mxu0 0.0
        %3543 = vmatpush1.msra.mxu0 0.0
        %3544 = vmatprep.subr.mxu0 0.0
        %3545 = vmatpush1.msra.mxu0 0.0
        %3546 = vmatprep.subr.mxu0 0.0
        %3547 = vmatpush1.msra.mxu0 0.0
        %3548 = vmatprep.subr.mxu0 0.0
        %3549 = vmatpush1.msra.mxu0 0.0
        %3550 = vmatprep.subr.mxu0 0.0
        %3551 = vmatpush1.msra.mxu0 0.0
        %3552 = vmatprep.subr.mxu0 0.0
        %3553 = vmatpush1.msra.mxu0 0.0
        %3554 = vmatprep.subr.mxu0 0.0
        %3555 = vmatpush1.msra.mxu0 0.0
        %3556 = vmatprep.subr.mxu0 0.0
        %3557 = vmatpush1.msra.mxu0 0.0
        %3558 = vmatprep.subr.mxu0 0.0
        %3559 = vmatpush1.msra.mxu0 0.0
        %3560 = vmatprep.subr.mxu0 0.0
        %3561 = vmatpush1.msra.mxu0 0.0
        %3562 = vmatprep.subr.mxu0 0.0
        %3563 = vmatpush1.msra.mxu0 0.0
        %3564 = vmatprep.subr.mxu0 0.0
        %3565 = vmatpush1.msra.mxu0 0.0
        %3566 = vmatprep.subr.mxu0 0.0
        %3567 = vmatpush1.msra.mxu0 0.0
        %3568 = vmatprep.subr.mxu0 0.0
        %3569 = vmatpush1.msra.mxu0 0.0
        %3570 = vmatprep.subr.mxu0 0.0
        %3571 = vmatpush1.msra.mxu0 0.0
        %3572 = vmatprep.subr.mxu0 0.0
        %3573 = vmatpush1.msra.mxu0 0.0
        %3574 = vmatprep.subr.mxu0 0.0
        %3575 = vmatpush1.msra.mxu0 0.0
        %3576 = vmatprep.subr.mxu0 0.0
        %3577 = vmatpush1.msra.mxu0 0.0
        %3578 = vmatprep.mubr.f32.mxu0 0.0
        %3579 = vmatmul.mubr.f32.gmra.mrb[0].mxu0 %v3509
        %v3580 = vpop.f32.mrb[0].mxu0
        %v3581 = vadd.f32 0.0, %v3580
        %v3582 = vpop.f32.mrb[0].mxu0
        %3583 = vmatprep.mubr.f32.mxu0 0.0
        %3584 = vmatmul.mubr.f32.gmra.mrb[0].mxu0 %v3512
        %v3585 = vpop.f32.mrb[0].mxu0
        %v3586 = vadd.f32 0.0, %v3585
        %v3587 = vpop.f32.mrb[0].mxu0
        %3588 = vdwg.mxu0
        %v3589 = vadd.f32 %v3411, %v3581
        %v3590 = vadd.f32 %v3416, %v3586
        %v3591 = vld [vmem:[%s18] sm:$0x1]
        %v3593 = vlaneseq
        %v3594 = vshrl.u32 %v3593, 7
        %v3595 = vsub.s32 0, %v3594
        %v3596 = vrot.slane %v3591, %v3595
        %v3598 = vadd.f32 %v3589, %v3596
        %v3599 = vadd.f32 %v3590, %v3596
        %3600 = vst.msk [vmem:[%s719] sm:$0xff] %vm886, %v3598
        %3601 = vst.msk [vmem:[%s719 + $0x8] sm:$0xff] %vm886, %v3599
        %s3602 = smul.u32 2, %s35
        %p3603 = scmp.lt.s32.totalorder %s3602, 3
        %s3604 = scalar_select %p3603, %s3602, 3
        %s3605 = smul.addr %s3604, 8
        %s3606 = scalar_lea.vmem %s19, %s3605
        // Predicated region
        $region129: #{autoencoder_forward.1} parent=95 // pred_check
          %p3607 = pneg %p457
        $region130: #{autoencoder_forward.1} parent=95 // pred_check_branch
          %3609 = sbr.rel (%p3607) target = $region132
        $region131: #{autoencoder_forward.1} parent=95 // pred_region
          %s3610 = smul.u32 2, %s35
        $region132: #{autoencoder_forward.1} parent=95 // pred_fallthru
          _
      $region96: #{autoencoder_forward.1} parent=5 // pred_fallthru
        _
      %p3611 = scmp.le.s32.totalorder 2, %s30
      // Predicated region
      $region133: #{autoencoder_forward.1} parent=5 // pred_check
        %p3612 = pneg %p3611
      $region134: #{autoencoder_forward.1} parent=5 // pred_check_branch
        %3614 = sbr.rel (%p3612) target = $region136
      $region135: #{autoencoder_forward.1} parent=5 // pred_region
        %s3615 = ssub.s32 %s30, 2
        // Predicated region
        $region137: #{autoencoder_forward.1} parent=135 // pred_check
          %p3616 = pneg %p463
        $region138: #{autoencoder_forward.1} parent=135 // pred_check_branch
          %3618 = sbr.rel (%p3616) target = $region140
        $region139: #{autoencoder_forward.1} parent=135 // pred_region
          %s3619 = smul.u32 2, %s36
          %p3620 = scmp.lt.s32.totalorder %s3619, 3
          %s3621 = scalar_select %p3620, %s3619, 3
          %s3622 = smul.addr %s3621, 8
          %s3623 = scalar_lea.vmem %s19, %s3622
        $region140: #{autoencoder_forward.1} parent=135 // pred_fallthru
          _
      $region136: #{autoencoder_forward.1} parent=5 // pred_fallthru
        _
    $region6: #{autoencoder_forward.1} parent=1 // loop_footer
      %s34 = sadd.s32 1, %s30
    $region7: #{autoencoder_forward.1} parent=1 // loop_footer_branch
      %29 = sbr.rel target = $region3
    $region8: #{autoencoder_forward.1} parent=1 // loop_exit
      _
    %3624 = vsyncpa [#allocation3], 1
    %s3625 = scalar_lea.sflag [#allocation3], 1
    %3626 = vsyncpa %s3625, 1
    %3627 = vsyncpa [#allocation5], 1
    %3628 = vsyncpa [#allocation8], 1
    %3629 = vsyncpa [#allocation11], 1
    %3630 = vsyncpa [#allocation14], 1

</llo_original>
